<compile_context>
chip_gen: v7x
topology: tpu7x:2x2x1
jax: 0.10.0
libtpu: 0.0.40
codegen_flags: <defaults>
</compile_context>

<pallas_src>
import functools

import jax
import jax.numpy as jnp
from jax.experimental import pallas as pl
from jax.experimental.pallas import tpu as pltpu

LANES = 128
COMPUTE_DTYPE = jnp.bfloat16       # storage / MXU-input dtype (accumulate in f32)
VMEM_LIMIT = 32 * 1024 * 1024      # <= scoped budget on every generation


def _round_up(n, m):
    return ((n + m - 1) // m) * m


# ----------------------------------------------------------------------------
# Kernel 1: conv1 (5x5, pad=2, 1->6) + ReLU + AvgPool2d(2,2)
# ----------------------------------------------------------------------------
def _conv1_relu_pool_kernel(x_ref, w_ref, b_ref, o_ref):
    """x_ref: (4, TM, 32)  phase-plane im2col columns (bf16)
         plane p = pool phase (ph*2+pw); row = pooled position (b, ho, wo);
         col  = (dy, dx) zero-padded 25 -> 32.
       w_ref: (32, 128)  conv1 weight, Cout 6 -> 128 lanes (bf16)
       b_ref: (1, 128)   bias (f32)
       o_ref: (TM, 6)    pooled activations (bf16)
    """
    pooled = None
    for p in range(4):                              # static; ReLU before the pool sum
        y = jnp.dot(x_ref[p], w_ref[...], preferred_element_type=jnp.float32)
        y = jnp.maximum(y + b_ref[...], 0.0)        # f32 epilogue
        pooled = y if pooled is None else pooled + y
    pooled = 0.25 * pooled                          # AvgPool on the VPU, f32
    o_ref[...] = pooled[:, :6].astype(o_ref.dtype)


def conv1_relu_pool(x_nhwc, w, b, cdtype=COMPUTE_DTYPE):
    """x_nhwc: (B, 28, 28, 1) f32 -> (B, 14, 14, 6) bf16."""
    B = x_nhwc.shape[0]
    k = 5
    xp = jnp.pad(x_nhwc, ((0, 0), (2, 2), (2, 2), (0, 0)))        # (B, 32, 32, 1)
    win = [xp[:, dy:dy + 28, dx:dx + 28, 0] for dy in range(k) for dx in range(k)]
    cols = jnp.stack(win, axis=-1)                                 # (B, 28, 28, 25)
    cols = jnp.pad(cols, ((0, 0), (0, 0), (0, 0), (0, 32 - 25)))   # K 25 -> 32
    # Phase-plane layout: (4, B*14*14, 32); pooled positions are rows.
    cols = cols.reshape(B, 14, 2, 14, 2, 32).transpose(2, 4, 0, 1, 3, 5)
    cols = cols.reshape(4, B * 196, 32)

    M = B * 196
    n_tiles = max(2, -(-M // 1024)) if M >= 64 else 1              # grid >= 2 (v7x TCs)
    TM = _round_up(-(-M // n_tiles), 32)
    n_tiles = -(-M // TM)
    Mp = n_tiles * TM
    cols = jnp.pad(cols, ((0, 0), (0, Mp - M), (0, 0))).astype(cdtype)

    wm = w.transpose(2, 3, 1, 0).reshape(25, 6)                    # rows = (dy, dx, ci)
    wm = jnp.pad(wm, ((0, 32 - 25), (0, LANES - 6))).astype(cdtype)
    bm = jnp.pad(b, (0, LANES - 6)).reshape(1, LANES).astype(jnp.float32)

    out = pl.pallas_call(
        _conv1_relu_pool_kernel,
        out_shape=jax.ShapeDtypeStruct((Mp, 6), cdtype),
        grid=(n_tiles,),
        in_specs=[
            pl.BlockSpec((4, TM, 32), lambda i: (0, i, 0)),        # im2col phase planes
            pl.BlockSpec((32, LANES), lambda i: (0, 0)),           # weight (VMEM-resident)
            pl.BlockSpec((1, LANES), lambda i: (0, 0)),            # bias
        ],
        out_specs=pl.BlockSpec((TM, 6), lambda i: (i, 0)),
        compiler_params=pltpu.CompilerParams(
            dimension_semantics=("parallel",),
            vmem_limit_bytes=VMEM_LIMIT),
    )(cols, wm, bm)
    return out[:M].reshape(B, 14, 14, 6)


# ----------------------------------------------------------------------------
# Kernel 2: conv2 + ReLU + AvgPool + conv3 + ReLU + fc1 + ReLU + Dropout(id) + fc2
# ----------------------------------------------------------------------------
def _conv2_head_kernel(x_ref, w2_ref, b2_ref, w3_ref, b3_ref,
                       w4_ref, b4_ref, w5_ref, b5_ref, o_ref, *, tb):
    """x_ref: (100*tb, 160) conv2 im2col rows, ordered (ph, pw, ho, wo, sample)."""
    q = 25 * tb
    # conv2 as one K=160 contraction (16 output channels), bias + ReLU in f32.
    y = jnp.dot(x_ref[...], w2_ref[...], preferred_element_type=jnp.float32)
    y = jnp.maximum(y + b2_ref[...], 0.0)                           # (4q, 16)
    # AvgPool2d(2,2): the four pool phases are contiguous row quarters (VPU, f32).
    pooled = 0.25 * (y[0:q] + y[q:2 * q] + y[2 * q:3 * q] + y[3 * q:4 * q])
    pooled = pooled.astype(w3_ref.dtype)                            # (q, 16), rows = (pos j, sample)
    # conv3 (dense 400 -> 120): 25 per-position (tb,16)x(16,128) MXU blocks, f32 accum.
    acc = jnp.zeros((tb, LANES), jnp.float32)
    for j in range(25):                                             # static loop
        acc = acc + jnp.dot(pooled[j * tb:(j + 1) * tb, :],
                            w3_ref[16 * j:16 * (j + 1), :],
                            preferred_element_type=jnp.float32)
    h = jnp.maximum(acc + b3_ref[...], 0.0)                         # conv3 + ReLU
    h = jnp.dot(h.astype(w4_ref.dtype), w4_ref[...],
                preferred_element_type=jnp.float32)
    h = jnp.maximum(h + b4_ref[...], 0.0)                           # fc1 + ReLU
    # TODO(synk): nn.Dropout applied as identity (inference semantics); no PRNG mask.
    h = jnp.dot(h.astype(w5_ref.dtype), w5_ref[...],
                preferred_element_type=jnp.float32)
    o_ref[...] = (h + b5_ref[...]).astype(o_ref.dtype)              # fc2, f32 logits


def conv2_head(a1, w2, b2, w3, b3, w4, b4, w5, b5, cdtype=COMPUTE_DTYPE):
    """a1: (B, 14, 14, 6) bf16 -> (B, num_classes) f32 logits."""
    B = a1.shape[0]
    num_classes = w5.shape[0]
    TB = min(32, _round_up(max(-(-B // 2), 1), 8))                  # batch tile (mult of 8)
    nbt = -(-B // TB)
    Bp = nbt * TB
    a1p = jnp.pad(a1, ((0, Bp - B), (0, 0), (0, 0), (0, 0)))

    win = [a1p[:, dy:dy + 10, dx:dx + 10, :] for dy in range(5) for dx in range(5)]
    cols = jnp.concatenate(win, axis=-1)                            # (Bp, 10, 10, 150)
    K2, K2p = 150, 160                                              # lane dim = full array dim
    cols = jnp.pad(cols, ((0, 0), (0, 0), (0, 0), (0, K2p - K2)))
    # Row order per batch tile: (ph, pw, ho, wo, sample) -> pool phases are row quarters.
    cols = cols.reshape(nbt, TB, 5, 2, 5, 2, K2p).transpose(0, 3, 5, 2, 4, 1, 6)
    cols = cols.reshape(nbt * 100 * TB, K2p).astype(cdtype)

    w2m = w2.transpose(2, 3, 1, 0).reshape(K2, 16)                  # rows = (dy, dx, ci)
    w2m = jnp.pad(w2m, ((0, K2p - K2), (0, 0))).astype(cdtype)
    b2m = b2.reshape(1, 16).astype(jnp.float32)
    w3m = w3.transpose(2, 3, 1, 0).reshape(400, 120)                # rows = (dy, dx, ci)
    w3m = jnp.pad(w3m, ((0, 0), (0, LANES - 120))).astype(cdtype)
    b3m = jnp.pad(b3, (0, LANES - 120)).reshape(1, LANES).astype(jnp.float32)
    w4m = jnp.pad(w4.T, ((0, LANES - 120), (0, LANES - 84))).astype(cdtype)
    b4m = jnp.pad(b4, (0, LANES - 84)).reshape(1, LANES).astype(jnp.float32)
    w5m = jnp.pad(w5.T, ((0, LANES - 84), (0, LANES - num_classes))).astype(cdtype)
    b5m = jnp.pad(b5, (0, LANES - num_classes)).reshape(1, LANES).astype(jnp.float32)

    kern = functools.partial(_conv2_head_kernel, tb=TB)
    out = pl.pallas_call(
        kern,
        out_shape=jax.ShapeDtypeStruct((Bp, LANES), jnp.float32),
        grid=(nbt,),
        in_specs=[
            pl.BlockSpec((100 * TB, K2p), lambda i: (i, 0)),        # conv2 im2col rows
            pl.BlockSpec((K2p, 16), lambda i: (0, 0)),              # conv2 weight
            pl.BlockSpec((1, 16), lambda i: (0, 0)),
            pl.BlockSpec((400, LANES), lambda i: (0, 0)),           # conv3 weight
            pl.BlockSpec((1, LANES), lambda i: (0, 0)),
            pl.BlockSpec((LANES, LANES), lambda i: (0, 0)),         # fc1 weight
            pl.BlockSpec((1, LANES), lambda i: (0, 0)),
            pl.BlockSpec((LANES, LANES), lambda i: (0, 0)),         # fc2 weight
            pl.BlockSpec((1, LANES), lambda i: (0, 0)),
        ],
        out_specs=pl.BlockSpec((TB, LANES), lambda i: (i, 0)),
        compiler_params=pltpu.CompilerParams(
            dimension_semantics=("parallel",),
            vmem_limit_bytes=VMEM_LIMIT),
    )(cols, w2m, b2m, w3m, b3m, w4m, b4m, w5m, b5m)
    return out[:B, :num_classes]


# ----------------------------------------------------------------------------
# LeNet5 parameters (PyTorch layouts, deterministic synthetic init) and forward
# ----------------------------------------------------------------------------
def init_params(key, num_classes=10):
    ks = jax.random.split(key, 10)

    def w(k, shape, fan_in):
        return jax.random.normal(k, shape, jnp.float32) / jnp.sqrt(fan_in)

    return {
        "conv1_w": w(ks[0], (6, 1, 5, 5), 1 * 25),
        "conv1_b": 0.01 * jax.random.normal(ks[1], (6,), jnp.float32),
        "conv2_w": w(ks[2], (16, 6, 5, 5), 6 * 25),
        "conv2_b": 0.01 * jax.random.normal(ks[3], (16,), jnp.float32),
        "conv3_w": w(ks[4], (120, 16, 5, 5), 16 * 25),
        "conv3_b": 0.01 * jax.random.normal(ks[5], (120,), jnp.float32),
        "fc1_w": w(ks[6], (84, 120), 120),          # torch nn.Linear: (out, in)
        "fc1_b": 0.01 * jax.random.normal(ks[7], (84,), jnp.float32),
        "fc2_w": w(ks[8], (num_classes, 84), 84),
        "fc2_b": 0.01 * jax.random.normal(ks[9], (num_classes,), jnp.float32),
    }


@jax.jit
def lenet5_forward(params, x):
    """x: (B, 1, 28, 28) NCHW float32 (PyTorch convention) -> (B, num_classes) f32."""
    a = x.transpose(0, 2, 3, 1)                                          # NCHW -> NHWC once
    a = conv1_relu_pool(a, params["conv1_w"], params["conv1_b"])         # (B, 14, 14, 6)
    return conv2_head(a, params["conv2_w"], params["conv2_b"],
                      params["conv3_w"], params["conv3_b"],
                      params["fc1_w"], params["fc1_b"],
                      params["fc2_w"], params["fc2_b"])                  # (B, num_classes)


if __name__ == "__main__":
    key = jax.random.PRNGKey(0)
    pkey, xkey = jax.random.split(key)
    params = init_params(pkey, num_classes=10)
    # LeNet5 requires 1x28x28 inputs so the features flatten to 120.
    x = jax.random.normal(xkey, (2, 1, 28, 28), jnp.float32)
    out = lenet5_forward(params, x)
    out = jax.block_until_ready(out)
    assert out.shape == (2, 10), out.shape
    assert out.dtype == jnp.float32
    print("KERNEL_OK")
</pallas_src>

<mosaic_0001>
module attributes {stable_mosaic.version = 11 : i64} {
  func.func @_conv1_relu_pool_kernel(%arg0: i32, %arg1: memref<4x224x32xbf16, #tpu.memory_space<vmem>>, %arg2: memref<32x128xbf16, #tpu.memory_space<vmem>>, %arg3: memref<1x128xf32, #tpu.memory_space<vmem>>, %arg4: memref<224x6xbf16, #tpu.memory_space<vmem>>) attributes {dimension_semantics = [#tpu.dimension_semantics<parallel>], iteration_bounds = array<i64: 2>, scalar_prefetch = 0 : i64, scratch_operands = 0 : i64, tpu.core_type = #tpu.core_type<tc>, window_params = [{transform_indices = @transform_0, window_bounds = array<i64: 4, 224, 32>}, {pipeline_mode = #tpu.pipeline_mode<synchronous>, transform_indices = @transform_1, window_bounds = array<i64: 32, 128>}, {pipeline_mode = #tpu.pipeline_mode<synchronous>, transform_indices = @transform_2, window_bounds = array<i64: 1, 128>}, {transform_indices = @transform_3, window_bounds = array<i64: 224, 6>}]} {
    %c0 = arith.constant 0 : index
    %c0_0 = arith.constant 0 : index
    %c0_1 = arith.constant 0 : index
    %0 = vector.load %arg1[%c0, %c0_0, %c0_1] : memref<4x224x32xbf16, #tpu.memory_space<vmem>>, vector<1x224x32xbf16>
    %1 = vector.shape_cast %0 : vector<1x224x32xbf16> to vector<224x32xbf16>
    %c0_2 = arith.constant 0 : index
    %c0_3 = arith.constant 0 : index
    %2 = vector.load %arg2[%c0_2, %c0_3] : memref<32x128xbf16, #tpu.memory_space<vmem>>, vector<32x128xbf16>
    %cst = arith.constant dense<0.000000e+00> : vector<224x128xf32>
    %3 = tpu.matmul %1, %2, %cst {dimension_numbers = #tpu.dot_dimension_numbers<[1], [0], [0], [1], [0, 0, 1, 1], [], []>} : vector<224x32xbf16>, vector<32x128xbf16>, vector<224x128xf32> -> vector<224x128xf32>
    %c0_4 = arith.constant 0 : index
    %c0_5 = arith.constant 0 : index
    %4 = vector.load %arg3[%c0_4, %c0_5] : memref<1x128xf32, #tpu.memory_space<vmem>>, vector<1x128xf32>
    %5 = vector.broadcast %4 : vector<1x128xf32> to vector<224x128xf32>
    %6 = arith.addf %3, %5 : vector<224x128xf32>
    %cst_6 = arith.constant 0.000000e+00 : f32
    %7 = vector.broadcast %cst_6 : f32 to vector<224x128xf32>
    %8 = arith.maximumf %6, %7 : vector<224x128xf32>
    %c1 = arith.constant 1 : index
    %c0_7 = arith.constant 0 : index
    %c0_8 = arith.constant 0 : index
    %9 = vector.load %arg1[%c1, %c0_7, %c0_8] : memref<4x224x32xbf16, #tpu.memory_space<vmem>>, vector<1x224x32xbf16>
    %10 = vector.shape_cast %9 : vector<1x224x32xbf16> to vector<224x32xbf16>
    %c0_9 = arith.constant 0 : index
    %c0_10 = arith.constant 0 : index
    %11 = vector.load %arg2[%c0_9, %c0_10] : memref<32x128xbf16, #tpu.memory_space<vmem>>, vector<32x128xbf16>
    %cst_11 = arith.constant dense<0.000000e+00> : vector<224x128xf32>
    %12 = tpu.matmul %10, %11, %cst_11 {dimension_numbers = #tpu.dot_dimension_numbers<[1], [0], [0], [1], [0, 0, 1, 1], [], []>} : vector<224x32xbf16>, vector<32x128xbf16>, vector<224x128xf32> -> vector<224x128xf32>
    %c0_12 = arith.constant 0 : index
    %c0_13 = arith.constant 0 : index
    %13 = vector.load %arg3[%c0_12, %c0_13] : memref<1x128xf32, #tpu.memory_space<vmem>>, vector<1x128xf32>
    %14 = vector.broadcast %13 : vector<1x128xf32> to vector<224x128xf32>
    %15 = arith.addf %12, %14 : vector<224x128xf32>
    %cst_14 = arith.constant 0.000000e+00 : f32
    %16 = vector.broadcast %cst_14 : f32 to vector<224x128xf32>
    %17 = arith.maximumf %15, %16 : vector<224x128xf32>
    %18 = arith.addf %8, %17 : vector<224x128xf32>
    %c2 = arith.constant 2 : index
    %c0_15 = arith.constant 0 : index
    %c0_16 = arith.constant 0 : index
    %19 = vector.load %arg1[%c2, %c0_15, %c0_16] : memref<4x224x32xbf16, #tpu.memory_space<vmem>>, vector<1x224x32xbf16>
    %20 = vector.shape_cast %19 : vector<1x224x32xbf16> to vector<224x32xbf16>
    %c0_17 = arith.constant 0 : index
    %c0_18 = arith.constant 0 : index
    %21 = vector.load %arg2[%c0_17, %c0_18] : memref<32x128xbf16, #tpu.memory_space<vmem>>, vector<32x128xbf16>
    %cst_19 = arith.constant dense<0.000000e+00> : vector<224x128xf32>
    %22 = tpu.matmul %20, %21, %cst_19 {dimension_numbers = #tpu.dot_dimension_numbers<[1], [0], [0], [1], [0, 0, 1, 1], [], []>} : vector<224x32xbf16>, vector<32x128xbf16>, vector<224x128xf32> -> vector<224x128xf32>
    %c0_20 = arith.constant 0 : index
    %c0_21 = arith.constant 0 : index
    %23 = vector.load %arg3[%c0_20, %c0_21] : memref<1x128xf32, #tpu.memory_space<vmem>>, vector<1x128xf32>
    %24 = vector.broadcast %23 : vector<1x128xf32> to vector<224x128xf32>
    %25 = arith.addf %22, %24 : vector<224x128xf32>
    %cst_22 = arith.constant 0.000000e+00 : f32
    %26 = vector.broadcast %cst_22 : f32 to vector<224x128xf32>
    %27 = arith.maximumf %25, %26 : vector<224x128xf32>
    %28 = arith.addf %18, %27 : vector<224x128xf32>
    %c3 = arith.constant 3 : index
    %c0_23 = arith.constant 0 : index
    %c0_24 = arith.constant 0 : index
    %29 = vector.load %arg1[%c3, %c0_23, %c0_24] : memref<4x224x32xbf16, #tpu.memory_space<vmem>>, vector<1x224x32xbf16>
    %30 = vector.shape_cast %29 : vector<1x224x32xbf16> to vector<224x32xbf16>
    %c0_25 = arith.constant 0 : index
    %c0_26 = arith.constant 0 : index
    %31 = vector.load %arg2[%c0_25, %c0_26] : memref<32x128xbf16, #tpu.memory_space<vmem>>, vector<32x128xbf16>
    %cst_27 = arith.constant dense<0.000000e+00> : vector<224x128xf32>
    %32 = tpu.matmul %30, %31, %cst_27 {dimension_numbers = #tpu.dot_dimension_numbers<[1], [0], [0], [1], [0, 0, 1, 1], [], []>} : vector<224x32xbf16>, vector<32x128xbf16>, vector<224x128xf32> -> vector<224x128xf32>
    %c0_28 = arith.constant 0 : index
    %c0_29 = arith.constant 0 : index
    %33 = vector.load %arg3[%c0_28, %c0_29] : memref<1x128xf32, #tpu.memory_space<vmem>>, vector<1x128xf32>
    %34 = vector.broadcast %33 : vector<1x128xf32> to vector<224x128xf32>
    %35 = arith.addf %32, %34 : vector<224x128xf32>
    %cst_30 = arith.constant 0.000000e+00 : f32
    %36 = vector.broadcast %cst_30 : f32 to vector<224x128xf32>
    %37 = arith.maximumf %35, %36 : vector<224x128xf32>
    %38 = arith.addf %28, %37 : vector<224x128xf32>
    %cst_31 = arith.constant 2.500000e-01 : f32
    %39 = vector.broadcast %cst_31 : f32 to vector<224x128xf32>
    %40 = arith.mulf %39, %38 : vector<224x128xf32>
    %41 = vector.extract_strided_slice %40 {offsets = [0, 0], sizes = [224, 6], strides = [1, 1]} : vector<224x128xf32> to vector<224x6xf32>
    %42 = arith.truncf %41 : vector<224x6xf32> to vector<224x6xbf16>
    %c0_32 = arith.constant 0 : index
    %c0_33 = arith.constant 0 : index
    %43 = vector.load %arg4[%c0_32, %c0_33] : memref<224x6xbf16, #tpu.memory_space<vmem>>, vector<224x6xbf16>
    tpu.vector_store %arg4[%c0_32, %c0_33], %42 {strides = array<i32>} : memref<224x6xbf16, #tpu.memory_space<vmem>>, vector<224x6xbf16>,
    return
  }
  func.func @transform_0(%arg0: i32) -> (i32, i32, i32) {
    %c0_i32 = arith.constant 0 : i32
    %c0_i32_0 = arith.constant 0 : i32
    %c0_i32_1 = arith.constant 0 : i32
    return %c0_i32, %arg0, %c0_i32_0 : i32, i32, i32
  }
  func.func @transform_1(%arg0: i32) -> (i32, i32) {
    %c0_i32 = arith.constant 0 : i32
    %c0_i32_0 = arith.constant 0 : i32
    %c0_i32_1 = arith.constant 0 : i32
    return %c0_i32, %c0_i32_0 : i32, i32
  }
  func.func @transform_2(%arg0: i32) -> (i32, i32) {
    %c0_i32 = arith.constant 0 : i32
    %c0_i32_0 = arith.constant 0 : i32
    %c0_i32_1 = arith.constant 0 : i32
    return %c0_i32, %c0_i32_0 : i32, i32
  }
  func.func @transform_3(%arg0: i32) -> (i32, i32) {
    %c0_i32 = arith.constant 0 : i32
    %c0_i32_0 = arith.constant 0 : i32
    return %arg0, %c0_i32 : i32, i32
  }
}

module attributes {stable_mosaic.version = 11 : i64} {
  func.func @_conv2_head_kernel(%arg0: i32, %arg1: memref<800x160xbf16, #tpu.memory_space<vmem>>, %arg2: memref<160x16xbf16, #tpu.memory_space<vmem>>, %arg3: memref<1x16xf32, #tpu.memory_space<vmem>>, %arg4: memref<400x128xbf16, #tpu.memory_space<vmem>>, %arg5: memref<1x128xf32, #tpu.memory_space<vmem>>, %arg6: memref<128x128xbf16, #tpu.memory_space<vmem>>, %arg7: memref<1x128xf32, #tpu.memory_space<vmem>>, %arg8: memref<128x128xbf16, #tpu.memory_space<vmem>>, %arg9: memref<1x128xf32, #tpu.memory_space<vmem>>, %arg10: memref<8x128xf32, #tpu.memory_space<vmem>>) attributes {dimension_semantics = [#tpu.dimension_semantics<parallel>], iteration_bounds = array<i64: 1>, scalar_prefetch = 0 : i64, scratch_operands = 0 : i64, tpu.core_type = #tpu.core_type<tc>, window_params = [{transform_indices = @transform_0, window_bounds = array<i64: 800, 160>}, {pipeline_mode = #tpu.pipeline_mode<synchronous>, transform_indices = @transform_1, window_bounds = array<i64: 160, 16>}, {pipeline_mode = #tpu.pipeline_mode<synchronous>, transform_indices = @transform_2, window_bounds = array<i64: 1, 16>}, {pipeline_mode = #tpu.pipeline_mode<synchronous>, transform_indices = @transform_3, window_bounds = array<i64: 400, 128>}, {pipeline_mode = #tpu.pipeline_mode<synchronous>, transform_indices = @transform_4, window_bounds = array<i64: 1, 128>}, {pipeline_mode = #tpu.pipeline_mode<synchronous>, transform_indices = @transform_5, window_bounds = array<i64: 128, 128>}, {pipeline_mode = #tpu.pipeline_mode<synchronous>, transform_indices = @transform_6, window_bounds = array<i64: 1, 128>}, {pipeline_mode = #tpu.pipeline_mode<synchronous>, transform_indices = @transform_7, window_bounds = array<i64: 128, 128>}, {pipeline_mode = #tpu.pipeline_mode<synchronous>, transform_indices = @transform_8, window_bounds = array<i64: 1, 128>}, {transform_indices = @transform_9, window_bounds = array<i64: 8, 128>}]} {
    %c0 = arith.constant 0 : index
    %c0_0 = arith.constant 0 : index
    %0 = vector.load %arg1[%c0, %c0_0] : memref<800x160xbf16, #tpu.memory_space<vmem>>, vector<800x160xbf16>
    %c0_1 = arith.constant 0 : index
    %c0_2 = arith.constant 0 : index
    %1 = vector.load %arg2[%c0_1, %c0_2] : memref<160x16xbf16, #tpu.memory_space<vmem>>, vector<160x16xbf16>
    %cst = arith.constant dense<0.000000e+00> : vector<800x16xf32>
    %2 = tpu.matmul %0, %1, %cst {dimension_numbers = #tpu.dot_dimension_numbers<[1], [0], [0], [1], [0, 0, 1, 1], [], []>} : vector<800x160xbf16>, vector<160x16xbf16>, vector<800x16xf32> -> vector<800x16xf32>
    %c0_3 = arith.constant 0 : index
    %c0_4 = arith.constant 0 : index
    %3 = vector.load %arg3[%c0_3, %c0_4] : memref<1x16xf32, #tpu.memory_space<vmem>>, vector<1x16xf32>
    %4 = vector.broadcast %3 : vector<1x16xf32> to vector<800x16xf32>
    %5 = arith.addf %2, %4 : vector<800x16xf32>
    %cst_5 = arith.constant 0.000000e+00 : f32
    %6 = vector.broadcast %cst_5 : f32 to vector<800x16xf32>
    %7 = arith.maximumf %5, %6 : vector<800x16xf32>
    %8 = vector.extract_strided_slice %7 {offsets = [0, 0], sizes = [200, 16], strides = [1, 1]} : vector<800x16xf32> to vector<200x16xf32>
    %9 = vector.extract_strided_slice %7 {offsets = [200, 0], sizes = [200, 16], strides = [1, 1]} : vector<800x16xf32> to vector<200x16xf32>
    %10 = arith.addf %8, %9 : vector<200x16xf32>
    %11 = vector.extract_strided_slice %7 {offsets = [400, 0], sizes = [200, 16], strides = [1, 1]} : vector<800x16xf32> to vector<200x16xf32>
    %12 = arith.addf %10, %11 : vector<200x16xf32>
    %13 = vector.extract_strided_slice %7 {offsets = [600, 0], sizes = [200, 16], strides = [1, 1]} : vector<800x16xf32> to vector<200x16xf32>
    %14 = arith.addf %12, %13 : vector<200x16xf32>
    %cst_6 = arith.constant 2.500000e-01 : f32
    %15 = vector.broadcast %cst_6 : f32 to vector<200x16xf32>
    %16 = arith.mulf %15, %14 : vector<200x16xf32>
    %17 = arith.truncf %16 : vector<200x16xf32> to vector<200x16xbf16>
    %cst_7 = arith.constant 0.000000e+00 : f32
    %18 = vector.broadcast %cst_7 : f32 to vector<8x128xf32>
    %19 = vector.extract_strided_slice %17 {offsets = [0, 0], sizes = [8, 16], strides = [1, 1]} : vector<200x16xbf16> to vector<8x16xbf16>
    %c0_8 = arith.constant 0 : index
    %c0_9 = arith.constant 0 : index
    %20 = vector.load %arg4[%c0_8, %c0_9] : memref<400x128xbf16, #tpu.memory_space<vmem>>, vector<16x128xbf16>
    %cst_10 = arith.constant dense<0.000000e+00> : vector<8x128xf32>
    %21 = tpu.matmul %19, %20, %cst_10 {dimension_numbers = #tpu.dot_dimension_numbers<[1], [0], [0], [1], [0, 0, 1, 1], [], []>} : vector<8x16xbf16>, vector<16x128xbf16>, vector<8x128xf32> -> vector<8x128xf32>
    %22 = arith.addf %18, %21 : vector<8x128xf32>
    %23 = vector.extract_strided_slice %17 {offsets = [8, 0], sizes = [8, 16], strides = [1, 1]} : vector<200x16xbf16> to vector<8x16xbf16>
    %c16 = arith.constant 16 : index
    %c0_11 = arith.constant 0 : index
    %24 = vector.load %arg4[%c16, %c0_11] : memref<400x128xbf16, #tpu.memory_space<vmem>>, vector<16x128xbf16>
    %cst_12 = arith.constant dense<0.000000e+00> : vector<8x128xf32>
    %25 = tpu.matmul %23, %24, %cst_12 {dimension_numbers = #tpu.dot_dimension_numbers<[1], [0], [0], [1], [0, 0, 1, 1], [], []>} : vector<8x16xbf16>, vector<16x128xbf16>, vector<8x128xf32> -> vector<8x128xf32>
    %26 = arith.addf %22, %25 : vector<8x128xf32>
    %27 = vector.extract_strided_slice %17 {offsets = [16, 0], sizes = [8, 16], strides = [1, 1]} : vector<200x16xbf16> to vector<8x16xbf16>
    %c32 = arith.constant 32 : index
    %c0_13 = arith.constant 0 : index
    %28 = vector.load %arg4[%c32, %c0_13] : memref<400x128xbf16, #tpu.memory_space<vmem>>, vector<16x128xbf16>
    %cst_14 = arith.constant dense<0.000000e+00> : vector<8x128xf32>
    %29 = tpu.matmul %27, %28, %cst_14 {dimension_numbers = #tpu.dot_dimension_numbers<[1], [0], [0], [1], [0, 0, 1, 1], [], []>} : vector<8x16xbf16>, vector<16x128xbf16>, vector<8x128xf32> -> vector<8x128xf32>
    %30 = arith.addf %26, %29 : vector<8x128xf32>
    %31 = vector.extract_strided_slice %17 {offsets = [24, 0], sizes = [8, 16], strides = [1, 1]} : vector<200x16xbf16> to vector<8x16xbf16>
    %c48 = arith.constant 48 : index
    %c0_15 = arith.constant 0 : index
    %32 = vector.load %arg4[%c48, %c0_15] : memref<400x128xbf16, #tpu.memory_space<vmem>>, vector<16x128xbf16>
    %cst_16 = arith.constant dense<0.000000e+00> : vector<8x128xf32>
    %33 = tpu.matmul %31, %32, %cst_16 {dimension_numbers = #tpu.dot_dimension_numbers<[1], [0], [0], [1], [0, 0, 1, 1], [], []>} : vector<8x16xbf16>, vector<16x128xbf16>, vector<8x128xf32> -> vector<8x128xf32>
    %34 = arith.addf %30, %33 : vector<8x128xf32>
    %35 = vector.extract_strided_slice %17 {offsets = [32, 0], sizes = [8, 16], strides = [1, 1]} : vector<200x16xbf16> to vector<8x16xbf16>
    %c64 = arith.constant 64 : index
    %c0_17 = arith.constant 0 : index
    %36 = vector.load %arg4[%c64, %c0_17] : memref<400x128xbf16, #tpu.memory_space<vmem>>, vector<16x128xbf16>
    %cst_18 = arith.constant dense<0.000000e+00> : vector<8x128xf32>
    %37 = tpu.matmul %35, %36, %cst_18 {dimension_numbers = #tpu.dot_dimension_numbers<[1], [0], [0], [1], [0, 0, 1, 1], [], []>} : vector<8x16xbf16>, vector<16x128xbf16>, vector<8x128xf32> -> vector<8x128xf32>
    %38 = arith.addf %34, %37 : vector<8x128xf32>
    %39 = vector.extract_strided_slice %17 {offsets = [40, 0], sizes = [8, 16], strides = [1, 1]} : vector<200x16xbf16> to vector<8x16xbf16>
    %c80 = arith.constant 80 : index
    %c0_19 = arith.constant 0 : index
    %40 = vector.load %arg4[%c80, %c0_19] : memref<400x128xbf16, #tpu.memory_space<vmem>>, vector<16x128xbf16>
    %cst_20 = arith.constant dense<0.000000e+00> : vector<8x128xf32>
    %41 = tpu.matmul %39, %40, %cst_20 {dimension_numbers = #tpu.dot_dimension_numbers<[1], [0], [0], [1], [0, 0, 1, 1], [], []>} : vector<8x16xbf16>, vector<16x128xbf16>, vector<8x128xf32> -> vector<8x128xf32>
    %42 = arith.addf %38, %41 : vector<8x128xf32>
    %43 = vector.extract_strided_slice %17 {offsets = [48, 0], sizes = [8, 16], strides = [1, 1]} : vector<200x16xbf16> to vector<8x16xbf16>
    %c96 = arith.constant 96 : index
    %c0_21 = arith.constant 0 : index
    %44 = vector.load %arg4[%c96, %c0_21] : memref<400x128xbf16, #tpu.memory_space<vmem>>, vector<16x128xbf16>
    %cst_22 = arith.constant dense<0.000000e+00> : vector<8x128xf32>
    %45 = tpu.matmul %43, %44, %cst_22 {dimension_numbers = #tpu.dot_dimension_numbers<[1], [0], [0], [1], [0, 0, 1, 1], [], []>} : vector<8x16xbf16>, vector<16x128xbf16>, vector<8x128xf32> -> vector<8x128xf32>
    %46 = arith.addf %42, %45 : vector<8x128xf32>
    %47 = vector.extract_strided_slice %17 {offsets = [56, 0], sizes = [8, 16], strides = [1, 1]} : vector<200x16xbf16> to vector<8x16xbf16>
    %c112 = arith.constant 112 : index
    %c0_23 = arith.constant 0 : index
    %48 = vector.load %arg4[%c112, %c0_23] : memref<400x128xbf16, #tpu.memory_space<vmem>>, vector<16x128xbf16>
    %cst_24 = arith.constant dense<0.000000e+00> : vector<8x128xf32>
    %49 = tpu.matmul %47, %48, %cst_24 {dimension_numbers = #tpu.dot_dimension_numbers<[1], [0], [0], [1], [0, 0, 1, 1], [], []>} : vector<8x16xbf16>, vector<16x128xbf16>, vector<8x128xf32> -> vector<8x128xf32>
    %50 = arith.addf %46, %49 : vector<8x128xf32>
    %51 = vector.extract_strided_slice %17 {offsets = [64, 0], sizes = [8, 16], strides = [1, 1]} : vector<200x16xbf16> to vector<8x16xbf16>
    %c128 = arith.constant 128 : index
    %c0_25 = arith.constant 0 : index
    %52 = vector.load %arg4[%c128, %c0_25] : memref<400x128xbf16, #tpu.memory_space<vmem>>, vector<16x128xbf16>
    %cst_26 = arith.constant dense<0.000000e+00> : vector<8x128xf32>
    %53 = tpu.matmul %51, %52, %cst_26 {dimension_numbers = #tpu.dot_dimension_numbers<[1], [0], [0], [1], [0, 0, 1, 1], [], []>} : vector<8x16xbf16>, vector<16x128xbf16>, vector<8x128xf32> -> vector<8x128xf32>
    %54 = arith.addf %50, %53 : vector<8x128xf32>
    %55 = vector.extract_strided_slice %17 {offsets = [72, 0], sizes = [8, 16], strides = [1, 1]} : vector<200x16xbf16> to vector<8x16xbf16>
    %c144 = arith.constant 144 : index
    %c0_27 = arith.constant 0 : index
    %56 = vector.load %arg4[%c144, %c0_27] : memref<400x128xbf16, #tpu.memory_space<vmem>>, vector<16x128xbf16>
    %cst_28 = arith.constant dense<0.000000e+00> : vector<8x128xf32>
    %57 = tpu.matmul %55, %56, %cst_28 {dimension_numbers = #tpu.dot_dimension_numbers<[1], [0], [0], [1], [0, 0, 1, 1], [], []>} : vector<8x16xbf16>, vector<16x128xbf16>, vector<8x128xf32> -> vector<8x128xf32>
    %58 = arith.addf %54, %57 : vector<8x128xf32>
    %59 = vector.extract_strided_slice %17 {offsets = [80, 0], sizes = [8, 16], strides = [1, 1]} : vector<200x16xbf16> to vector<8x16xbf16>
    %c160 = arith.constant 160 : index
    %c0_29 = arith.constant 0 : index
    %60 = vector.load %arg4[%c160, %c0_29] : memref<400x128xbf16, #tpu.memory_space<vmem>>, vector<16x128xbf16>
    %cst_30 = arith.constant dense<0.000000e+00> : vector<8x128xf32>
    %61 = tpu.matmul %59, %60, %cst_30 {dimension_numbers = #tpu.dot_dimension_numbers<[1], [0], [0], [1], [0, 0, 1, 1], [], []>} : vector<8x16xbf16>, vector<16x128xbf16>, vector<8x128xf32> -> vector<8x128xf32>
    %62 = arith.addf %58, %61 : vector<8x128xf32>
    %63 = vector.extract_strided_slice %17 {offsets = [88, 0], sizes = [8, 16], strides = [1, 1]} : vector<200x16xbf16> to vector<8x16xbf16>
    %c176 = arith.constant 176 : index
    %c0_31 = arith.constant 0 : index
    %64 = vector.load %arg4[%c176, %c0_31] : memref<400x128xbf16, #tpu.memory_space<vmem>>, vector<16x128xbf16>
    %cst_32 = arith.constant dense<0.000000e+00> : vector<8x128xf32>
    %65 = tpu.matmul %63, %64, %cst_32 {dimension_numbers = #tpu.dot_dimension_numbers<[1], [0], [0], [1], [0, 0, 1, 1], [], []>} : vector<8x16xbf16>, vector<16x128xbf16>, vector<8x128xf32> -> vector<8x128xf32>
    %66 = arith.addf %62, %65 : vector<8x128xf32>
    %67 = vector.extract_strided_slice %17 {offsets = [96, 0], sizes = [8, 16], strides = [1, 1]} : vector<200x16xbf16> to vector<8x16xbf16>
    %c192 = arith.constant 192 : index
    %c0_33 = arith.constant 0 : index
    %68 = vector.load %arg4[%c192, %c0_33] : memref<400x128xbf16, #tpu.memory_space<vmem>>, vector<16x128xbf16>
    %cst_34 = arith.constant dense<0.000000e+00> : vector<8x128xf32>
    %69 = tpu.matmul %67, %68, %cst_34 {dimension_numbers = #tpu.dot_dimension_numbers<[1], [0], [0], [1], [0, 0, 1, 1], [], []>} : vector<8x16xbf16>, vector<16x128xbf16>, vector<8x128xf32> -> vector<8x128xf32>
    %70 = arith.addf %66, %69 : vector<8x128xf32>
    %71 = vector.extract_strided_slice %17 {offsets = [104, 0], sizes = [8, 16], strides = [1, 1]} : vector<200x16xbf16> to vector<8x16xbf16>
    %c208 = arith.constant 208 : index
    %c0_35 = arith.constant 0 : index
    %72 = vector.load %arg4[%c208, %c0_35] : memref<400x128xbf16, #tpu.memory_space<vmem>>, vector<16x128xbf16>
    %cst_36 = arith.constant dense<0.000000e+00> : vector<8x128xf32>
    %73 = tpu.matmul %71, %72, %cst_36 {dimension_numbers = #tpu.dot_dimension_numbers<[1], [0], [0], [1], [0, 0, 1, 1], [], []>} : vector<8x16xbf16>, vector<16x128xbf16>, vector<8x128xf32> -> vector<8x128xf32>
    %74 = arith.addf %70, %73 : vector<8x128xf32>
    %75 = vector.extract_strided_slice %17 {offsets = [112, 0], sizes = [8, 16], strides = [1, 1]} : vector<200x16xbf16> to vector<8x16xbf16>
    %c224 = arith.constant 224 : index
    %c0_37 = arith.constant 0 : index
    %76 = vector.load %arg4[%c224, %c0_37] : memref<400x128xbf16, #tpu.memory_space<vmem>>, vector<16x128xbf16>
    %cst_38 = arith.constant dense<0.000000e+00> : vector<8x128xf32>
    %77 = tpu.matmul %75, %76, %cst_38 {dimension_numbers = #tpu.dot_dimension_numbers<[1], [0], [0], [1], [0, 0, 1, 1], [], []>} : vector<8x16xbf16>, vector<16x128xbf16>, vector<8x128xf32> -> vector<8x128xf32>
    %78 = arith.addf %74, %77 : vector<8x128xf32>
    %79 = vector.extract_strided_slice %17 {offsets = [120, 0], sizes = [8, 16], strides = [1, 1]} : vector<200x16xbf16> to vector<8x16xbf16>
    %c240 = arith.constant 240 : index
    %c0_39 = arith.constant 0 : index
    %80 = vector.load %arg4[%c240, %c0_39] : memref<400x128xbf16, #tpu.memory_space<vmem>>, vector<16x128xbf16>
    %cst_40 = arith.constant dense<0.000000e+00> : vector<8x128xf32>
    %81 = tpu.matmul %79, %80, %cst_40 {dimension_numbers = #tpu.dot_dimension_numbers<[1], [0], [0], [1], [0, 0, 1, 1], [], []>} : vector<8x16xbf16>, vector<16x128xbf16>, vector<8x128xf32> -> vector<8x128xf32>
    %82 = arith.addf %78, %81 : vector<8x128xf32>
    %83 = vector.extract_strided_slice %17 {offsets = [128, 0], sizes = [8, 16], strides = [1, 1]} : vector<200x16xbf16> to vector<8x16xbf16>
    %c256 = arith.constant 256 : index
    %c0_41 = arith.constant 0 : index
    %84 = vector.load %arg4[%c256, %c0_41] : memref<400x128xbf16, #tpu.memory_space<vmem>>, vector<16x128xbf16>
    %cst_42 = arith.constant dense<0.000000e+00> : vector<8x128xf32>
    %85 = tpu.matmul %83, %84, %cst_42 {dimension_numbers = #tpu.dot_dimension_numbers<[1], [0], [0], [1], [0, 0, 1, 1], [], []>} : vector<8x16xbf16>, vector<16x128xbf16>, vector<8x128xf32> -> vector<8x128xf32>
    %86 = arith.addf %82, %85 : vector<8x128xf32>
    %87 = vector.extract_strided_slice %17 {offsets = [136, 0], sizes = [8, 16], strides = [1, 1]} : vector<200x16xbf16> to vector<8x16xbf16>
    %c272 = arith.constant 272 : index
    %c0_43 = arith.constant 0 : index
    %88 = vector.load %arg4[%c272, %c0_43] : memref<400x128xbf16, #tpu.memory_space<vmem>>, vector<16x128xbf16>
    %cst_44 = arith.constant dense<0.000000e+00> : vector<8x128xf32>
    %89 = tpu.matmul %87, %88, %cst_44 {dimension_numbers = #tpu.dot_dimension_numbers<[1], [0], [0], [1], [0, 0, 1, 1], [], []>} : vector<8x16xbf16>, vector<16x128xbf16>, vector<8x128xf32> -> vector<8x128xf32>
    %90 = arith.addf %86, %89 : vector<8x128xf32>
    %91 = vector.extract_strided_slice %17 {offsets = [144, 0], sizes = [8, 16], strides = [1, 1]} : vector<200x16xbf16> to vector<8x16xbf16>
    %c288 = arith.constant 288 : index
    %c0_45 = arith.constant 0 : index
    %92 = vector.load %arg4[%c288, %c0_45] : memref<400x128xbf16, #tpu.memory_space<vmem>>, vector<16x128xbf16>
    %cst_46 = arith.constant dense<0.000000e+00> : vector<8x128xf32>
    %93 = tpu.matmul %91, %92, %cst_46 {dimension_numbers = #tpu.dot_dimension_numbers<[1], [0], [0], [1], [0, 0, 1, 1], [], []>} : vector<8x16xbf16>, vector<16x128xbf16>, vector<8x128xf32> -> vector<8x128xf32>
    %94 = arith.addf %90, %93 : vector<8x128xf32>
    %95 = vector.extract_strided_slice %17 {offsets = [152, 0], sizes = [8, 16], strides = [1, 1]} : vector<200x16xbf16> to vector<8x16xbf16>
    %c304 = arith.constant 304 : index
    %c0_47 = arith.constant 0 : index
    %96 = vector.load %arg4[%c304, %c0_47] : memref<400x128xbf16, #tpu.memory_space<vmem>>, vector<16x128xbf16>
    %cst_48 = arith.constant dense<0.000000e+00> : vector<8x128xf32>
    %97 = tpu.matmul %95, %96, %cst_48 {dimension_numbers = #tpu.dot_dimension_numbers<[1], [0], [0], [1], [0, 0, 1, 1], [], []>} : vector<8x16xbf16>, vector<16x128xbf16>, vector<8x128xf32> -> vector<8x128xf32>
    %98 = arith.addf %94, %97 : vector<8x128xf32>
    %99 = vector.extract_strided_slice %17 {offsets = [160, 0], sizes = [8, 16], strides = [1, 1]} : vector<200x16xbf16> to vector<8x16xbf16>
    %c320 = arith.constant 320 : index
    %c0_49 = arith.constant 0 : index
    %100 = vector.load %arg4[%c320, %c0_49] : memref<400x128xbf16, #tpu.memory_space<vmem>>, vector<16x128xbf16>
    %cst_50 = arith.constant dense<0.000000e+00> : vector<8x128xf32>
    %101 = tpu.matmul %99, %100, %cst_50 {dimension_numbers = #tpu.dot_dimension_numbers<[1], [0], [0], [1], [0, 0, 1, 1], [], []>} : vector<8x16xbf16>, vector<16x128xbf16>, vector<8x128xf32> -> vector<8x128xf32>
    %102 = arith.addf %98, %101 : vector<8x128xf32>
    %103 = vector.extract_strided_slice %17 {offsets = [168, 0], sizes = [8, 16], strides = [1, 1]} : vector<200x16xbf16> to vector<8x16xbf16>
    %c336 = arith.constant 336 : index
    %c0_51 = arith.constant 0 : index
    %104 = vector.load %arg4[%c336, %c0_51] : memref<400x128xbf16, #tpu.memory_space<vmem>>, vector<16x128xbf16>
    %cst_52 = arith.constant dense<0.000000e+00> : vector<8x128xf32>
    %105 = tpu.matmul %103, %104, %cst_52 {dimension_numbers = #tpu.dot_dimension_numbers<[1], [0], [0], [1], [0, 0, 1, 1], [], []>} : vector<8x16xbf16>, vector<16x128xbf16>, vector<8x128xf32> -> vector<8x128xf32>
    %106 = arith.addf %102, %105 : vector<8x128xf32>
    %107 = vector.extract_strided_slice %17 {offsets = [176, 0], sizes = [8, 16], strides = [1, 1]} : vector<200x16xbf16> to vector<8x16xbf16>
    %c352 = arith.constant 352 : index
    %c0_53 = arith.constant 0 : index
    %108 = vector.load %arg4[%c352, %c0_53] : memref<400x128xbf16, #tpu.memory_space<vmem>>, vector<16x128xbf16>
    %cst_54 = arith.constant dense<0.000000e+00> : vector<8x128xf32>
    %109 = tpu.matmul %107, %108, %cst_54 {dimension_numbers = #tpu.dot_dimension_numbers<[1], [0], [0], [1], [0, 0, 1, 1], [], []>} : vector<8x16xbf16>, vector<16x128xbf16>, vector<8x128xf32> -> vector<8x128xf32>
    %110 = arith.addf %106, %109 : vector<8x128xf32>
    %111 = vector.extract_strided_slice %17 {offsets = [184, 0], sizes = [8, 16], strides = [1, 1]} : vector<200x16xbf16> to vector<8x16xbf16>
    %c368 = arith.constant 368 : index
    %c0_55 = arith.constant 0 : index
    %112 = vector.load %arg4[%c368, %c0_55] : memref<400x128xbf16, #tpu.memory_space<vmem>>, vector<16x128xbf16>
    %cst_56 = arith.constant dense<0.000000e+00> : vector<8x128xf32>
    %113 = tpu.matmul %111, %112, %cst_56 {dimension_numbers = #tpu.dot_dimension_numbers<[1], [0], [0], [1], [0, 0, 1, 1], [], []>} : vector<8x16xbf16>, vector<16x128xbf16>, vector<8x128xf32> -> vector<8x128xf32>
    %114 = arith.addf %110, %113 : vector<8x128xf32>
    %115 = vector.extract_strided_slice %17 {offsets = [192, 0], sizes = [8, 16], strides = [1, 1]} : vector<200x16xbf16> to vector<8x16xbf16>
    %c384 = arith.constant 384 : index
    %c0_57 = arith.constant 0 : index
    %116 = vector.load %arg4[%c384, %c0_57] : memref<400x128xbf16, #tpu.memory_space<vmem>>, vector<16x128xbf16>
    %cst_58 = arith.constant dense<0.000000e+00> : vector<8x128xf32>
    %117 = tpu.matmul %115, %116, %cst_58 {dimension_numbers = #tpu.dot_dimension_numbers<[1], [0], [0], [1], [0, 0, 1, 1], [], []>} : vector<8x16xbf16>, vector<16x128xbf16>, vector<8x128xf32> -> vector<8x128xf32>
    %118 = arith.addf %114, %117 : vector<8x128xf32>
    %c0_59 = arith.constant 0 : index
    %c0_60 = arith.constant 0 : index
    %119 = vector.load %arg5[%c0_59, %c0_60] : memref<1x128xf32, #tpu.memory_space<vmem>>, vector<1x128xf32>
    %120 = vector.broadcast %119 : vector<1x128xf32> to vector<8x128xf32>
    %121 = arith.addf %118, %120 : vector<8x128xf32>
    %cst_61 = arith.constant 0.000000e+00 : f32
    %122 = vector.broadcast %cst_61 : f32 to vector<8x128xf32>
    %123 = arith.maximumf %121, %122 : vector<8x128xf32>
    %124 = arith.truncf %123 : vector<8x128xf32> to vector<8x128xbf16>
    %c0_62 = arith.constant 0 : index
    %c0_63 = arith.constant 0 : index
    %125 = vector.load %arg6[%c0_62, %c0_63] : memref<128x128xbf16, #tpu.memory_space<vmem>>, vector<128x128xbf16>
    %cst_64 = arith.constant dense<0.000000e+00> : vector<8x128xf32>
    %126 = tpu.matmul %124, %125, %cst_64 {dimension_numbers = #tpu.dot_dimension_numbers<[1], [0], [0], [1], [0, 0, 1, 1], [], []>} : vector<8x128xbf16>, vector<128x128xbf16>, vector<8x128xf32> -> vector<8x128xf32>
    %c0_65 = arith.constant 0 : index
    %c0_66 = arith.constant 0 : index
    %127 = vector.load %arg7[%c0_65, %c0_66] : memref<1x128xf32, #tpu.memory_space<vmem>>, vector<1x128xf32>
    %128 = vector.broadcast %127 : vector<1x128xf32> to vector<8x128xf32>
    %129 = arith.addf %126, %128 : vector<8x128xf32>
    %cst_67 = arith.constant 0.000000e+00 : f32
    %130 = vector.broadcast %cst_67 : f32 to vector<8x128xf32>
    %131 = arith.maximumf %129, %130 : vector<8x128xf32>
    %132 = arith.truncf %131 : vector<8x128xf32> to vector<8x128xbf16>
    %c0_68 = arith.constant 0 : index
    %c0_69 = arith.constant 0 : index
    %133 = vector.load %arg8[%c0_68, %c0_69] : memref<128x128xbf16, #tpu.memory_space<vmem>>, vector<128x128xbf16>
    %cst_70 = arith.constant dense<0.000000e+00> : vector<8x128xf32>
    %134 = tpu.matmul %132, %133, %cst_70 {dimension_numbers = #tpu.dot_dimension_numbers<[1], [0], [0], [1], [0, 0, 1, 1], [], []>} : vector<8x128xbf16>, vector<128x128xbf16>, vector<8x128xf32> -> vector<8x128xf32>
    %c0_71 = arith.constant 0 : index
    %c0_72 = arith.constant 0 : index
    %135 = vector.load %arg9[%c0_71, %c0_72] : memref<1x128xf32, #tpu.memory_space<vmem>>, vector<1x128xf32>
    %136 = vector.broadcast %135 : vector<1x128xf32> to vector<8x128xf32>
    %137 = arith.addf %134, %136 : vector<8x128xf32>
    %c0_73 = arith.constant 0 : index
    %c0_74 = arith.constant 0 : index
    %138 = vector.load %arg10[%c0_73, %c0_74] : memref<8x128xf32, #tpu.memory_space<vmem>>, vector<8x128xf32>
    tpu.vector_store %arg10[%c0_73, %c0_74], %137 {strides = array<i32>} : memref<8x128xf32, #tpu.memory_space<vmem>>, vector<8x128xf32>,
    return
  }
  func.func @transform_0(%arg0: i32) -> (i32, i32) {
    %c0_i32 = arith.constant 0 : i32
    %c0_i32_0 = arith.constant 0 : i32
    return %arg0, %c0_i32 : i32, i32
  }
  func.func @transform_1(%arg0: i32) -> (i32, i32) {
    %c0_i32 = arith.constant 0 : i32
    %c0_i32_0 = arith.constant 0 : i32
    %c0_i32_1 = arith.constant 0 : i32
    return %c0_i32, %c0_i32_0 : i32, i32
  }
  func.func @transform_2(%arg0: i32) -> (i32, i32) {
    %c0_i32 = arith.constant 0 : i32
    %c0_i32_0 = arith.constant 0 : i32
    %c0_i32_1 = arith.constant 0 : i32
    return %c0_i32, %c0_i32_0 : i32, i32
  }
  func.func @transform_3(%arg0: i32) -> (i32, i32) {
    %c0_i32 = arith.constant 0 : i32
    %c0_i32_0 = arith.constant 0 : i32
    %c0_i32_1 = arith.constant 0 : i32
    return %c0_i32, %c0_i32_0 : i32, i32
  }
  func.func @transform_4(%arg0: i32) -> (i32, i32) {
    %c0_i32 = arith.constant 0 : i32
    %c0_i32_0 = arith.constant 0 : i32
    %c0_i32_1 = arith.constant 0 : i32
    return %c0_i32, %c0_i32_0 : i32, i32
  }
  func.func @transform_5(%arg0: i32) -> (i32, i32) {
    %c0_i32 = arith.constant 0 : i32
    %c0_i32_0 = arith.constant 0 : i32
    %c0_i32_1 = arith.constant 0 : i32
    return %c0_i32, %c0_i32_0 : i32, i32
  }
  func.func @transform_6(%arg0: i32) -> (i32, i32) {
    %c0_i32 = arith.constant 0 : i32
    %c0_i32_0 = arith.constant 0 : i32
    %c0_i32_1 = arith.constant 0 : i32
    return %c0_i32, %c0_i32_0 : i32, i32
  }
  func.func @transform_7(%arg0: i32) -> (i32, i32) {
    %c0_i32 = arith.constant 0 : i32
    %c0_i32_0 = arith.constant 0 : i32
    %c0_i32_1 = arith.constant 0 : i32
    return %c0_i32, %c0_i32_0 : i32, i32
  }
  func.func @transform_8(%arg0: i32) -> (i32, i32) {
    %c0_i32 = arith.constant 0 : i32
    %c0_i32_0 = arith.constant 0 : i32
    %c0_i32_1 = arith.constant 0 : i32
    return %c0_i32, %c0_i32_0 : i32, i32
  }
  func.func @transform_9(%arg0: i32) -> (i32, i32) {
    %c0_i32 = arith.constant 0 : i32
    %c0_i32_0 = arith.constant 0 : i32
    return %arg0, %c0_i32 : i32, i32
  }
}

</mosaic_0001>

<llo_original>
// kernel: lenet5_forward.2
$region0: #{lenet5_forward.2}
  #allocation0 [shape = 'u32[]', space=smem, size = 0x4, offset = 0x4, fixed_abs, tag = 'smem constant byte address 0x4 - core index']
  #allocation1 [shape = 'u32[144,128]{1,0:T(1,128)}', space=vmem, size = 0x12000, scoped, tag = 'internal scratch']
  %s0 = inlined_call_operand.vmem [shape: bf16[4,448,32], index: 0, kind: input, shape index: {}]
  %s1 = inlined_call_operand.vmem [shape: bf16[32,128], index: 1, kind: input, shape index: {}]
  %s2 = inlined_call_operand.vmem [shape: f32[1,128], index: 2, kind: input, shape index: {}]
  %s3 = inlined_call_operand.vmem [shape: bf16[448,6], index: 3, kind: output, shape index: {}]
  %s4 = sld [smem:[#allocation0]]
  $region86: #{lenet5_forward.2} parent=0
    _
  %s6 = ssub.s32 1, %s4
  %s7 = scalar_select 0, %s6, %s4
  $region1: #{lenet5_forward.2} parent=0
    #allocation2 [shape = 'u8[458752]{0}', space=vmem, size = 0x70000, scoped, tag = 'input window, operand 0']
    loop: start=0, step=1, limit=4
    $region2: #{lenet5_forward.2} parent=1 // loop_pre_header
      _
    $region3: #{lenet5_forward.2} parent=1 // loop_header
      %s9 = sphi 0, %s13
      %p10 = scmp.ge.s32.totalorder %s9, 4
      %s19 = sphi 0, %s21
      %s22 = sphi 0, %s19
      %s23 = sphi 0, %s22
      %s39 = sphi 0, %s23
      %s43 = sphi 0, %s43
      %s45 = sphi 0, %s43
      %s46 = sphi 0, %s45
      %s60 = sphi 0, %s46
      %s64 = sphi 0, %s64
      %s66 = sphi 0, %s64
      %s67 = sphi 0, %s66
      %s81 = sphi 0, %s67
      %s87 = sphi 0, %s89
      %s90 = sphi 0, %s87
      %s91 = sphi 0, %s90
      %s107 = sphi 0, %s91
    $region4: #{lenet5_forward.2} parent=1 // loop_header_branch
      %12 = sbr.rel (%p10) target = $region8
    $region5: #{lenet5_forward.2} parent=1 // loop_body
      %s14 = ssub.s32 %s9, 1
      %s15 = ssub.s32 %s9, 2
      %s16 = sadd.s32 %s9, 1
      %s17 = ssub.s32 %s9, %s16
      %p18 = scmp.eq.s32.totalorder %s17, 0
      %s20 = sadd.s32 %s19, 1
      %s21 = scalar_select %p18, %s19, %s20
      %p24 = pneg %p18
      %p25 = scmp.eq.s32.totalorder %s9, 1
      %p26 = por %p24, %p25
      %p27 = scmp.ne.s32.totalorder %s19, %s22
      %p28 = scmp.eq.s32.totalorder %s9, 0
      %p29 = por %p27, %p28
      %p30 = scmp.ne.s32.totalorder %s19, %s22
      %p31 = scmp.eq.s32.totalorder %s14, 1
      %p32 = por %p30, %p31
      %p33 = scmp.ne.s32.totalorder %s22, %s23
      %p34 = scmp.eq.s32.totalorder %s14, 0
      %p35 = por %p33, %p34
      %p36 = scmp.ne.s32.totalorder %s22, %s23
      %p37 = scmp.eq.s32.totalorder %s15, 1
      %p38 = por %p36, %p37
      %p40 = scmp.ne.s32.totalorder %s23, %s39
      %p41 = scmp.eq.s32.totalorder %s15, 0
      %p42 = por %p40, %p41
      %s44 = sadd.s32 %s43, 1
      %p47 = scmp.eq.s32.totalorder %s9, 1
      %p48 = scmp.ne.s32.totalorder %s43, %s45
      %p49 = scmp.eq.s32.totalorder %s9, 0
      %p50 = por %p48, %p49
      %p51 = scmp.ne.s32.totalorder %s43, %s45
      %p52 = scmp.eq.s32.totalorder %s14, 1
      %p53 = por %p51, %p52
      %p54 = scmp.ne.s32.totalorder %s45, %s46
      %p55 = scmp.eq.s32.totalorder %s14, 0
      %p56 = por %p54, %p55
      %p57 = scmp.ne.s32.totalorder %s45, %s46
      %p58 = scmp.eq.s32.totalorder %s15, 1
      %p59 = por %p57, %p58
      %p61 = scmp.ne.s32.totalorder %s46, %s60
      %p62 = scmp.eq.s32.totalorder %s15, 0
      %p63 = por %p61, %p62
      %s65 = sadd.s32 %s64, 1
      %p68 = scmp.eq.s32.totalorder %s9, 1
      %p69 = scmp.ne.s32.totalorder %s64, %s66
      %p70 = scmp.eq.s32.totalorder %s9, 0
      %p71 = por %p69, %p70
      %p72 = scmp.ne.s32.totalorder %s64, %s66
      %p73 = scmp.eq.s32.totalorder %s14, 1
      %p74 = por %p72, %p73
      %p75 = scmp.ne.s32.totalorder %s66, %s67
      %p76 = scmp.eq.s32.totalorder %s14, 0
      %p77 = por %p75, %p76
      %p78 = scmp.ne.s32.totalorder %s66, %s67
      %p79 = scmp.eq.s32.totalorder %s15, 1
      %p80 = por %p78, %p79
      %p82 = scmp.ne.s32.totalorder %s67, %s81
      %p83 = scmp.eq.s32.totalorder %s15, 0
      %p84 = por %p82, %p83
      %s85 = ssub.s32 %s9, %s16
      %p86 = scmp.eq.s32.totalorder %s85, 0
      %s88 = sadd.s32 %s87, 1
      %s89 = scalar_select %p86, %s87, %s88
      %p92 = pneg %p86
      %p93 = scmp.eq.s32.totalorder %s9, 1
      %p94 = por %p92, %p93
      %p95 = scmp.ne.s32.totalorder %s87, %s90
      %p96 = scmp.eq.s32.totalorder %s9, 0
      %p97 = por %p95, %p96
      %p98 = scmp.ne.s32.totalorder %s87, %s90
      %p99 = scmp.eq.s32.totalorder %s14, 1
      %p100 = por %p98, %p99
      %p101 = scmp.ne.s32.totalorder %s90, %s91
      %p102 = scmp.eq.s32.totalorder %s14, 0
      %p103 = por %p101, %p102
      %p104 = scmp.ne.s32.totalorder %s90, %s91
      %p105 = scmp.eq.s32.totalorder %s15, 1
      %p106 = por %p104, %p105
      %p108 = scmp.ne.s32.totalorder %s91, %s107
      %p109 = scmp.eq.s32.totalorder %s15, 0
      %p110 = por %p108, %p109
      %p111 = scmp.le.s32.totalorder 1, %s9
      %p112 = scmp.lt.s32.totalorder %s9, 3
      %p113 = pnand %p111, %p112
      %p114 = pneg %p113
      // Predicated region
      $region9: #{lenet5_forward.2} parent=5 // pred_check
        _
      $region10: #{lenet5_forward.2} parent=5 // pred_check_branch
        %116 = sbr.rel (%p113) target = $region12
      $region11: #{lenet5_forward.2} parent=5 // pred_region
        %s117 = ssub.s32 %s9, 1
        // Predicated region
        $region13: #{lenet5_forward.2} parent=11 // pred_check
          %p118 = pneg %p56
        $region14: #{lenet5_forward.2} parent=11 // pred_check_branch
          %120 = sbr.rel (%p118) target = $region16
        $region15: #{lenet5_forward.2} parent=11 // pred_region
          _
        $region16: #{lenet5_forward.2} parent=11 // pred_fallthru
          _
        // Predicated region
        $region17: #{lenet5_forward.2} parent=11 // pred_check
          %p121 = pneg %p77
        $region18: #{lenet5_forward.2} parent=11 // pred_check_branch
          %123 = sbr.rel (%p121) target = $region20
        $region19: #{lenet5_forward.2} parent=11 // pred_region
          _
        $region20: #{lenet5_forward.2} parent=11 // pred_fallthru
          _
      $region12: #{lenet5_forward.2} parent=5 // pred_fallthru
        _
      %p124 = scmp.lt.s32.totalorder %s9, 2
      // Predicated region
      $region21: #{lenet5_forward.2} parent=5 // pred_check
        %p125 = pneg %p124
      $region22: #{lenet5_forward.2} parent=5 // pred_check_branch
        %127 = sbr.rel (%p125) target = $region24
      $region23: #{lenet5_forward.2} parent=5 // pred_region
        // Predicated region
        $region25: #{lenet5_forward.2} parent=23 // pred_check
          %p128 = pneg %p29
        $region26: #{lenet5_forward.2} parent=23 // pred_check_branch
          %130 = sbr.rel (%p128) target = $region28
        $region27: #{lenet5_forward.2} parent=23 // pred_region
          %s131 = sand.u32 %s19, 1
          %s132 = sand.u32 %s19, 1
          %s133 = smul.addr %s132, 448
          %s134 = scalar_lea.vmem [#allocation2], %s133
          %s135 = smul.u32 28, %s9
          %s136 = smul.addr %s135, 4
          %s137 = scalar_lea.vmem %s0, %s136
          // Predicated region
          $region29: #{lenet5_forward.2} parent=27 // pred_check
            _
          $region30: #{lenet5_forward.2} parent=27 // pred_check_branch
            %139 = sbr.rel (0) target = $region32
          $region31: #{lenet5_forward.2} parent=27 // pred_region
            // Predicated region
            $region33: #{lenet5_forward.2} parent=31 // pred_check
              _
            $region34: #{lenet5_forward.2} parent=31 // pred_check_branch
              %141 = sbr.rel target = $region36
            $region35: #{lenet5_forward.2} parent=31 // pred_region
              // Predicated region
              $region48: #{lenet5_forward.2} parent=35 // pred_check
                _
              $region49: #{lenet5_forward.2} parent=35 // pred_check_branch
                %378 = sbr.rel (0) target = $region51
              $region50: #{lenet5_forward.2} parent=35 // pred_region
                loop: start=0, step=1, limit=1
                $region52: #{lenet5_forward.2} parent=50 // loop_pre_header
                  _
                $region53: #{lenet5_forward.2} parent=50 // loop_header
                  %s380 = sphi 0, %s384
                  %p381 = scmp.ge.s32.totalorder %s380, 1
                  %s385 = sphi %s137, %s137
                  %s386 = sphi %s134, %s134
                $region54: #{lenet5_forward.2} parent=50 // loop_header_branch
                  %383 = sbr.rel (%p381) target = $region58
                $region55: #{lenet5_forward.2} parent=50 // loop_body
                  _
                $region56: #{lenet5_forward.2} parent=50 // loop_footer
                  %s384 = sadd.s32 1, %s380
                $region57: #{lenet5_forward.2} parent=50 // loop_footer_branch
                  %379 = sbr.rel target = $region53
                $region58: #{lenet5_forward.2} parent=50 // loop_exit
                  _
                loop: start=0, step=1, limit=1
                $region59: #{lenet5_forward.2} parent=50 // loop_pre_header
                  _
                $region60: #{lenet5_forward.2} parent=50 // loop_header
                  %s389 = sphi 0, %s393
                  %p390 = scmp.ge.s32.totalorder %s389, 1
                  %s394 = sphi %s137, %s137
                  %s395 = sphi %s134, %s134
                $region61: #{lenet5_forward.2} parent=50 // loop_header_branch
                  %392 = sbr.rel (%p390) target = $region65
                $region62: #{lenet5_forward.2} parent=50 // loop_body
                  %v396 = vld [vmem:[%s394] sm:$0xf]
                  %397 = vst [vmem:[%s395] sm:$0xf] %v396
                  %v398 = vld [vmem:[%s394 + $0x4] sm:$0xf]
                  %399 = vst [vmem:[%s395 + $0x4] sm:$0xf] %v398
                  %v400 = vld [vmem:[%s394 + $0x8] sm:$0xf]
                  %401 = vst [vmem:[%s395 + $0x8] sm:$0xf] %v400
                  %v402 = vld [vmem:[%s394 + $0xc] sm:$0xf]
                  %403 = vst [vmem:[%s395 + $0xc] sm:$0xf] %v402
                  %v404 = vld [vmem:[%s394 + $0x10] sm:$0xf]
                  %405 = vst [vmem:[%s395 + $0x10] sm:$0xf] %v404
                  %v406 = vld [vmem:[%s394 + $0x14] sm:$0xf]
                  %407 = vst [vmem:[%s395 + $0x14] sm:$0xf] %v406
                  %v408 = vld [vmem:[%s394 + $0x18] sm:$0xf]
                  %409 = vst [vmem:[%s395 + $0x18] sm:$0xf] %v408
                  %v410 = vld [vmem:[%s394 + $0x1c] sm:$0xf]
                  %411 = vst [vmem:[%s395 + $0x1c] sm:$0xf] %v410
                  %v412 = vld [vmem:[%s394 + $0x20] sm:$0xf]
                  %413 = vst [vmem:[%s395 + $0x20] sm:$0xf] %v412
                  %v414 = vld [vmem:[%s394 + $0x24] sm:$0xf]
                  %415 = vst [vmem:[%s395 + $0x24] sm:$0xf] %v414
                  %v416 = vld [vmem:[%s394 + $0x28] sm:$0xf]
                  %417 = vst [vmem:[%s395 + $0x28] sm:$0xf] %v416
                  %v418 = vld [vmem:[%s394 + $0x2c] sm:$0xf]
                  %419 = vst [vmem:[%s395 + $0x2c] sm:$0xf] %v418
                  %v420 = vld [vmem:[%s394 + $0x30] sm:$0xf]
                  %421 = vst [vmem:[%s395 + $0x30] sm:$0xf] %v420
                  %v422 = vld [vmem:[%s394 + $0x34] sm:$0xf]
                  %423 = vst [vmem:[%s395 + $0x34] sm:$0xf] %v422
                  %v424 = vld [vmem:[%s394 + $0x38] sm:$0xf]
                  %425 = vst [vmem:[%s395 + $0x38] sm:$0xf] %v424
                  %v426 = vld [vmem:[%s394 + $0x3c] sm:$0xf]
                  %427 = vst [vmem:[%s395 + $0x3c] sm:$0xf] %v426
                  %v428 = vld [vmem:[%s394 + $0x40] sm:$0xf]
                  %429 = vst [vmem:[%s395 + $0x40] sm:$0xf] %v428
                  %v430 = vld [vmem:[%s394 + $0x44] sm:$0xf]
                  %431 = vst [vmem:[%s395 + $0x44] sm:$0xf] %v430
                  %v432 = vld [vmem:[%s394 + $0x48] sm:$0xf]
                  %433 = vst [vmem:[%s395 + $0x48] sm:$0xf] %v432
                  %v434 = vld [vmem:[%s394 + $0x4c] sm:$0xf]
                  %435 = vst [vmem:[%s395 + $0x4c] sm:$0xf] %v434
                  %v436 = vld [vmem:[%s394 + $0x50] sm:$0xf]
                  %437 = vst [vmem:[%s395 + $0x50] sm:$0xf] %v436
                  %v438 = vld [vmem:[%s394 + $0x54] sm:$0xf]
                  %439 = vst [vmem:[%s395 + $0x54] sm:$0xf] %v438
                  %v440 = vld [vmem:[%s394 + $0x58] sm:$0xf]
                  %441 = vst [vmem:[%s395 + $0x58] sm:$0xf] %v440
                  %v442 = vld [vmem:[%s394 + $0x5c] sm:$0xf]
                  %443 = vst [vmem:[%s395 + $0x5c] sm:$0xf] %v442
                  %v444 = vld [vmem:[%s394 + $0x60] sm:$0xf]
                  %445 = vst [vmem:[%s395 + $0x60] sm:$0xf] %v444
                  %v446 = vld [vmem:[%s394 + $0x64] sm:$0xf]
                  %447 = vst [vmem:[%s395 + $0x64] sm:$0xf] %v446
                  %v448 = vld [vmem:[%s394 + $0x68] sm:$0xf]
                  %449 = vst [vmem:[%s395 + $0x68] sm:$0xf] %v448
                  %v450 = vld [vmem:[%s394 + $0x6c] sm:$0xf]
                  %451 = vst [vmem:[%s395 + $0x6c] sm:$0xf] %v450
                  %v452 = vld [vmem:[%s394 + $0xe0] sm:$0xf]
                  %453 = vst [vmem:[%s395 + $0x70] sm:$0xf] %v452
                  %v454 = vld [vmem:[%s394 + $0xe4] sm:$0xf]
                  %455 = vst [vmem:[%s395 + $0x74] sm:$0xf] %v454
                  %v456 = vld [vmem:[%s394 + $0xe8] sm:$0xf]
                  %457 = vst [vmem:[%s395 + $0x78] sm:$0xf] %v456
                  %v458 = vld [vmem:[%s394 + $0xec] sm:$0xf]
                  %459 = vst [vmem:[%s395 + $0x7c] sm:$0xf] %v458
                  %v460 = vld [vmem:[%s394 + $0xf0] sm:$0xf]
                  %461 = vst [vmem:[%s395 + $0x80] sm:$0xf] %v460
                  %v462 = vld [vmem:[%s394 + $0xf4] sm:$0xf]
                  %463 = vst [vmem:[%s395 + $0x84] sm:$0xf] %v462
                  %v464 = vld [vmem:[%s394 + $0xf8] sm:$0xf]
                  %465 = vst [vmem:[%s395 + $0x88] sm:$0xf] %v464
                  %v466 = vld [vmem:[%s394 + $0xfc] sm:$0xf]
                  %467 = vst [vmem:[%s395 + $0x8c] sm:$0xf] %v466
                  %v468 = vld [vmem:[%s394 + $0x100] sm:$0xf]
                  %469 = vst [vmem:[%s395 + $0x90] sm:$0xf] %v468
                  %v470 = vld [vmem:[%s394 + $0x104] sm:$0xf]
                  %471 = vst [vmem:[%s395 + $0x94] sm:$0xf] %v470
                  %v472 = vld [vmem:[%s394 + $0x108] sm:$0xf]
                  %473 = vst [vmem:[%s395 + $0x98] sm:$0xf] %v472
                  %v474 = vld [vmem:[%s394 + $0x10c] sm:$0xf]
                  %475 = vst [vmem:[%s395 + $0x9c] sm:$0xf] %v474
                  %v476 = vld [vmem:[%s394 + $0x110] sm:$0xf]
                  %477 = vst [vmem:[%s395 + $0xa0] sm:$0xf] %v476
                  %v478 = vld [vmem:[%s394 + $0x114] sm:$0xf]
                  %479 = vst [vmem:[%s395 + $0xa4] sm:$0xf] %v478
                  %v480 = vld [vmem:[%s394 + $0x118] sm:$0xf]
                  %481 = vst [vmem:[%s395 + $0xa8] sm:$0xf] %v480
                  %v482 = vld [vmem:[%s394 + $0x11c] sm:$0xf]
                  %483 = vst [vmem:[%s395 + $0xac] sm:$0xf] %v482
                  %v484 = vld [vmem:[%s394 + $0x120] sm:$0xf]
                  %485 = vst [vmem:[%s395 + $0xb0] sm:$0xf] %v484
                  %v486 = vld [vmem:[%s394 + $0x124] sm:$0xf]
                  %487 = vst [vmem:[%s395 + $0xb4] sm:$0xf] %v486
                  %v488 = vld [vmem:[%s394 + $0x128] sm:$0xf]
                  %489 = vst [vmem:[%s395 + $0xb8] sm:$0xf] %v488
                  %v490 = vld [vmem:[%s394 + $0x12c] sm:$0xf]
                  %491 = vst [vmem:[%s395 + $0xbc] sm:$0xf] %v490
                  %v492 = vld [vmem:[%s394 + $0x130] sm:$0xf]
                  %493 = vst [vmem:[%s395 + $0xc0] sm:$0xf] %v492
                  %v494 = vld [vmem:[%s394 + $0x134] sm:$0xf]
                  %495 = vst [vmem:[%s395 + $0xc4] sm:$0xf] %v494
                  %v496 = vld [vmem:[%s394 + $0x138] sm:$0xf]
                  %497 = vst [vmem:[%s395 + $0xc8] sm:$0xf] %v496
                  %v498 = vld [vmem:[%s394 + $0x13c] sm:$0xf]
                  %499 = vst [vmem:[%s395 + $0xcc] sm:$0xf] %v498
                  %v500 = vld [vmem:[%s394 + $0x140] sm:$0xf]
                  %501 = vst [vmem:[%s395 + $0xd0] sm:$0xf] %v500
                  %v502 = vld [vmem:[%s394 + $0x144] sm:$0xf]
                  %503 = vst [vmem:[%s395 + $0xd4] sm:$0xf] %v502
                  %v504 = vld [vmem:[%s394 + $0x148] sm:$0xf]
                  %505 = vst [vmem:[%s395 + $0xd8] sm:$0xf] %v504
                  %v506 = vld [vmem:[%s394 + $0x14c] sm:$0xf]
                  %507 = vst [vmem:[%s395 + $0xdc] sm:$0xf] %v506
                  %v508 = vld [vmem:[%s394 + $0x1c0] sm:$0xf]
                  %509 = vst [vmem:[%s395 + $0xe0] sm:$0xf] %v508
                  %v510 = vld [vmem:[%s394 + $0x1c4] sm:$0xf]
                  %511 = vst [vmem:[%s395 + $0xe4] sm:$0xf] %v510
                  %v512 = vld [vmem:[%s394 + $0x1c8] sm:$0xf]
                  %513 = vst [vmem:[%s395 + $0xe8] sm:$0xf] %v512
                  %v514 = vld [vmem:[%s394 + $0x1cc] sm:$0xf]
                  %515 = vst [vmem:[%s395 + $0xec] sm:$0xf] %v514
                  %v516 = vld [vmem:[%s394 + $0x1d0] sm:$0xf]
                  %517 = vst [vmem:[%s395 + $0xf0] sm:$0xf] %v516
                  %v518 = vld [vmem:[%s394 + $0x1d4] sm:$0xf]
                  %519 = vst [vmem:[%s395 + $0xf4] sm:$0xf] %v518
                  %v520 = vld [vmem:[%s394 + $0x1d8] sm:$0xf]
                  %521 = vst [vmem:[%s395 + $0xf8] sm:$0xf] %v520
                  %v522 = vld [vmem:[%s394 + $0x1dc] sm:$0xf]
                  %523 = vst [vmem:[%s395 + $0xfc] sm:$0xf] %v522
                  %v524 = vld [vmem:[%s394 + $0x1e0] sm:$0xf]
                  %525 = vst [vmem:[%s395 + $0x100] sm:$0xf] %v524
                  %v526 = vld [vmem:[%s394 + $0x1e4] sm:$0xf]
                  %527 = vst [vmem:[%s395 + $0x104] sm:$0xf] %v526
                  %v528 = vld [vmem:[%s394 + $0x1e8] sm:$0xf]
                  %529 = vst [vmem:[%s395 + $0x108] sm:$0xf] %v528
                  %v530 = vld [vmem:[%s394 + $0x1ec] sm:$0xf]
                  %531 = vst [vmem:[%s395 + $0x10c] sm:$0xf] %v530
                  %v532 = vld [vmem:[%s394 + $0x1f0] sm:$0xf]
                  %533 = vst [vmem:[%s395 + $0x110] sm:$0xf] %v532
                  %v534 = vld [vmem:[%s394 + $0x1f4] sm:$0xf]
                  %535 = vst [vmem:[%s395 + $0x114] sm:$0xf] %v534
                  %v536 = vld [vmem:[%s394 + $0x1f8] sm:$0xf]
                  %537 = vst [vmem:[%s395 + $0x118] sm:$0xf] %v536
                  %v538 = vld [vmem:[%s394 + $0x1fc] sm:$0xf]
                  %539 = vst [vmem:[%s395 + $0x11c] sm:$0xf] %v538
                  %v540 = vld [vmem:[%s394 + $0x200] sm:$0xf]
                  %541 = vst [vmem:[%s395 + $0x120] sm:$0xf] %v540
                  %v542 = vld [vmem:[%s394 + $0x204] sm:$0xf]
                  %543 = vst [vmem:[%s395 + $0x124] sm:$0xf] %v542
                  %v544 = vld [vmem:[%s394 + $0x208] sm:$0xf]
                  %545 = vst [vmem:[%s395 + $0x128] sm:$0xf] %v544
                  %v546 = vld [vmem:[%s394 + $0x20c] sm:$0xf]
                  %547 = vst [vmem:[%s395 + $0x12c] sm:$0xf] %v546
                  %v548 = vld [vmem:[%s394 + $0x210] sm:$0xf]
                  %549 = vst [vmem:[%s395 + $0x130] sm:$0xf] %v548
                  %v550 = vld [vmem:[%s394 + $0x214] sm:$0xf]
                  %551 = vst [vmem:[%s395 + $0x134] sm:$0xf] %v550
                  %v552 = vld [vmem:[%s394 + $0x218] sm:$0xf]
                  %553 = vst [vmem:[%s395 + $0x138] sm:$0xf] %v552
                  %v554 = vld [vmem:[%s394 + $0x21c] sm:$0xf]
                  %555 = vst [vmem:[%s395 + $0x13c] sm:$0xf] %v554
                  %v556 = vld [vmem:[%s394 + $0x220] sm:$0xf]
                  %557 = vst [vmem:[%s395 + $0x140] sm:$0xf] %v556
                  %v558 = vld [vmem:[%s394 + $0x224] sm:$0xf]
                  %559 = vst [vmem:[%s395 + $0x144] sm:$0xf] %v558
                  %v560 = vld [vmem:[%s394 + $0x228] sm:$0xf]
                  %561 = vst [vmem:[%s395 + $0x148] sm:$0xf] %v560
                  %v562 = vld [vmem:[%s394 + $0x22c] sm:$0xf]
                  %563 = vst [vmem:[%s395 + $0x14c] sm:$0xf] %v562
                  %v564 = vld [vmem:[%s394 + $0x2a0] sm:$0xf]
                  %565 = vst [vmem:[%s395 + $0x150] sm:$0xf] %v564
                  %v566 = vld [vmem:[%s394 + $0x2a4] sm:$0xf]
                  %567 = vst [vmem:[%s395 + $0x154] sm:$0xf] %v566
                  %v568 = vld [vmem:[%s394 + $0x2a8] sm:$0xf]
                  %569 = vst [vmem:[%s395 + $0x158] sm:$0xf] %v568
                  %v570 = vld [vmem:[%s394 + $0x2ac] sm:$0xf]
                  %571 = vst [vmem:[%s395 + $0x15c] sm:$0xf] %v570
                  %v572 = vld [vmem:[%s394 + $0x2b0] sm:$0xf]
                  %573 = vst [vmem:[%s395 + $0x160] sm:$0xf] %v572
                  %v574 = vld [vmem:[%s394 + $0x2b4] sm:$0xf]
                  %575 = vst [vmem:[%s395 + $0x164] sm:$0xf] %v574
                  %v576 = vld [vmem:[%s394 + $0x2b8] sm:$0xf]
                  %577 = vst [vmem:[%s395 + $0x168] sm:$0xf] %v576
                  %v578 = vld [vmem:[%s394 + $0x2bc] sm:$0xf]
                  %579 = vst [vmem:[%s395 + $0x16c] sm:$0xf] %v578
                  %v580 = vld [vmem:[%s394 + $0x2c0] sm:$0xf]
                  %581 = vst [vmem:[%s395 + $0x170] sm:$0xf] %v580
                  %v582 = vld [vmem:[%s394 + $0x2c4] sm:$0xf]
                  %583 = vst [vmem:[%s395 + $0x174] sm:$0xf] %v582
                  %v584 = vld [vmem:[%s394 + $0x2c8] sm:$0xf]
                  %585 = vst [vmem:[%s395 + $0x178] sm:$0xf] %v584
                  %v586 = vld [vmem:[%s394 + $0x2cc] sm:$0xf]
                  %587 = vst [vmem:[%s395 + $0x17c] sm:$0xf] %v586
                  %v588 = vld [vmem:[%s394 + $0x2d0] sm:$0xf]
                  %589 = vst [vmem:[%s395 + $0x180] sm:$0xf] %v588
                  %v590 = vld [vmem:[%s394 + $0x2d4] sm:$0xf]
                  %591 = vst [vmem:[%s395 + $0x184] sm:$0xf] %v590
                  %v592 = vld [vmem:[%s394 + $0x2d8] sm:$0xf]
                  %593 = vst [vmem:[%s395 + $0x188] sm:$0xf] %v592
                  %v594 = vld [vmem:[%s394 + $0x2dc] sm:$0xf]
                  %595 = vst [vmem:[%s395 + $0x18c] sm:$0xf] %v594
                  %v596 = vld [vmem:[%s394 + $0x2e0] sm:$0xf]
                  %597 = vst [vmem:[%s395 + $0x190] sm:$0xf] %v596
                  %v598 = vld [vmem:[%s394 + $0x2e4] sm:$0xf]
                  %599 = vst [vmem:[%s395 + $0x194] sm:$0xf] %v598
                  %v600 = vld [vmem:[%s394 + $0x2e8] sm:$0xf]
                  %601 = vst [vmem:[%s395 + $0x198] sm:$0xf] %v600
                  %v602 = vld [vmem:[%s394 + $0x2ec] sm:$0xf]
                  %603 = vst [vmem:[%s395 + $0x19c] sm:$0xf] %v602
                  %v604 = vld [vmem:[%s394 + $0x2f0] sm:$0xf]
                  %605 = vst [vmem:[%s395 + $0x1a0] sm:$0xf] %v604
                  %v606 = vld [vmem:[%s394 + $0x2f4] sm:$0xf]
                  %607 = vst [vmem:[%s395 + $0x1a4] sm:$0xf] %v606
                  %v608 = vld [vmem:[%s394 + $0x2f8] sm:$0xf]
                  %609 = vst [vmem:[%s395 + $0x1a8] sm:$0xf] %v608
                  %v610 = vld [vmem:[%s394 + $0x2fc] sm:$0xf]
                  %611 = vst [vmem:[%s395 + $0x1ac] sm:$0xf] %v610
                  %v612 = vld [vmem:[%s394 + $0x300] sm:$0xf]
                  %613 = vst [vmem:[%s395 + $0x1b0] sm:$0xf] %v612
                  %v614 = vld [vmem:[%s394 + $0x304] sm:$0xf]
                  %615 = vst [vmem:[%s395 + $0x1b4] sm:$0xf] %v614
                  %v616 = vld [vmem:[%s394 + $0x308] sm:$0xf]
                  %617 = vst [vmem:[%s395 + $0x1b8] sm:$0xf] %v616
                  %v618 = vld [vmem:[%s394 + $0x30c] sm:$0xf]
                  %619 = vst [vmem:[%s395 + $0x1bc] sm:$0xf] %v618
                $region63: #{lenet5_forward.2} parent=50 // loop_footer
                  %s393 = sadd.s32 1, %s389
                $region64: #{lenet5_forward.2} parent=50 // loop_footer_branch
                  %388 = sbr.rel target = $region60
                $region65: #{lenet5_forward.2} parent=50 // loop_exit
                  _
              $region51: #{lenet5_forward.2} parent=35 // pred_fallthru
                _
            $region36: #{lenet5_forward.2} parent=31 // pred_fallthru
              _
            // Predicated region
            $region37: #{lenet5_forward.2} parent=31 // pred_check
              _
            $region38: #{lenet5_forward.2} parent=31 // pred_check_branch
              %143 = sbr.rel (0) target = $region40
            $region39: #{lenet5_forward.2} parent=31 // pred_region
              loop: start=0, step=1, limit=1
              $region41: #{lenet5_forward.2} parent=39 // loop_pre_header
                _
              $region42: #{lenet5_forward.2} parent=39 // loop_header
                %s146 = sphi 0, %s150
                %p147 = scmp.ge.s32.totalorder %s146, 1
                %s151 = sphi %s137, %s137
                %s152 = sphi %s134, %s134
              $region43: #{lenet5_forward.2} parent=39 // loop_header_branch
                %149 = sbr.rel (%p147) target = $region47
              $region44: #{lenet5_forward.2} parent=39 // loop_body
                %v153 = vld [vmem:[%s151] sm:$0xf]
                %154 = vst [vmem:[%s152] sm:$0xf] %v153
                %v155 = vld [vmem:[%s151 + $0x4] sm:$0xf]
                %156 = vst [vmem:[%s152 + $0x4] sm:$0xf] %v155
                %v157 = vld [vmem:[%s151 + $0x8] sm:$0xf]
                %158 = vst [vmem:[%s152 + $0x8] sm:$0xf] %v157
                %v159 = vld [vmem:[%s151 + $0xc] sm:$0xf]
                %160 = vst [vmem:[%s152 + $0xc] sm:$0xf] %v159
                %v161 = vld [vmem:[%s151 + $0x10] sm:$0xf]
                %162 = vst [vmem:[%s152 + $0x10] sm:$0xf] %v161
                %v163 = vld [vmem:[%s151 + $0x14] sm:$0xf]
                %164 = vst [vmem:[%s152 + $0x14] sm:$0xf] %v163
                %v165 = vld [vmem:[%s151 + $0x18] sm:$0xf]
                %166 = vst [vmem:[%s152 + $0x18] sm:$0xf] %v165
                %v167 = vld [vmem:[%s151 + $0x1c] sm:$0xf]
                %168 = vst [vmem:[%s152 + $0x1c] sm:$0xf] %v167
                %v169 = vld [vmem:[%s151 + $0x20] sm:$0xf]
                %170 = vst [vmem:[%s152 + $0x20] sm:$0xf] %v169
                %v171 = vld [vmem:[%s151 + $0x24] sm:$0xf]
                %172 = vst [vmem:[%s152 + $0x24] sm:$0xf] %v171
                %v173 = vld [vmem:[%s151 + $0x28] sm:$0xf]
                %174 = vst [vmem:[%s152 + $0x28] sm:$0xf] %v173
                %v175 = vld [vmem:[%s151 + $0x2c] sm:$0xf]
                %176 = vst [vmem:[%s152 + $0x2c] sm:$0xf] %v175
                %v177 = vld [vmem:[%s151 + $0x30] sm:$0xf]
                %178 = vst [vmem:[%s152 + $0x30] sm:$0xf] %v177
                %v179 = vld [vmem:[%s151 + $0x34] sm:$0xf]
                %180 = vst [vmem:[%s152 + $0x34] sm:$0xf] %v179
                %v181 = vld [vmem:[%s151 + $0x38] sm:$0xf]
                %182 = vst [vmem:[%s152 + $0x38] sm:$0xf] %v181
                %v183 = vld [vmem:[%s151 + $0x3c] sm:$0xf]
                %184 = vst [vmem:[%s152 + $0x3c] sm:$0xf] %v183
                %v185 = vld [vmem:[%s151 + $0x40] sm:$0xf]
                %186 = vst [vmem:[%s152 + $0x40] sm:$0xf] %v185
                %v187 = vld [vmem:[%s151 + $0x44] sm:$0xf]
                %188 = vst [vmem:[%s152 + $0x44] sm:$0xf] %v187
                %v189 = vld [vmem:[%s151 + $0x48] sm:$0xf]
                %190 = vst [vmem:[%s152 + $0x48] sm:$0xf] %v189
                %v191 = vld [vmem:[%s151 + $0x4c] sm:$0xf]
                %192 = vst [vmem:[%s152 + $0x4c] sm:$0xf] %v191
                %v193 = vld [vmem:[%s151 + $0x50] sm:$0xf]
                %194 = vst [vmem:[%s152 + $0x50] sm:$0xf] %v193
                %v195 = vld [vmem:[%s151 + $0x54] sm:$0xf]
                %196 = vst [vmem:[%s152 + $0x54] sm:$0xf] %v195
                %v197 = vld [vmem:[%s151 + $0x58] sm:$0xf]
                %198 = vst [vmem:[%s152 + $0x58] sm:$0xf] %v197
                %v199 = vld [vmem:[%s151 + $0x5c] sm:$0xf]
                %200 = vst [vmem:[%s152 + $0x5c] sm:$0xf] %v199
                %v201 = vld [vmem:[%s151 + $0x60] sm:$0xf]
                %202 = vst [vmem:[%s152 + $0x60] sm:$0xf] %v201
                %v203 = vld [vmem:[%s151 + $0x64] sm:$0xf]
                %204 = vst [vmem:[%s152 + $0x64] sm:$0xf] %v203
                %v205 = vld [vmem:[%s151 + $0x68] sm:$0xf]
                %206 = vst [vmem:[%s152 + $0x68] sm:$0xf] %v205
                %v207 = vld [vmem:[%s151 + $0x6c] sm:$0xf]
                %208 = vst [vmem:[%s152 + $0x6c] sm:$0xf] %v207
                %v209 = vld [vmem:[%s151 + $0xe0] sm:$0xf]
                %210 = vst [vmem:[%s152 + $0x70] sm:$0xf] %v209
                %v211 = vld [vmem:[%s151 + $0xe4] sm:$0xf]
                %212 = vst [vmem:[%s152 + $0x74] sm:$0xf] %v211
                %v213 = vld [vmem:[%s151 + $0xe8] sm:$0xf]
                %214 = vst [vmem:[%s152 + $0x78] sm:$0xf] %v213
                %v215 = vld [vmem:[%s151 + $0xec] sm:$0xf]
                %216 = vst [vmem:[%s152 + $0x7c] sm:$0xf] %v215
                %v217 = vld [vmem:[%s151 + $0xf0] sm:$0xf]
                %218 = vst [vmem:[%s152 + $0x80] sm:$0xf] %v217
                %v219 = vld [vmem:[%s151 + $0xf4] sm:$0xf]
                %220 = vst [vmem:[%s152 + $0x84] sm:$0xf] %v219
                %v221 = vld [vmem:[%s151 + $0xf8] sm:$0xf]
                %222 = vst [vmem:[%s152 + $0x88] sm:$0xf] %v221
                %v223 = vld [vmem:[%s151 + $0xfc] sm:$0xf]
                %224 = vst [vmem:[%s152 + $0x8c] sm:$0xf] %v223
                %v225 = vld [vmem:[%s151 + $0x100] sm:$0xf]
                %226 = vst [vmem:[%s152 + $0x90] sm:$0xf] %v225
                %v227 = vld [vmem:[%s151 + $0x104] sm:$0xf]
                %228 = vst [vmem:[%s152 + $0x94] sm:$0xf] %v227
                %v229 = vld [vmem:[%s151 + $0x108] sm:$0xf]
                %230 = vst [vmem:[%s152 + $0x98] sm:$0xf] %v229
                %v231 = vld [vmem:[%s151 + $0x10c] sm:$0xf]
                %232 = vst [vmem:[%s152 + $0x9c] sm:$0xf] %v231
                %v233 = vld [vmem:[%s151 + $0x110] sm:$0xf]
                %234 = vst [vmem:[%s152 + $0xa0] sm:$0xf] %v233
                %v235 = vld [vmem:[%s151 + $0x114] sm:$0xf]
                %236 = vst [vmem:[%s152 + $0xa4] sm:$0xf] %v235
                %v237 = vld [vmem:[%s151 + $0x118] sm:$0xf]
                %238 = vst [vmem:[%s152 + $0xa8] sm:$0xf] %v237
                %v239 = vld [vmem:[%s151 + $0x11c] sm:$0xf]
                %240 = vst [vmem:[%s152 + $0xac] sm:$0xf] %v239
                %v241 = vld [vmem:[%s151 + $0x120] sm:$0xf]
                %242 = vst [vmem:[%s152 + $0xb0] sm:$0xf] %v241
                %v243 = vld [vmem:[%s151 + $0x124] sm:$0xf]
                %244 = vst [vmem:[%s152 + $0xb4] sm:$0xf] %v243
                %v245 = vld [vmem:[%s151 + $0x128] sm:$0xf]
                %246 = vst [vmem:[%s152 + $0xb8] sm:$0xf] %v245
                %v247 = vld [vmem:[%s151 + $0x12c] sm:$0xf]
                %248 = vst [vmem:[%s152 + $0xbc] sm:$0xf] %v247
                %v249 = vld [vmem:[%s151 + $0x130] sm:$0xf]
                %250 = vst [vmem:[%s152 + $0xc0] sm:$0xf] %v249
                %v251 = vld [vmem:[%s151 + $0x134] sm:$0xf]
                %252 = vst [vmem:[%s152 + $0xc4] sm:$0xf] %v251
                %v253 = vld [vmem:[%s151 + $0x138] sm:$0xf]
                %254 = vst [vmem:[%s152 + $0xc8] sm:$0xf] %v253
                %v255 = vld [vmem:[%s151 + $0x13c] sm:$0xf]
                %256 = vst [vmem:[%s152 + $0xcc] sm:$0xf] %v255
                %v257 = vld [vmem:[%s151 + $0x140] sm:$0xf]
                %258 = vst [vmem:[%s152 + $0xd0] sm:$0xf] %v257
                %v259 = vld [vmem:[%s151 + $0x144] sm:$0xf]
                %260 = vst [vmem:[%s152 + $0xd4] sm:$0xf] %v259
                %v261 = vld [vmem:[%s151 + $0x148] sm:$0xf]
                %262 = vst [vmem:[%s152 + $0xd8] sm:$0xf] %v261
                %v263 = vld [vmem:[%s151 + $0x14c] sm:$0xf]
                %264 = vst [vmem:[%s152 + $0xdc] sm:$0xf] %v263
                %v265 = vld [vmem:[%s151 + $0x1c0] sm:$0xf]
                %266 = vst [vmem:[%s152 + $0xe0] sm:$0xf] %v265
                %v267 = vld [vmem:[%s151 + $0x1c4] sm:$0xf]
                %268 = vst [vmem:[%s152 + $0xe4] sm:$0xf] %v267
                %v269 = vld [vmem:[%s151 + $0x1c8] sm:$0xf]
                %270 = vst [vmem:[%s152 + $0xe8] sm:$0xf] %v269
                %v271 = vld [vmem:[%s151 + $0x1cc] sm:$0xf]
                %272 = vst [vmem:[%s152 + $0xec] sm:$0xf] %v271
                %v273 = vld [vmem:[%s151 + $0x1d0] sm:$0xf]
                %274 = vst [vmem:[%s152 + $0xf0] sm:$0xf] %v273
                %v275 = vld [vmem:[%s151 + $0x1d4] sm:$0xf]
                %276 = vst [vmem:[%s152 + $0xf4] sm:$0xf] %v275
                %v277 = vld [vmem:[%s151 + $0x1d8] sm:$0xf]
                %278 = vst [vmem:[%s152 + $0xf8] sm:$0xf] %v277
                %v279 = vld [vmem:[%s151 + $0x1dc] sm:$0xf]
                %280 = vst [vmem:[%s152 + $0xfc] sm:$0xf] %v279
                %v281 = vld [vmem:[%s151 + $0x1e0] sm:$0xf]
                %282 = vst [vmem:[%s152 + $0x100] sm:$0xf] %v281
                %v283 = vld [vmem:[%s151 + $0x1e4] sm:$0xf]
                %284 = vst [vmem:[%s152 + $0x104] sm:$0xf] %v283
                %v285 = vld [vmem:[%s151 + $0x1e8] sm:$0xf]
                %286 = vst [vmem:[%s152 + $0x108] sm:$0xf] %v285
                %v287 = vld [vmem:[%s151 + $0x1ec] sm:$0xf]
                %288 = vst [vmem:[%s152 + $0x10c] sm:$0xf] %v287
                %v289 = vld [vmem:[%s151 + $0x1f0] sm:$0xf]
                %290 = vst [vmem:[%s152 + $0x110] sm:$0xf] %v289
                %v291 = vld [vmem:[%s151 + $0x1f4] sm:$0xf]
                %292 = vst [vmem:[%s152 + $0x114] sm:$0xf] %v291
                %v293 = vld [vmem:[%s151 + $0x1f8] sm:$0xf]
                %294 = vst [vmem:[%s152 + $0x118] sm:$0xf] %v293
                %v295 = vld [vmem:[%s151 + $0x1fc] sm:$0xf]
                %296 = vst [vmem:[%s152 + $0x11c] sm:$0xf] %v295
                %v297 = vld [vmem:[%s151 + $0x200] sm:$0xf]
                %298 = vst [vmem:[%s152 + $0x120] sm:$0xf] %v297
                %v299 = vld [vmem:[%s151 + $0x204] sm:$0xf]
                %300 = vst [vmem:[%s152 + $0x124] sm:$0xf] %v299
                %v301 = vld [vmem:[%s151 + $0x208] sm:$0xf]
                %302 = vst [vmem:[%s152 + $0x128] sm:$0xf] %v301
                %v303 = vld [vmem:[%s151 + $0x20c] sm:$0xf]
                %304 = vst [vmem:[%s152 + $0x12c] sm:$0xf] %v303
                %v305 = vld [vmem:[%s151 + $0x210] sm:$0xf]
                %306 = vst [vmem:[%s152 + $0x130] sm:$0xf] %v305
                %v307 = vld [vmem:[%s151 + $0x214] sm:$0xf]
                %308 = vst [vmem:[%s152 + $0x134] sm:$0xf] %v307
                %v309 = vld [vmem:[%s151 + $0x218] sm:$0xf]
                %310 = vst [vmem:[%s152 + $0x138] sm:$0xf] %v309
                %v311 = vld [vmem:[%s151 + $0x21c] sm:$0xf]
                %312 = vst [vmem:[%s152 + $0x13c] sm:$0xf] %v311
                %v313 = vld [vmem:[%s151 + $0x220] sm:$0xf]
                %314 = vst [vmem:[%s152 + $0x140] sm:$0xf] %v313
                %v315 = vld [vmem:[%s151 + $0x224] sm:$0xf]
                %316 = vst [vmem:[%s152 + $0x144] sm:$0xf] %v315
                %v317 = vld [vmem:[%s151 + $0x228] sm:$0xf]
                %318 = vst [vmem:[%s152 + $0x148] sm:$0xf] %v317
                %v319 = vld [vmem:[%s151 + $0x22c] sm:$0xf]
                %320 = vst [vmem:[%s152 + $0x14c] sm:$0xf] %v319
                %v321 = vld [vmem:[%s151 + $0x2a0] sm:$0xf]
                %322 = vst [vmem:[%s152 + $0x150] sm:$0xf] %v321
                %v323 = vld [vmem:[%s151 + $0x2a4] sm:$0xf]
                %324 = vst [vmem:[%s152 + $0x154] sm:$0xf] %v323
                %v325 = vld [vmem:[%s151 + $0x2a8] sm:$0xf]
                %326 = vst [vmem:[%s152 + $0x158] sm:$0xf] %v325
                %v327 = vld [vmem:[%s151 + $0x2ac] sm:$0xf]
                %328 = vst [vmem:[%s152 + $0x15c] sm:$0xf] %v327
                %v329 = vld [vmem:[%s151 + $0x2b0] sm:$0xf]
                %330 = vst [vmem:[%s152 + $0x160] sm:$0xf] %v329
                %v331 = vld [vmem:[%s151 + $0x2b4] sm:$0xf]
                %332 = vst [vmem:[%s152 + $0x164] sm:$0xf] %v331
                %v333 = vld [vmem:[%s151 + $0x2b8] sm:$0xf]
                %334 = vst [vmem:[%s152 + $0x168] sm:$0xf] %v333
                %v335 = vld [vmem:[%s151 + $0x2bc] sm:$0xf]
                %336 = vst [vmem:[%s152 + $0x16c] sm:$0xf] %v335
                %v337 = vld [vmem:[%s151 + $0x2c0] sm:$0xf]
                %338 = vst [vmem:[%s152 + $0x170] sm:$0xf] %v337
                %v339 = vld [vmem:[%s151 + $0x2c4] sm:$0xf]
                %340 = vst [vmem:[%s152 + $0x174] sm:$0xf] %v339
                %v341 = vld [vmem:[%s151 + $0x2c8] sm:$0xf]
                %342 = vst [vmem:[%s152 + $0x178] sm:$0xf] %v341
                %v343 = vld [vmem:[%s151 + $0x2cc] sm:$0xf]
                %344 = vst [vmem:[%s152 + $0x17c] sm:$0xf] %v343
                %v345 = vld [vmem:[%s151 + $0x2d0] sm:$0xf]
                %346 = vst [vmem:[%s152 + $0x180] sm:$0xf] %v345
                %v347 = vld [vmem:[%s151 + $0x2d4] sm:$0xf]
                %348 = vst [vmem:[%s152 + $0x184] sm:$0xf] %v347
                %v349 = vld [vmem:[%s151 + $0x2d8] sm:$0xf]
                %350 = vst [vmem:[%s152 + $0x188] sm:$0xf] %v349
                %v351 = vld [vmem:[%s151 + $0x2dc] sm:$0xf]
                %352 = vst [vmem:[%s152 + $0x18c] sm:$0xf] %v351
                %v353 = vld [vmem:[%s151 + $0x2e0] sm:$0xf]
                %354 = vst [vmem:[%s152 + $0x190] sm:$0xf] %v353
                %v355 = vld [vmem:[%s151 + $0x2e4] sm:$0xf]
                %356 = vst [vmem:[%s152 + $0x194] sm:$0xf] %v355
                %v357 = vld [vmem:[%s151 + $0x2e8] sm:$0xf]
                %358 = vst [vmem:[%s152 + $0x198] sm:$0xf] %v357
                %v359 = vld [vmem:[%s151 + $0x2ec] sm:$0xf]
                %360 = vst [vmem:[%s152 + $0x19c] sm:$0xf] %v359
                %v361 = vld [vmem:[%s151 + $0x2f0] sm:$0xf]
                %362 = vst [vmem:[%s152 + $0x1a0] sm:$0xf] %v361
                %v363 = vld [vmem:[%s151 + $0x2f4] sm:$0xf]
                %364 = vst [vmem:[%s152 + $0x1a4] sm:$0xf] %v363
                %v365 = vld [vmem:[%s151 + $0x2f8] sm:$0xf]
                %366 = vst [vmem:[%s152 + $0x1a8] sm:$0xf] %v365
                %v367 = vld [vmem:[%s151 + $0x2fc] sm:$0xf]
                %368 = vst [vmem:[%s152 + $0x1ac] sm:$0xf] %v367
                %v369 = vld [vmem:[%s151 + $0x300] sm:$0xf]
                %370 = vst [vmem:[%s152 + $0x1b0] sm:$0xf] %v369
                %v371 = vld [vmem:[%s151 + $0x304] sm:$0xf]
                %372 = vst [vmem:[%s152 + $0x1b4] sm:$0xf] %v371
                %v373 = vld [vmem:[%s151 + $0x308] sm:$0xf]
                %374 = vst [vmem:[%s152 + $0x1b8] sm:$0xf] %v373
                %v375 = vld [vmem:[%s151 + $0x30c] sm:$0xf]
                %376 = vst [vmem:[%s152 + $0x1bc] sm:$0xf] %v375
              $region45: #{lenet5_forward.2} parent=39 // loop_footer
                %s150 = sadd.s32 1, %s146
              $region46: #{lenet5_forward.2} parent=39 // loop_footer_branch
                %145 = sbr.rel target = $region42
              $region47: #{lenet5_forward.2} parent=39 // loop_exit
                _
            $region40: #{lenet5_forward.2} parent=31 // pred_fallthru
              _
          $region32: #{lenet5_forward.2} parent=27 // pred_fallthru
            _
          %620 = vnop
        $region28: #{lenet5_forward.2} parent=23 // pred_fallthru
          _
      $region24: #{lenet5_forward.2} parent=5 // pred_fallthru
        _
      %p621 = scmp.le.s32.totalorder 1, %s9
      %p622 = scmp.lt.s32.totalorder %s9, 3
      %p623 = pnand %p621, %p622
      %p624 = pneg %p623
      // Predicated region
      $region66: #{lenet5_forward.2} parent=5 // pred_check
        _
      $region67: #{lenet5_forward.2} parent=5 // pred_check_branch
        %626 = sbr.rel (%p623) target = $region69
      $region68: #{lenet5_forward.2} parent=5 // pred_region
        %s627 = ssub.s32 %s9, 1
        %s628 = sand.u32 %s22, 1
        %s629 = sand.u32 %s22, 1
        %s630 = smul.addr %s629, 448
        %s631 = scalar_lea.vmem [#allocation2], %s630
        // Predicated region
        $region70: #{lenet5_forward.2} parent=68 // pred_check
          %p632 = pneg %p35
        $region71: #{lenet5_forward.2} parent=68 // pred_check_branch
          %634 = sbr.rel (%p632) target = $region73
        $region72: #{lenet5_forward.2} parent=68 // pred_region
          _
        $region73: #{lenet5_forward.2} parent=68 // pred_fallthru
          _
        %s635 = sand.u32 %s22, 1
        %s636 = sand.u32 %s22, 1
        %s637 = smul.addr %s636, 448
        %s638 = scalar_lea.vmem [#allocation2], %s637
        %p639 = pneg %p35
        %p640 = pneg %p32
        %p641 = pneg %p56
        %p642 = pneg %p53
        %p643 = pneg %p77
        %p644 = pneg %p74
        %p645 = pneg %p103
        %p646 = pneg %p100
        %s647 = smul.u32 28, %s14
        %p648 = scmp.lt.s32.totalorder %s647, 55
        %s649 = scalar_select %p648, %s647, 55
        %s650 = smul.addr %s649, 4
        %s651 = scalar_lea.vmem %s3, %s650
        %s652 = smul.u32 28, %s14
        %s653 = smul.u32 28, %s14
        %p654 = scmp.lt.s32.totalorder %s653, 55
        %s655 = scalar_select %p654, %s653, 55
        %s656 = smul.addr %s655, 4
        %s657 = scalar_lea.vmem %s3, %s656
        %s658 = smul.u32 28, %s14
        %v660 = vld [vmem:[%s631] sm:$0xf]
        %v661 = vld [vmem:[%s631 + $0x4] sm:$0xf]
        %v662 = vld [vmem:[%s631 + $0x8] sm:$0xf]
        %v663 = vld [vmem:[%s631 + $0xc] sm:$0xf]
        %v664 = vld [vmem:[%s631 + $0x10] sm:$0xf]
        %v665 = vld [vmem:[%s631 + $0x14] sm:$0xf]
        %v666 = vld [vmem:[%s631 + $0x18] sm:$0xf]
        %v667 = vld [vmem:[%s631 + $0x1c] sm:$0xf]
        %v668 = vld [vmem:[%s631 + $0x20] sm:$0xf]
        %v669 = vld [vmem:[%s631 + $0x24] sm:$0xf]
        %v670 = vld [vmem:[%s631 + $0x28] sm:$0xf]
        %v671 = vld [vmem:[%s631 + $0x2c] sm:$0xf]
        %v672 = vld [vmem:[%s631 + $0x30] sm:$0xf]
        %v673 = vld [vmem:[%s631 + $0x34] sm:$0xf]
        %v674 = vld [vmem:[%s631 + $0x38] sm:$0xf]
        %v675 = vld [vmem:[%s631 + $0x3c] sm:$0xf]
        %v676 = vld [vmem:[%s631 + $0x40] sm:$0xf]
        %v677 = vld [vmem:[%s631 + $0x44] sm:$0xf]
        %v678 = vld [vmem:[%s631 + $0x48] sm:$0xf]
        %v679 = vld [vmem:[%s631 + $0x4c] sm:$0xf]
        %v680 = vld [vmem:[%s631 + $0x50] sm:$0xf]
        %v681 = vld [vmem:[%s631 + $0x54] sm:$0xf]
        %v682 = vld [vmem:[%s631 + $0x58] sm:$0xf]
        %v683 = vld [vmem:[%s631 + $0x5c] sm:$0xf]
        %v684 = vld [vmem:[%s631 + $0x60] sm:$0xf]
        %v685 = vld [vmem:[%s631 + $0x64] sm:$0xf]
        %v686 = vld [vmem:[%s631 + $0x68] sm:$0xf]
        %v687 = vld [vmem:[%s631 + $0x6c] sm:$0xf]
        %v688 = vld [vmem:[%s1] sm:$0xf]
        %v689 = vld [vmem:[%s1 + $0x4] sm:$0xf]
        %v690 = vld [vmem:[%s1 + $0x8] sm:$0xf]
        %v691 = vld [vmem:[%s1 + $0xc] sm:$0xf]
        %v692 = vld [vmem:[%s2] sm:$0x1]
        %v694 = vlaneseq
        %v695 = vshrl.u32 %v694, 7
        %v696 = vsub.s32 0, %v695
        %v697 = vrot.slane %v692, %v696
        %v727 = vunpack.c.l.b16 %v660
        %v728 = vunpack.c.l.b16 %v661
        %v729 = vunpack.c.l.b16 %v662
        %v730 = vunpack.c.l.b16 %v663
        %v731 = vunpack.c.l.b16 %v664
        %v732 = vunpack.c.l.b16 %v665
        %v733 = vunpack.c.l.b16 %v666
        %v734 = vunpack.c.l.b16 %v667
        %v735 = vunpack.c.l.b16 %v668
        %v736 = vunpack.c.l.b16 %v669
        %v737 = vunpack.c.l.b16 %v670
        %v738 = vunpack.c.l.b16 %v671
        %v739 = vunpack.c.l.b16 %v672
        %v740 = vunpack.c.l.b16 %v673
        %v741 = vunpack.c.l.b16 %v674
        %v742 = vunpack.c.l.b16 %v675
        %v743 = vunpack.c.l.b16 %v676
        %v744 = vunpack.c.l.b16 %v677
        %v745 = vunpack.c.l.b16 %v678
        %v746 = vunpack.c.l.b16 %v679
        %v747 = vunpack.c.l.b16 %v680
        %v748 = vunpack.c.l.b16 %v681
        %v749 = vunpack.c.l.b16 %v682
        %v750 = vunpack.c.l.b16 %v683
        %v751 = vunpack.c.l.b16 %v684
        %v752 = vunpack.c.l.b16 %v685
        %v753 = vunpack.c.l.b16 %v686
        %v754 = vunpack.c.l.b16 %v687
        %v755 = vpack.c.b16 %v728, %v727
        %v756 = vpack.c.b16 %v730, %v729
        %v757 = vpack.c.b16 %v732, %v731
        %v758 = vpack.c.b16 %v734, %v733
        %v759 = vpack.c.b16 %v736, %v735
        %v760 = vpack.c.b16 %v738, %v737
        %v761 = vpack.c.b16 %v740, %v739
        %v762 = vpack.c.b16 %v742, %v741
        %v763 = vpack.c.b16 %v744, %v743
        %v764 = vpack.c.b16 %v746, %v745
        %v765 = vpack.c.b16 %v748, %v747
        %v766 = vpack.c.b16 %v750, %v749
        %v767 = vpack.c.b16 %v752, %v751
        %v768 = vpack.c.b16 %v754, %v753
        %v773 = vunpack.c.l.b16 %v688
        %v774 = vunpack.c.l.b16 %v689
        %v775 = vunpack.c.l.b16 %v690
        %v776 = vunpack.c.l.b16 %v691
        %v777 = vpack.c.b16 %v774, %v773
        %v778 = vpack.c.b16 %v776, %v775
        %vm781 = vcmask 261120
        %v783 = vsel %vm781, %v755, 0
        %v786 = vsel %vm781, %v756, 0
        %v789 = vsel %vm781, %v757, 0
        %v792 = vsel %vm781, %v758, 0
        %v795 = vsel %vm781, %v759, 0
        %v798 = vsel %vm781, %v760, 0
        %v801 = vsel %vm781, %v761, 0
        %v804 = vsel %vm781, %v762, 0
        %v807 = vsel %vm781, %v763, 0
        %v810 = vsel %vm781, %v764, 0
        %v813 = vsel %vm781, %v765, 0
        %v816 = vsel %vm781, %v766, 0
        %v819 = vsel %vm781, %v767, 0
        %v822 = vsel %vm781, %v768, 0
        %824 = vmatprep.subr.bf16.mxu0 0
        %825 = vmatpush1.bf16.msra.mxu0 %v777
        %826 = vmatprep.subr.bf16.mxu0 0
        %827 = vmatpush1.bf16.msra.mxu0 %v778
        %828 = vmatprep.subr.bf16.mxu0 0
        %829 = vmatpush1.bf16.msra.mxu0 0
        %830 = vmatprep.subr.bf16.mxu0 0
        %831 = vmatpush1.bf16.msra.mxu0 0
        %832 = vmatprep.subr.bf16.mxu0 0
        %833 = vmatpush1.bf16.msra.mxu0 0
        %834 = vmatprep.subr.bf16.mxu0 0
        %835 = vmatpush1.bf16.msra.mxu0 0
        %836 = vmatprep.subr.bf16.mxu0 0
        %837 = vmatpush1.bf16.msra.mxu0 0
        %838 = vmatprep.subr.bf16.mxu0 0
        %839 = vmatpush1.bf16.msra.mxu0 0
        %840 = vmatprep.subr.bf16.mxu0 0
        %841 = vmatpush1.bf16.msra.mxu0 0
        %842 = vmatprep.subr.bf16.mxu0 0
        %843 = vmatpush1.bf16.msra.mxu0 0
        %844 = vmatprep.subr.bf16.mxu0 0
        %845 = vmatpush1.bf16.msra.mxu0 0
        %846 = vmatprep.subr.bf16.mxu0 0
        %847 = vmatpush1.bf16.msra.mxu0 0
        %848 = vmatprep.subr.bf16.mxu0 0
        %849 = vmatpush1.bf16.msra.mxu0 0
        %850 = vmatprep.subr.bf16.mxu0 0
        %851 = vmatpush1.bf16.msra.mxu0 0
        %852 = vmatprep.subr.bf16.mxu0 0
        %853 = vmatpush1.bf16.msra.mxu0 0
        %854 = vmatprep.subr.bf16.mxu0 0
        %855 = vmatpush1.bf16.msra.mxu0 0
        %856 = vmatprep.mubr.bf16.mxu0 0
        %857 = vmatmul.mubr.bf16.gmra.mrb[0].mxu0 %v783
        %v858 = vpop.f32.mrb[0].mxu0
        %v859 = vadd.f32 %v697, %v858
        %v860 = vpop.f32.mrb[0].mxu0
        %v861 = vpop.f32.mrb[0].mxu0
        %v862 = vadd.f32 %v697, %v861
        %v863 = vpop.f32.mrb[0].mxu0
        %864 = vmatprep.mubr.bf16.mxu0 0
        %865 = vmatmul.mubr.bf16.gmra.mrb[0].mxu0 %v786
        %v866 = vpop.f32.mrb[0].mxu0
        %v867 = vadd.f32 %v697, %v866
        %v868 = vpop.f32.mrb[0].mxu0
        %v869 = vpop.f32.mrb[0].mxu0
        %v870 = vadd.f32 %v697, %v869
        %v871 = vpop.f32.mrb[0].mxu0
        %872 = vmatprep.mubr.bf16.mxu0 0
        %873 = vmatmul.mubr.bf16.gmra.mrb[0].mxu0 %v789
        %v874 = vpop.f32.mrb[0].mxu0
        %v875 = vadd.f32 %v697, %v874
        %v876 = vpop.f32.mrb[0].mxu0
        %v877 = vpop.f32.mrb[0].mxu0
        %v878 = vadd.f32 %v697, %v877
        %v879 = vpop.f32.mrb[0].mxu0
        %880 = vmatprep.mubr.bf16.mxu0 0
        %881 = vmatmul.mubr.bf16.gmra.mrb[0].mxu0 %v792
        %v882 = vpop.f32.mrb[0].mxu0
        %v883 = vadd.f32 %v697, %v882
        %v884 = vpop.f32.mrb[0].mxu0
        %v885 = vpop.f32.mrb[0].mxu0
        %v886 = vadd.f32 %v697, %v885
        %v887 = vpop.f32.mrb[0].mxu0
        %888 = vmatprep.mubr.bf16.mxu0 0
        %889 = vmatmul.mubr.bf16.gmra.mrb[0].mxu0 %v795
        %v890 = vpop.f32.mrb[0].mxu0
        %v891 = vadd.f32 %v697, %v890
        %v892 = vpop.f32.mrb[0].mxu0
        %v893 = vpop.f32.mrb[0].mxu0
        %v894 = vadd.f32 %v697, %v893
        %v895 = vpop.f32.mrb[0].mxu0
        %896 = vmatprep.mubr.bf16.mxu0 0
        %897 = vmatmul.mubr.bf16.gmra.mrb[0].mxu0 %v798
        %v898 = vpop.f32.mrb[0].mxu0
        %v899 = vadd.f32 %v697, %v898
        %v900 = vpop.f32.mrb[0].mxu0
        %v901 = vpop.f32.mrb[0].mxu0
        %v902 = vadd.f32 %v697, %v901
        %v903 = vpop.f32.mrb[0].mxu0
        %904 = vmatprep.mubr.bf16.mxu0 0
        %905 = vmatmul.mubr.bf16.gmra.mrb[0].mxu0 %v801
        %v906 = vpop.f32.mrb[0].mxu0
        %v907 = vadd.f32 %v697, %v906
        %v908 = vpop.f32.mrb[0].mxu0
        %v909 = vpop.f32.mrb[0].mxu0
        %v910 = vadd.f32 %v697, %v909
        %v911 = vpop.f32.mrb[0].mxu0
        %912 = vmatprep.mubr.bf16.mxu0 0
        %913 = vmatmul.mubr.bf16.gmra.mrb[0].mxu0 %v804
        %v914 = vpop.f32.mrb[0].mxu0
        %v915 = vadd.f32 %v697, %v914
        %v916 = vpop.f32.mrb[0].mxu0
        %v917 = vpop.f32.mrb[0].mxu0
        %v918 = vadd.f32 %v697, %v917
        %v919 = vpop.f32.mrb[0].mxu0
        %920 = vmatprep.mubr.bf16.mxu0 0
        %921 = vmatmul.mubr.bf16.gmra.mrb[0].mxu0 %v807
        %v922 = vpop.f32.mrb[0].mxu0
        %v923 = vadd.f32 %v697, %v922
        %v924 = vpop.f32.mrb[0].mxu0
        %v925 = vpop.f32.mrb[0].mxu0
        %v926 = vadd.f32 %v697, %v925
        %v927 = vpop.f32.mrb[0].mxu0
        %928 = vmatprep.mubr.bf16.mxu0 0
        %929 = vmatmul.mubr.bf16.gmra.mrb[0].mxu0 %v810
        %v930 = vpop.f32.mrb[0].mxu0
        %v931 = vadd.f32 %v697, %v930
        %v932 = vpop.f32.mrb[0].mxu0
        %v933 = vpop.f32.mrb[0].mxu0
        %v934 = vadd.f32 %v697, %v933
        %v935 = vpop.f32.mrb[0].mxu0
        %936 = vmatprep.mubr.bf16.mxu0 0
        %937 = vmatmul.mubr.bf16.gmra.mrb[0].mxu0 %v813
        %v938 = vpop.f32.mrb[0].mxu0
        %v939 = vadd.f32 %v697, %v938
        %v940 = vpop.f32.mrb[0].mxu0
        %v941 = vpop.f32.mrb[0].mxu0
        %v942 = vadd.f32 %v697, %v941
        %v943 = vpop.f32.mrb[0].mxu0
        %944 = vmatprep.mubr.bf16.mxu0 0
        %945 = vmatmul.mubr.bf16.gmra.mrb[0].mxu0 %v816
        %v946 = vpop.f32.mrb[0].mxu0
        %v947 = vadd.f32 %v697, %v946
        %v948 = vpop.f32.mrb[0].mxu0
        %v949 = vpop.f32.mrb[0].mxu0
        %v950 = vadd.f32 %v697, %v949
        %v951 = vpop.f32.mrb[0].mxu0
        %952 = vmatprep.mubr.bf16.mxu0 0
        %953 = vmatmul.mubr.bf16.gmra.mrb[0].mxu0 %v819
        %v954 = vpop.f32.mrb[0].mxu0
        %v955 = vadd.f32 %v697, %v954
        %v956 = vpop.f32.mrb[0].mxu0
        %v957 = vpop.f32.mrb[0].mxu0
        %v958 = vadd.f32 %v697, %v957
        %v959 = vpop.f32.mrb[0].mxu0
        %960 = vmatprep.mubr.bf16.mxu0 0
        %961 = vmatmul.mubr.bf16.gmra.mrb[0].mxu0 %v822
        %v962 = vpop.f32.mrb[0].mxu0
        %v963 = vadd.f32 %v697, %v962
        %v964 = vpop.f32.mrb[0].mxu0
        %v965 = vpop.f32.mrb[0].mxu0
        %v966 = vadd.f32 %v697, %v965
        %v967 = vpop.f32.mrb[0].mxu0
        %968 = vdwg.mxu0
        %v969 = vmax.f32 %v859, 0.0
        %v970 = vmax.f32 %v862, 0.0
        %v971 = vmax.f32 %v867, 0.0
        %v972 = vmax.f32 %v870, 0.0
        %v973 = vmax.f32 %v875, 0.0
        %v974 = vmax.f32 %v878, 0.0
        %v975 = vmax.f32 %v883, 0.0
        %v976 = vmax.f32 %v886, 0.0
        %v977 = vmax.f32 %v891, 0.0
        %v978 = vmax.f32 %v894, 0.0
        %v979 = vmax.f32 %v899, 0.0
        %v980 = vmax.f32 %v902, 0.0
        %v981 = vmax.f32 %v907, 0.0
        %v982 = vmax.f32 %v910, 0.0
        %v983 = vmax.f32 %v915, 0.0
        %v984 = vmax.f32 %v918, 0.0
        %v985 = vmax.f32 %v923, 0.0
        %v986 = vmax.f32 %v926, 0.0
        %v987 = vmax.f32 %v931, 0.0
        %v988 = vmax.f32 %v934, 0.0
        %v989 = vmax.f32 %v939, 0.0
        %v990 = vmax.f32 %v942, 0.0
        %v991 = vmax.f32 %v947, 0.0
        %v992 = vmax.f32 %v950, 0.0
        %v993 = vmax.f32 %v955, 0.0
        %v994 = vmax.f32 %v958, 0.0
        %v995 = vmax.f32 %v963, 0.0
        %v996 = vmax.f32 %v966, 0.0
        %s997 = scalar_lea.vmem %s631, 112 [#allocation2]
        %v998 = vld [vmem:[%s997] sm:$0xf]
        %v999 = vld [vmem:[%s997 + $0x4] sm:$0xf]
        %v1000 = vld [vmem:[%s997 + $0x8] sm:$0xf]
        %v1001 = vld [vmem:[%s997 + $0xc] sm:$0xf]
        %v1002 = vld [vmem:[%s997 + $0x10] sm:$0xf]
        %v1003 = vld [vmem:[%s997 + $0x14] sm:$0xf]
        %v1004 = vld [vmem:[%s997 + $0x18] sm:$0xf]
        %v1005 = vld [vmem:[%s997 + $0x1c] sm:$0xf]
        %v1006 = vld [vmem:[%s997 + $0x20] sm:$0xf]
        %v1007 = vld [vmem:[%s997 + $0x24] sm:$0xf]
        %v1008 = vld [vmem:[%s997 + $0x28] sm:$0xf]
        %v1009 = vld [vmem:[%s997 + $0x2c] sm:$0xf]
        %v1010 = vld [vmem:[%s997 + $0x30] sm:$0xf]
        %v1011 = vld [vmem:[%s997 + $0x34] sm:$0xf]
        %v1012 = vld [vmem:[%s997 + $0x38] sm:$0xf]
        %v1013 = vld [vmem:[%s997 + $0x3c] sm:$0xf]
        %v1014 = vld [vmem:[%s997 + $0x40] sm:$0xf]
        %v1015 = vld [vmem:[%s997 + $0x44] sm:$0xf]
        %v1016 = vld [vmem:[%s997 + $0x48] sm:$0xf]
        %v1017 = vld [vmem:[%s997 + $0x4c] sm:$0xf]
        %v1018 = vld [vmem:[%s997 + $0x50] sm:$0xf]
        %v1019 = vld [vmem:[%s997 + $0x54] sm:$0xf]
        %v1020 = vld [vmem:[%s997 + $0x58] sm:$0xf]
        %v1021 = vld [vmem:[%s997 + $0x5c] sm:$0xf]
        %v1022 = vld [vmem:[%s997 + $0x60] sm:$0xf]
        %v1023 = vld [vmem:[%s997 + $0x64] sm:$0xf]
        %v1024 = vld [vmem:[%s997 + $0x68] sm:$0xf]
        %v1025 = vld [vmem:[%s997 + $0x6c] sm:$0xf]
        %v1054 = vunpack.c.l.b16 %v998
        %v1055 = vunpack.c.l.b16 %v999
        %v1056 = vunpack.c.l.b16 %v1000
        %v1057 = vunpack.c.l.b16 %v1001
        %v1058 = vunpack.c.l.b16 %v1002
        %v1059 = vunpack.c.l.b16 %v1003
        %v1060 = vunpack.c.l.b16 %v1004
        %v1061 = vunpack.c.l.b16 %v1005
        %v1062 = vunpack.c.l.b16 %v1006
        %v1063 = vunpack.c.l.b16 %v1007
        %v1064 = vunpack.c.l.b16 %v1008
        %v1065 = vunpack.c.l.b16 %v1009
        %v1066 = vunpack.c.l.b16 %v1010
        %v1067 = vunpack.c.l.b16 %v1011
        %v1068 = vunpack.c.l.b16 %v1012
        %v1069 = vunpack.c.l.b16 %v1013
        %v1070 = vunpack.c.l.b16 %v1014
        %v1071 = vunpack.c.l.b16 %v1015
        %v1072 = vunpack.c.l.b16 %v1016
        %v1073 = vunpack.c.l.b16 %v1017
        %v1074 = vunpack.c.l.b16 %v1018
        %v1075 = vunpack.c.l.b16 %v1019
        %v1076 = vunpack.c.l.b16 %v1020
        %v1077 = vunpack.c.l.b16 %v1021
        %v1078 = vunpack.c.l.b16 %v1022
        %v1079 = vunpack.c.l.b16 %v1023
        %v1080 = vunpack.c.l.b16 %v1024
        %v1081 = vunpack.c.l.b16 %v1025
        %v1082 = vpack.c.b16 %v1055, %v1054
        %v1083 = vpack.c.b16 %v1057, %v1056
        %v1084 = vpack.c.b16 %v1059, %v1058
        %v1085 = vpack.c.b16 %v1061, %v1060
        %v1086 = vpack.c.b16 %v1063, %v1062
        %v1087 = vpack.c.b16 %v1065, %v1064
        %v1088 = vpack.c.b16 %v1067, %v1066
        %v1089 = vpack.c.b16 %v1069, %v1068
        %v1090 = vpack.c.b16 %v1071, %v1070
        %v1091 = vpack.c.b16 %v1073, %v1072
        %v1092 = vpack.c.b16 %v1075, %v1074
        %v1093 = vpack.c.b16 %v1077, %v1076
        %v1094 = vpack.c.b16 %v1079, %v1078
        %v1095 = vpack.c.b16 %v1081, %v1080
        %v1097 = vsel %vm781, %v1082, 0
        %v1100 = vsel %vm781, %v1083, 0
        %v1103 = vsel %vm781, %v1084, 0
        %v1106 = vsel %vm781, %v1085, 0
        %v1109 = vsel %vm781, %v1086, 0
        %v1112 = vsel %vm781, %v1087, 0
        %v1115 = vsel %vm781, %v1088, 0
        %v1118 = vsel %vm781, %v1089, 0
        %v1121 = vsel %vm781, %v1090, 0
        %v1124 = vsel %vm781, %v1091, 0
        %v1127 = vsel %vm781, %v1092, 0
        %v1130 = vsel %vm781, %v1093, 0
        %v1133 = vsel %vm781, %v1094, 0
        %v1136 = vsel %vm781, %v1095, 0
        %1138 = vmatprep.subr.bf16.mxu0 0
        %1139 = vmatpush1.bf16.msra.mxu0 %v777
        %1140 = vmatprep.subr.bf16.mxu0 0
        %1141 = vmatpush1.bf16.msra.mxu0 %v778
        %1142 = vmatprep.subr.bf16.mxu0 0
        %1143 = vmatpush1.bf16.msra.mxu0 0
        %1144 = vmatprep.subr.bf16.mxu0 0
        %1145 = vmatpush1.bf16.msra.mxu0 0
        %1146 = vmatprep.subr.bf16.mxu0 0
        %1147 = vmatpush1.bf16.msra.mxu0 0
        %1148 = vmatprep.subr.bf16.mxu0 0
        %1149 = vmatpush1.bf16.msra.mxu0 0
        %1150 = vmatprep.subr.bf16.mxu0 0
        %1151 = vmatpush1.bf16.msra.mxu0 0
        %1152 = vmatprep.subr.bf16.mxu0 0
        %1153 = vmatpush1.bf16.msra.mxu0 0
        %1154 = vmatprep.subr.bf16.mxu0 0
        %1155 = vmatpush1.bf16.msra.mxu0 0
        %1156 = vmatprep.subr.bf16.mxu0 0
        %1157 = vmatpush1.bf16.msra.mxu0 0
        %1158 = vmatprep.subr.bf16.mxu0 0
        %1159 = vmatpush1.bf16.msra.mxu0 0
        %1160 = vmatprep.subr.bf16.mxu0 0
        %1161 = vmatpush1.bf16.msra.mxu0 0
        %1162 = vmatprep.subr.bf16.mxu0 0
        %1163 = vmatpush1.bf16.msra.mxu0 0
        %1164 = vmatprep.subr.bf16.mxu0 0
        %1165 = vmatpush1.bf16.msra.mxu0 0
        %1166 = vmatprep.subr.bf16.mxu0 0
        %1167 = vmatpush1.bf16.msra.mxu0 0
        %1168 = vmatprep.subr.bf16.mxu0 0
        %1169 = vmatpush1.bf16.msra.mxu0 0
        %1170 = vmatprep.mubr.bf16.mxu0 0
        %1171 = vmatmul.mubr.bf16.gmra.mrb[0].mxu0 %v1097
        %v1172 = vpop.f32.mrb[0].mxu0
        %v1173 = vadd.f32 %v697, %v1172
        %v1174 = vpop.f32.mrb[0].mxu0
        %v1175 = vpop.f32.mrb[0].mxu0
        %v1176 = vadd.f32 %v697, %v1175
        %v1177 = vpop.f32.mrb[0].mxu0
        %1178 = vmatprep.mubr.bf16.mxu0 0
        %1179 = vmatmul.mubr.bf16.gmra.mrb[0].mxu0 %v1100
        %v1180 = vpop.f32.mrb[0].mxu0
        %v1181 = vadd.f32 %v697, %v1180
        %v1182 = vpop.f32.mrb[0].mxu0
        %v1183 = vpop.f32.mrb[0].mxu0
        %v1184 = vadd.f32 %v697, %v1183
        %v1185 = vpop.f32.mrb[0].mxu0
        %1186 = vmatprep.mubr.bf16.mxu0 0
        %1187 = vmatmul.mubr.bf16.gmra.mrb[0].mxu0 %v1103
        %v1188 = vpop.f32.mrb[0].mxu0
        %v1189 = vadd.f32 %v697, %v1188
        %v1190 = vpop.f32.mrb[0].mxu0
        %v1191 = vpop.f32.mrb[0].mxu0
        %v1192 = vadd.f32 %v697, %v1191
        %v1193 = vpop.f32.mrb[0].mxu0
        %1194 = vmatprep.mubr.bf16.mxu0 0
        %1195 = vmatmul.mubr.bf16.gmra.mrb[0].mxu0 %v1106
        %v1196 = vpop.f32.mrb[0].mxu0
        %v1197 = vadd.f32 %v697, %v1196
        %v1198 = vpop.f32.mrb[0].mxu0
        %v1199 = vpop.f32.mrb[0].mxu0
        %v1200 = vadd.f32 %v697, %v1199
        %v1201 = vpop.f32.mrb[0].mxu0
        %1202 = vmatprep.mubr.bf16.mxu0 0
        %1203 = vmatmul.mubr.bf16.gmra.mrb[0].mxu0 %v1109
        %v1204 = vpop.f32.mrb[0].mxu0
        %v1205 = vadd.f32 %v697, %v1204
        %v1206 = vpop.f32.mrb[0].mxu0
        %v1207 = vpop.f32.mrb[0].mxu0
        %v1208 = vadd.f32 %v697, %v1207
        %v1209 = vpop.f32.mrb[0].mxu0
        %1210 = vmatprep.mubr.bf16.mxu0 0
        %1211 = vmatmul.mubr.bf16.gmra.mrb[0].mxu0 %v1112
        %v1212 = vpop.f32.mrb[0].mxu0
        %v1213 = vadd.f32 %v697, %v1212
        %v1214 = vpop.f32.mrb[0].mxu0
        %v1215 = vpop.f32.mrb[0].mxu0
        %v1216 = vadd.f32 %v697, %v1215
        %v1217 = vpop.f32.mrb[0].mxu0
        %1218 = vmatprep.mubr.bf16.mxu0 0
        %1219 = vmatmul.mubr.bf16.gmra.mrb[0].mxu0 %v1115
        %v1220 = vpop.f32.mrb[0].mxu0
        %v1221 = vadd.f32 %v697, %v1220
        %v1222 = vpop.f32.mrb[0].mxu0
        %v1223 = vpop.f32.mrb[0].mxu0
        %v1224 = vadd.f32 %v697, %v1223
        %v1225 = vpop.f32.mrb[0].mxu0
        %1226 = vmatprep.mubr.bf16.mxu0 0
        %1227 = vmatmul.mubr.bf16.gmra.mrb[0].mxu0 %v1118
        %v1228 = vpop.f32.mrb[0].mxu0
        %v1229 = vadd.f32 %v697, %v1228
        %v1230 = vpop.f32.mrb[0].mxu0
        %v1231 = vpop.f32.mrb[0].mxu0
        %v1232 = vadd.f32 %v697, %v1231
        %v1233 = vpop.f32.mrb[0].mxu0
        %1234 = vmatprep.mubr.bf16.mxu0 0
        %1235 = vmatmul.mubr.bf16.gmra.mrb[0].mxu0 %v1121
        %v1236 = vpop.f32.mrb[0].mxu0
        %v1237 = vadd.f32 %v697, %v1236
        %v1238 = vpop.f32.mrb[0].mxu0
        %v1239 = vpop.f32.mrb[0].mxu0
        %v1240 = vadd.f32 %v697, %v1239
        %v1241 = vpop.f32.mrb[0].mxu0
        %1242 = vmatprep.mubr.bf16.mxu0 0
        %1243 = vmatmul.mubr.bf16.gmra.mrb[0].mxu0 %v1124
        %v1244 = vpop.f32.mrb[0].mxu0
        %v1245 = vadd.f32 %v697, %v1244
        %v1246 = vpop.f32.mrb[0].mxu0
        %v1247 = vpop.f32.mrb[0].mxu0
        %v1248 = vadd.f32 %v697, %v1247
        %v1249 = vpop.f32.mrb[0].mxu0
        %1250 = vmatprep.mubr.bf16.mxu0 0
        %1251 = vmatmul.mubr.bf16.gmra.mrb[0].mxu0 %v1127
        %v1252 = vpop.f32.mrb[0].mxu0
        %v1253 = vadd.f32 %v697, %v1252
        %v1254 = vpop.f32.mrb[0].mxu0
        %v1255 = vpop.f32.mrb[0].mxu0
        %v1256 = vadd.f32 %v697, %v1255
        %v1257 = vpop.f32.mrb[0].mxu0
        %1258 = vmatprep.mubr.bf16.mxu0 0
        %1259 = vmatmul.mubr.bf16.gmra.mrb[0].mxu0 %v1130
        %v1260 = vpop.f32.mrb[0].mxu0
        %v1261 = vadd.f32 %v697, %v1260
        %v1262 = vpop.f32.mrb[0].mxu0
        %v1263 = vpop.f32.mrb[0].mxu0
        %v1264 = vadd.f32 %v697, %v1263
        %v1265 = vpop.f32.mrb[0].mxu0
        %1266 = vmatprep.mubr.bf16.mxu0 0
        %1267 = vmatmul.mubr.bf16.gmra.mrb[0].mxu0 %v1133
        %v1268 = vpop.f32.mrb[0].mxu0
        %v1269 = vadd.f32 %v697, %v1268
        %v1270 = vpop.f32.mrb[0].mxu0
        %v1271 = vpop.f32.mrb[0].mxu0
        %v1272 = vadd.f32 %v697, %v1271
        %v1273 = vpop.f32.mrb[0].mxu0
        %1274 = vmatprep.mubr.bf16.mxu0 0
        %1275 = vmatmul.mubr.bf16.gmra.mrb[0].mxu0 %v1136
        %v1276 = vpop.f32.mrb[0].mxu0
        %v1277 = vadd.f32 %v697, %v1276
        %v1278 = vpop.f32.mrb[0].mxu0
        %v1279 = vpop.f32.mrb[0].mxu0
        %v1280 = vadd.f32 %v697, %v1279
        %v1281 = vpop.f32.mrb[0].mxu0
        %1282 = vdwg.mxu0
        %v1283 = vmax.f32 %v1173, 0.0
        %v1284 = vmax.f32 %v1176, 0.0
        %v1285 = vmax.f32 %v1181, 0.0
        %v1286 = vmax.f32 %v1184, 0.0
        %v1287 = vmax.f32 %v1189, 0.0
        %v1288 = vmax.f32 %v1192, 0.0
        %v1289 = vmax.f32 %v1197, 0.0
        %v1290 = vmax.f32 %v1200, 0.0
        %v1291 = vmax.f32 %v1205, 0.0
        %v1292 = vmax.f32 %v1208, 0.0
        %v1293 = vmax.f32 %v1213, 0.0
        %v1294 = vmax.f32 %v1216, 0.0
        %v1295 = vmax.f32 %v1221, 0.0
        %v1296 = vmax.f32 %v1224, 0.0
        %v1297 = vmax.f32 %v1229, 0.0
        %v1298 = vmax.f32 %v1232, 0.0
        %v1299 = vmax.f32 %v1237, 0.0
        %v1300 = vmax.f32 %v1240, 0.0
        %v1301 = vmax.f32 %v1245, 0.0
        %v1302 = vmax.f32 %v1248, 0.0
        %v1303 = vmax.f32 %v1253, 0.0
        %v1304 = vmax.f32 %v1256, 0.0
        %v1305 = vmax.f32 %v1261, 0.0
        %v1306 = vmax.f32 %v1264, 0.0
        %v1307 = vmax.f32 %v1269, 0.0
        %v1308 = vmax.f32 %v1272, 0.0
        %v1309 = vmax.f32 %v1277, 0.0
        %v1310 = vmax.f32 %v1280, 0.0
        %v1311 = vadd.f32 %v969, %v1283
        %v1312 = vadd.f32 %v970, %v1284
        %v1313 = vadd.f32 %v971, %v1285
        %v1314 = vadd.f32 %v972, %v1286
        %v1315 = vadd.f32 %v973, %v1287
        %v1316 = vadd.f32 %v974, %v1288
        %v1317 = vadd.f32 %v975, %v1289
        %v1318 = vadd.f32 %v976, %v1290
        %v1319 = vadd.f32 %v977, %v1291
        %v1320 = vadd.f32 %v978, %v1292
        %v1321 = vadd.f32 %v979, %v1293
        %v1322 = vadd.f32 %v980, %v1294
        %v1323 = vadd.f32 %v981, %v1295
        %v1324 = vadd.f32 %v982, %v1296
        %v1325 = vadd.f32 %v983, %v1297
        %v1326 = vadd.f32 %v984, %v1298
        %v1327 = vadd.f32 %v985, %v1299
        %v1328 = vadd.f32 %v986, %v1300
        %v1329 = vadd.f32 %v987, %v1301
        %v1330 = vadd.f32 %v988, %v1302
        %v1331 = vadd.f32 %v989, %v1303
        %v1332 = vadd.f32 %v990, %v1304
        %v1333 = vadd.f32 %v991, %v1305
        %v1334 = vadd.f32 %v992, %v1306
        %v1335 = vadd.f32 %v993, %v1307
        %v1336 = vadd.f32 %v994, %v1308
        %v1337 = vadd.f32 %v995, %v1309
        %v1338 = vadd.f32 %v996, %v1310
        %s1339 = scalar_lea.vmem %s631, 224 [#allocation2]
        %v1340 = vld [vmem:[%s1339] sm:$0xf]
        %v1341 = vld [vmem:[%s1339 + $0x4] sm:$0xf]
        %v1342 = vld [vmem:[%s1339 + $0x8] sm:$0xf]
        %v1343 = vld [vmem:[%s1339 + $0xc] sm:$0xf]
        %v1344 = vld [vmem:[%s1339 + $0x10] sm:$0xf]
        %v1345 = vld [vmem:[%s1339 + $0x14] sm:$0xf]
        %v1346 = vld [vmem:[%s1339 + $0x18] sm:$0xf]
        %v1347 = vld [vmem:[%s1339 + $0x1c] sm:$0xf]
        %v1348 = vld [vmem:[%s1339 + $0x20] sm:$0xf]
        %v1349 = vld [vmem:[%s1339 + $0x24] sm:$0xf]
        %v1350 = vld [vmem:[%s1339 + $0x28] sm:$0xf]
        %v1351 = vld [vmem:[%s1339 + $0x2c] sm:$0xf]
        %v1352 = vld [vmem:[%s1339 + $0x30] sm:$0xf]
        %v1353 = vld [vmem:[%s1339 + $0x34] sm:$0xf]
        %v1354 = vld [vmem:[%s1339 + $0x38] sm:$0xf]
        %v1355 = vld [vmem:[%s1339 + $0x3c] sm:$0xf]
        %v1356 = vld [vmem:[%s1339 + $0x40] sm:$0xf]
        %v1357 = vld [vmem:[%s1339 + $0x44] sm:$0xf]
        %v1358 = vld [vmem:[%s1339 + $0x48] sm:$0xf]
        %v1359 = vld [vmem:[%s1339 + $0x4c] sm:$0xf]
        %v1360 = vld [vmem:[%s1339 + $0x50] sm:$0xf]
        %v1361 = vld [vmem:[%s1339 + $0x54] sm:$0xf]
        %v1362 = vld [vmem:[%s1339 + $0x58] sm:$0xf]
        %v1363 = vld [vmem:[%s1339 + $0x5c] sm:$0xf]
        %v1364 = vld [vmem:[%s1339 + $0x60] sm:$0xf]
        %v1365 = vld [vmem:[%s1339 + $0x64] sm:$0xf]
        %v1366 = vld [vmem:[%s1339 + $0x68] sm:$0xf]
        %v1367 = vld [vmem:[%s1339 + $0x6c] sm:$0xf]
        %v1396 = vunpack.c.l.b16 %v1340
        %v1397 = vunpack.c.l.b16 %v1341
        %v1398 = vunpack.c.l.b16 %v1342
        %v1399 = vunpack.c.l.b16 %v1343
        %v1400 = vunpack.c.l.b16 %v1344
        %v1401 = vunpack.c.l.b16 %v1345
        %v1402 = vunpack.c.l.b16 %v1346
        %v1403 = vunpack.c.l.b16 %v1347
        %v1404 = vunpack.c.l.b16 %v1348
        %v1405 = vunpack.c.l.b16 %v1349
        %v1406 = vunpack.c.l.b16 %v1350
        %v1407 = vunpack.c.l.b16 %v1351
        %v1408 = vunpack.c.l.b16 %v1352
        %v1409 = vunpack.c.l.b16 %v1353
        %v1410 = vunpack.c.l.b16 %v1354
        %v1411 = vunpack.c.l.b16 %v1355
        %v1412 = vunpack.c.l.b16 %v1356
        %v1413 = vunpack.c.l.b16 %v1357
        %v1414 = vunpack.c.l.b16 %v1358
        %v1415 = vunpack.c.l.b16 %v1359
        %v1416 = vunpack.c.l.b16 %v1360
        %v1417 = vunpack.c.l.b16 %v1361
        %v1418 = vunpack.c.l.b16 %v1362
        %v1419 = vunpack.c.l.b16 %v1363
        %v1420 = vunpack.c.l.b16 %v1364
        %v1421 = vunpack.c.l.b16 %v1365
        %v1422 = vunpack.c.l.b16 %v1366
        %v1423 = vunpack.c.l.b16 %v1367
        %v1424 = vpack.c.b16 %v1397, %v1396
        %v1425 = vpack.c.b16 %v1399, %v1398
        %v1426 = vpack.c.b16 %v1401, %v1400
        %v1427 = vpack.c.b16 %v1403, %v1402
        %v1428 = vpack.c.b16 %v1405, %v1404
        %v1429 = vpack.c.b16 %v1407, %v1406
        %v1430 = vpack.c.b16 %v1409, %v1408
        %v1431 = vpack.c.b16 %v1411, %v1410
        %v1432 = vpack.c.b16 %v1413, %v1412
        %v1433 = vpack.c.b16 %v1415, %v1414
        %v1434 = vpack.c.b16 %v1417, %v1416
        %v1435 = vpack.c.b16 %v1419, %v1418
        %v1436 = vpack.c.b16 %v1421, %v1420
        %v1437 = vpack.c.b16 %v1423, %v1422
        %v1439 = vsel %vm781, %v1424, 0
        %v1442 = vsel %vm781, %v1425, 0
        %v1445 = vsel %vm781, %v1426, 0
        %v1448 = vsel %vm781, %v1427, 0
        %v1451 = vsel %vm781, %v1428, 0
        %v1454 = vsel %vm781, %v1429, 0
        %v1457 = vsel %vm781, %v1430, 0
        %v1460 = vsel %vm781, %v1431, 0
        %v1463 = vsel %vm781, %v1432, 0
        %v1466 = vsel %vm781, %v1433, 0
        %v1469 = vsel %vm781, %v1434, 0
        %v1472 = vsel %vm781, %v1435, 0
        %v1475 = vsel %vm781, %v1436, 0
        %v1478 = vsel %vm781, %v1437, 0
        %1480 = vmatprep.subr.bf16.mxu0 0
        %1481 = vmatpush1.bf16.msra.mxu0 %v777
        %1482 = vmatprep.subr.bf16.mxu0 0
        %1483 = vmatpush1.bf16.msra.mxu0 %v778
        %1484 = vmatprep.subr.bf16.mxu0 0
        %1485 = vmatpush1.bf16.msra.mxu0 0
        %1486 = vmatprep.subr.bf16.mxu0 0
        %1487 = vmatpush1.bf16.msra.mxu0 0
        %1488 = vmatprep.subr.bf16.mxu0 0
        %1489 = vmatpush1.bf16.msra.mxu0 0
        %1490 = vmatprep.subr.bf16.mxu0 0
        %1491 = vmatpush1.bf16.msra.mxu0 0
        %1492 = vmatprep.subr.bf16.mxu0 0
        %1493 = vmatpush1.bf16.msra.mxu0 0
        %1494 = vmatprep.subr.bf16.mxu0 0
        %1495 = vmatpush1.bf16.msra.mxu0 0
        %1496 = vmatprep.subr.bf16.mxu0 0
        %1497 = vmatpush1.bf16.msra.mxu0 0
        %1498 = vmatprep.subr.bf16.mxu0 0
        %1499 = vmatpush1.bf16.msra.mxu0 0
        %1500 = vmatprep.subr.bf16.mxu0 0
        %1501 = vmatpush1.bf16.msra.mxu0 0
        %1502 = vmatprep.subr.bf16.mxu0 0
        %1503 = vmatpush1.bf16.msra.mxu0 0
        %1504 = vmatprep.subr.bf16.mxu0 0
        %1505 = vmatpush1.bf16.msra.mxu0 0
        %1506 = vmatprep.subr.bf16.mxu0 0
        %1507 = vmatpush1.bf16.msra.mxu0 0
        %1508 = vmatprep.subr.bf16.mxu0 0
        %1509 = vmatpush1.bf16.msra.mxu0 0
        %1510 = vmatprep.subr.bf16.mxu0 0
        %1511 = vmatpush1.bf16.msra.mxu0 0
        %1512 = vmatprep.mubr.bf16.mxu0 0
        %1513 = vmatmul.mubr.bf16.gmra.mrb[0].mxu0 %v1439
        %v1514 = vpop.f32.mrb[0].mxu0
        %v1515 = vadd.f32 %v697, %v1514
        %v1516 = vpop.f32.mrb[0].mxu0
        %v1517 = vpop.f32.mrb[0].mxu0
        %v1518 = vadd.f32 %v697, %v1517
        %v1519 = vpop.f32.mrb[0].mxu0
        %1520 = vmatprep.mubr.bf16.mxu0 0
        %1521 = vmatmul.mubr.bf16.gmra.mrb[0].mxu0 %v1442
        %v1522 = vpop.f32.mrb[0].mxu0
        %v1523 = vadd.f32 %v697, %v1522
        %v1524 = vpop.f32.mrb[0].mxu0
        %v1525 = vpop.f32.mrb[0].mxu0
        %v1526 = vadd.f32 %v697, %v1525
        %v1527 = vpop.f32.mrb[0].mxu0
        %1528 = vmatprep.mubr.bf16.mxu0 0
        %1529 = vmatmul.mubr.bf16.gmra.mrb[0].mxu0 %v1445
        %v1530 = vpop.f32.mrb[0].mxu0
        %v1531 = vadd.f32 %v697, %v1530
        %v1532 = vpop.f32.mrb[0].mxu0
        %v1533 = vpop.f32.mrb[0].mxu0
        %v1534 = vadd.f32 %v697, %v1533
        %v1535 = vpop.f32.mrb[0].mxu0
        %1536 = vmatprep.mubr.bf16.mxu0 0
        %1537 = vmatmul.mubr.bf16.gmra.mrb[0].mxu0 %v1448
        %v1538 = vpop.f32.mrb[0].mxu0
        %v1539 = vadd.f32 %v697, %v1538
        %v1540 = vpop.f32.mrb[0].mxu0
        %v1541 = vpop.f32.mrb[0].mxu0
        %v1542 = vadd.f32 %v697, %v1541
        %v1543 = vpop.f32.mrb[0].mxu0
        %1544 = vmatprep.mubr.bf16.mxu0 0
        %1545 = vmatmul.mubr.bf16.gmra.mrb[0].mxu0 %v1451
        %v1546 = vpop.f32.mrb[0].mxu0
        %v1547 = vadd.f32 %v697, %v1546
        %v1548 = vpop.f32.mrb[0].mxu0
        %v1549 = vpop.f32.mrb[0].mxu0
        %v1550 = vadd.f32 %v697, %v1549
        %v1551 = vpop.f32.mrb[0].mxu0
        %1552 = vmatprep.mubr.bf16.mxu0 0
        %1553 = vmatmul.mubr.bf16.gmra.mrb[0].mxu0 %v1454
        %v1554 = vpop.f32.mrb[0].mxu0
        %v1555 = vadd.f32 %v697, %v1554
        %v1556 = vpop.f32.mrb[0].mxu0
        %v1557 = vpop.f32.mrb[0].mxu0
        %v1558 = vadd.f32 %v697, %v1557
        %v1559 = vpop.f32.mrb[0].mxu0
        %1560 = vmatprep.mubr.bf16.mxu0 0
        %1561 = vmatmul.mubr.bf16.gmra.mrb[0].mxu0 %v1457
        %v1562 = vpop.f32.mrb[0].mxu0
        %v1563 = vadd.f32 %v697, %v1562
        %v1564 = vpop.f32.mrb[0].mxu0
        %v1565 = vpop.f32.mrb[0].mxu0
        %v1566 = vadd.f32 %v697, %v1565
        %v1567 = vpop.f32.mrb[0].mxu0
        %1568 = vmatprep.mubr.bf16.mxu0 0
        %1569 = vmatmul.mubr.bf16.gmra.mrb[0].mxu0 %v1460
        %v1570 = vpop.f32.mrb[0].mxu0
        %v1571 = vadd.f32 %v697, %v1570
        %v1572 = vpop.f32.mrb[0].mxu0
        %v1573 = vpop.f32.mrb[0].mxu0
        %v1574 = vadd.f32 %v697, %v1573
        %v1575 = vpop.f32.mrb[0].mxu0
        %1576 = vmatprep.mubr.bf16.mxu0 0
        %1577 = vmatmul.mubr.bf16.gmra.mrb[0].mxu0 %v1463
        %v1578 = vpop.f32.mrb[0].mxu0
        %v1579 = vadd.f32 %v697, %v1578
        %v1580 = vpop.f32.mrb[0].mxu0
        %v1581 = vpop.f32.mrb[0].mxu0
        %v1582 = vadd.f32 %v697, %v1581
        %v1583 = vpop.f32.mrb[0].mxu0
        %1584 = vmatprep.mubr.bf16.mxu0 0
        %1585 = vmatmul.mubr.bf16.gmra.mrb[0].mxu0 %v1466
        %v1586 = vpop.f32.mrb[0].mxu0
        %v1587 = vadd.f32 %v697, %v1586
        %v1588 = vpop.f32.mrb[0].mxu0
        %v1589 = vpop.f32.mrb[0].mxu0
        %v1590 = vadd.f32 %v697, %v1589
        %v1591 = vpop.f32.mrb[0].mxu0
        %1592 = vmatprep.mubr.bf16.mxu0 0
        %1593 = vmatmul.mubr.bf16.gmra.mrb[0].mxu0 %v1469
        %v1594 = vpop.f32.mrb[0].mxu0
        %v1595 = vadd.f32 %v697, %v1594
        %v1596 = vpop.f32.mrb[0].mxu0
        %v1597 = vpop.f32.mrb[0].mxu0
        %v1598 = vadd.f32 %v697, %v1597
        %v1599 = vpop.f32.mrb[0].mxu0
        %1600 = vmatprep.mubr.bf16.mxu0 0
        %1601 = vmatmul.mubr.bf16.gmra.mrb[0].mxu0 %v1472
        %v1602 = vpop.f32.mrb[0].mxu0
        %v1603 = vadd.f32 %v697, %v1602
        %v1604 = vpop.f32.mrb[0].mxu0
        %v1605 = vpop.f32.mrb[0].mxu0
        %v1606 = vadd.f32 %v697, %v1605
        %v1607 = vpop.f32.mrb[0].mxu0
        %1608 = vmatprep.mubr.bf16.mxu0 0
        %1609 = vmatmul.mubr.bf16.gmra.mrb[0].mxu0 %v1475
        %v1610 = vpop.f32.mrb[0].mxu0
        %v1611 = vadd.f32 %v697, %v1610
        %v1612 = vpop.f32.mrb[0].mxu0
        %v1613 = vpop.f32.mrb[0].mxu0
        %v1614 = vadd.f32 %v697, %v1613
        %v1615 = vpop.f32.mrb[0].mxu0
        %1616 = vmatprep.mubr.bf16.mxu0 0
        %1617 = vmatmul.mubr.bf16.gmra.mrb[0].mxu0 %v1478
        %v1618 = vpop.f32.mrb[0].mxu0
        %v1619 = vadd.f32 %v697, %v1618
        %v1620 = vpop.f32.mrb[0].mxu0
        %v1621 = vpop.f32.mrb[0].mxu0
        %v1622 = vadd.f32 %v697, %v1621
        %v1623 = vpop.f32.mrb[0].mxu0
        %1624 = vdwg.mxu0
        %v1625 = vmax.f32 %v1515, 0.0
        %v1626 = vmax.f32 %v1518, 0.0
        %v1627 = vmax.f32 %v1523, 0.0
        %v1628 = vmax.f32 %v1526, 0.0
        %v1629 = vmax.f32 %v1531, 0.0
        %v1630 = vmax.f32 %v1534, 0.0
        %v1631 = vmax.f32 %v1539, 0.0
        %v1632 = vmax.f32 %v1542, 0.0
        %v1633 = vmax.f32 %v1547, 0.0
        %v1634 = vmax.f32 %v1550, 0.0
        %v1635 = vmax.f32 %v1555, 0.0
        %v1636 = vmax.f32 %v1558, 0.0
        %v1637 = vmax.f32 %v1563, 0.0
        %v1638 = vmax.f32 %v1566, 0.0
        %v1639 = vmax.f32 %v1571, 0.0
        %v1640 = vmax.f32 %v1574, 0.0
        %v1641 = vmax.f32 %v1579, 0.0
        %v1642 = vmax.f32 %v1582, 0.0
        %v1643 = vmax.f32 %v1587, 0.0
        %v1644 = vmax.f32 %v1590, 0.0
        %v1645 = vmax.f32 %v1595, 0.0
        %v1646 = vmax.f32 %v1598, 0.0
        %v1647 = vmax.f32 %v1603, 0.0
        %v1648 = vmax.f32 %v1606, 0.0
        %v1649 = vmax.f32 %v1611, 0.0
        %v1650 = vmax.f32 %v1614, 0.0
        %v1651 = vmax.f32 %v1619, 0.0
        %v1652 = vmax.f32 %v1622, 0.0
        %v1653 = vadd.f32 %v1311, %v1625
        %v1654 = vadd.f32 %v1312, %v1626
        %v1655 = vadd.f32 %v1313, %v1627
        %v1656 = vadd.f32 %v1314, %v1628
        %v1657 = vadd.f32 %v1315, %v1629
        %v1658 = vadd.f32 %v1316, %v1630
        %v1659 = vadd.f32 %v1317, %v1631
        %v1660 = vadd.f32 %v1318, %v1632
        %v1661 = vadd.f32 %v1319, %v1633
        %v1662 = vadd.f32 %v1320, %v1634
        %v1663 = vadd.f32 %v1321, %v1635
        %v1664 = vadd.f32 %v1322, %v1636
        %v1665 = vadd.f32 %v1323, %v1637
        %v1666 = vadd.f32 %v1324, %v1638
        %v1667 = vadd.f32 %v1325, %v1639
        %v1668 = vadd.f32 %v1326, %v1640
        %v1669 = vadd.f32 %v1327, %v1641
        %v1670 = vadd.f32 %v1328, %v1642
        %v1671 = vadd.f32 %v1329, %v1643
        %v1672 = vadd.f32 %v1330, %v1644
        %v1673 = vadd.f32 %v1331, %v1645
        %v1674 = vadd.f32 %v1332, %v1646
        %v1675 = vadd.f32 %v1333, %v1647
        %v1676 = vadd.f32 %v1334, %v1648
        %v1677 = vadd.f32 %v1335, %v1649
        %v1678 = vadd.f32 %v1336, %v1650
        %v1679 = vadd.f32 %v1337, %v1651
        %v1680 = vadd.f32 %v1338, %v1652
        %s1681 = scalar_lea.vmem %s631, 336 [#allocation2]
        %v1682 = vld [vmem:[%s1681] sm:$0xf]
        %v1683 = vld [vmem:[%s1681 + $0x4] sm:$0xf]
        %v1684 = vld [vmem:[%s1681 + $0x8] sm:$0xf]
        %v1685 = vld [vmem:[%s1681 + $0xc] sm:$0xf]
        %v1686 = vld [vmem:[%s1681 + $0x10] sm:$0xf]
        %v1687 = vld [vmem:[%s1681 + $0x14] sm:$0xf]
        %v1688 = vld [vmem:[%s1681 + $0x18] sm:$0xf]
        %v1689 = vld [vmem:[%s1681 + $0x1c] sm:$0xf]
        %v1690 = vld [vmem:[%s1681 + $0x20] sm:$0xf]
        %v1691 = vld [vmem:[%s1681 + $0x24] sm:$0xf]
        %v1692 = vld [vmem:[%s1681 + $0x28] sm:$0xf]
        %v1693 = vld [vmem:[%s1681 + $0x2c] sm:$0xf]
        %v1694 = vld [vmem:[%s1681 + $0x30] sm:$0xf]
        %v1695 = vld [vmem:[%s1681 + $0x34] sm:$0xf]
        %v1696 = vld [vmem:[%s1681 + $0x38] sm:$0xf]
        %v1697 = vld [vmem:[%s1681 + $0x3c] sm:$0xf]
        %v1698 = vld [vmem:[%s1681 + $0x40] sm:$0xf]
        %v1699 = vld [vmem:[%s1681 + $0x44] sm:$0xf]
        %v1700 = vld [vmem:[%s1681 + $0x48] sm:$0xf]
        %v1701 = vld [vmem:[%s1681 + $0x4c] sm:$0xf]
        %v1702 = vld [vmem:[%s1681 + $0x50] sm:$0xf]
        %v1703 = vld [vmem:[%s1681 + $0x54] sm:$0xf]
        %v1704 = vld [vmem:[%s1681 + $0x58] sm:$0xf]
        %v1705 = vld [vmem:[%s1681 + $0x5c] sm:$0xf]
        %v1706 = vld [vmem:[%s1681 + $0x60] sm:$0xf]
        %v1707 = vld [vmem:[%s1681 + $0x64] sm:$0xf]
        %v1708 = vld [vmem:[%s1681 + $0x68] sm:$0xf]
        %v1709 = vld [vmem:[%s1681 + $0x6c] sm:$0xf]
        %v1738 = vunpack.c.l.b16 %v1682
        %v1739 = vunpack.c.l.b16 %v1683
        %v1740 = vunpack.c.l.b16 %v1684
        %v1741 = vunpack.c.l.b16 %v1685
        %v1742 = vunpack.c.l.b16 %v1686
        %v1743 = vunpack.c.l.b16 %v1687
        %v1744 = vunpack.c.l.b16 %v1688
        %v1745 = vunpack.c.l.b16 %v1689
        %v1746 = vunpack.c.l.b16 %v1690
        %v1747 = vunpack.c.l.b16 %v1691
        %v1748 = vunpack.c.l.b16 %v1692
        %v1749 = vunpack.c.l.b16 %v1693
        %v1750 = vunpack.c.l.b16 %v1694
        %v1751 = vunpack.c.l.b16 %v1695
        %v1752 = vunpack.c.l.b16 %v1696
        %v1753 = vunpack.c.l.b16 %v1697
        %v1754 = vunpack.c.l.b16 %v1698
        %v1755 = vunpack.c.l.b16 %v1699
        %v1756 = vunpack.c.l.b16 %v1700
        %v1757 = vunpack.c.l.b16 %v1701
        %v1758 = vunpack.c.l.b16 %v1702
        %v1759 = vunpack.c.l.b16 %v1703
        %v1760 = vunpack.c.l.b16 %v1704
        %v1761 = vunpack.c.l.b16 %v1705
        %v1762 = vunpack.c.l.b16 %v1706
        %v1763 = vunpack.c.l.b16 %v1707
        %v1764 = vunpack.c.l.b16 %v1708
        %v1765 = vunpack.c.l.b16 %v1709
        %v1766 = vpack.c.b16 %v1739, %v1738
        %v1767 = vpack.c.b16 %v1741, %v1740
        %v1768 = vpack.c.b16 %v1743, %v1742
        %v1769 = vpack.c.b16 %v1745, %v1744
        %v1770 = vpack.c.b16 %v1747, %v1746
        %v1771 = vpack.c.b16 %v1749, %v1748
        %v1772 = vpack.c.b16 %v1751, %v1750
        %v1773 = vpack.c.b16 %v1753, %v1752
        %v1774 = vpack.c.b16 %v1755, %v1754
        %v1775 = vpack.c.b16 %v1757, %v1756
        %v1776 = vpack.c.b16 %v1759, %v1758
        %v1777 = vpack.c.b16 %v1761, %v1760
        %v1778 = vpack.c.b16 %v1763, %v1762
        %v1779 = vpack.c.b16 %v1765, %v1764
        %v1781 = vsel %vm781, %v1766, 0
        %v1784 = vsel %vm781, %v1767, 0
        %v1787 = vsel %vm781, %v1768, 0
        %v1790 = vsel %vm781, %v1769, 0
        %v1793 = vsel %vm781, %v1770, 0
        %v1796 = vsel %vm781, %v1771, 0
        %v1799 = vsel %vm781, %v1772, 0
        %v1802 = vsel %vm781, %v1773, 0
        %v1805 = vsel %vm781, %v1774, 0
        %v1808 = vsel %vm781, %v1775, 0
        %v1811 = vsel %vm781, %v1776, 0
        %v1814 = vsel %vm781, %v1777, 0
        %v1817 = vsel %vm781, %v1778, 0
        %v1820 = vsel %vm781, %v1779, 0
        %1822 = vmatprep.subr.bf16.mxu0 0
        %1823 = vmatpush1.bf16.msra.mxu0 %v777
        %1824 = vmatprep.subr.bf16.mxu0 0
        %1825 = vmatpush1.bf16.msra.mxu0 %v778
        %1826 = vmatprep.subr.bf16.mxu0 0
        %1827 = vmatpush1.bf16.msra.mxu0 0
        %1828 = vmatprep.subr.bf16.mxu0 0
        %1829 = vmatpush1.bf16.msra.mxu0 0
        %1830 = vmatprep.subr.bf16.mxu0 0
        %1831 = vmatpush1.bf16.msra.mxu0 0
        %1832 = vmatprep.subr.bf16.mxu0 0
        %1833 = vmatpush1.bf16.msra.mxu0 0
        %1834 = vmatprep.subr.bf16.mxu0 0
        %1835 = vmatpush1.bf16.msra.mxu0 0
        %1836 = vmatprep.subr.bf16.mxu0 0
        %1837 = vmatpush1.bf16.msra.mxu0 0
        %1838 = vmatprep.subr.bf16.mxu0 0
        %1839 = vmatpush1.bf16.msra.mxu0 0
        %1840 = vmatprep.subr.bf16.mxu0 0
        %1841 = vmatpush1.bf16.msra.mxu0 0
        %1842 = vmatprep.subr.bf16.mxu0 0
        %1843 = vmatpush1.bf16.msra.mxu0 0
        %1844 = vmatprep.subr.bf16.mxu0 0
        %1845 = vmatpush1.bf16.msra.mxu0 0
        %1846 = vmatprep.subr.bf16.mxu0 0
        %1847 = vmatpush1.bf16.msra.mxu0 0
        %1848 = vmatprep.subr.bf16.mxu0 0
        %1849 = vmatpush1.bf16.msra.mxu0 0
        %1850 = vmatprep.subr.bf16.mxu0 0
        %1851 = vmatpush1.bf16.msra.mxu0 0
        %1852 = vmatprep.subr.bf16.mxu0 0
        %1853 = vmatpush1.bf16.msra.mxu0 0
        %1854 = vmatprep.mubr.bf16.mxu0 0
        %1855 = vmatmul.mubr.bf16.gmra.mrb[0].mxu0 %v1781
        %v1856 = vpop.f32.mrb[0].mxu0
        %v1857 = vadd.f32 %v697, %v1856
        %v1858 = vpop.f32.mrb[0].mxu0
        %v1859 = vpop.f32.mrb[0].mxu0
        %v1860 = vadd.f32 %v697, %v1859
        %v1861 = vpop.f32.mrb[0].mxu0
        %1862 = vmatprep.mubr.bf16.mxu0 0
        %1863 = vmatmul.mubr.bf16.gmra.mrb[0].mxu0 %v1784
        %v1864 = vpop.f32.mrb[0].mxu0
        %v1865 = vadd.f32 %v697, %v1864
        %v1866 = vpop.f32.mrb[0].mxu0
        %v1867 = vpop.f32.mrb[0].mxu0
        %v1868 = vadd.f32 %v697, %v1867
        %v1869 = vpop.f32.mrb[0].mxu0
        %1870 = vmatprep.mubr.bf16.mxu0 0
        %1871 = vmatmul.mubr.bf16.gmra.mrb[0].mxu0 %v1787
        %v1872 = vpop.f32.mrb[0].mxu0
        %v1873 = vadd.f32 %v697, %v1872
        %v1874 = vpop.f32.mrb[0].mxu0
        %v1875 = vpop.f32.mrb[0].mxu0
        %v1876 = vadd.f32 %v697, %v1875
        %v1877 = vpop.f32.mrb[0].mxu0
        %1878 = vmatprep.mubr.bf16.mxu0 0
        %1879 = vmatmul.mubr.bf16.gmra.mrb[0].mxu0 %v1790
        %v1880 = vpop.f32.mrb[0].mxu0
        %v1881 = vadd.f32 %v697, %v1880
        %v1882 = vpop.f32.mrb[0].mxu0
        %v1883 = vpop.f32.mrb[0].mxu0
        %v1884 = vadd.f32 %v697, %v1883
        %v1885 = vpop.f32.mrb[0].mxu0
        %1886 = vmatprep.mubr.bf16.mxu0 0
        %1887 = vmatmul.mubr.bf16.gmra.mrb[0].mxu0 %v1793
        %v1888 = vpop.f32.mrb[0].mxu0
        %v1889 = vadd.f32 %v697, %v1888
        %v1890 = vpop.f32.mrb[0].mxu0
        %v1891 = vpop.f32.mrb[0].mxu0
        %v1892 = vadd.f32 %v697, %v1891
        %v1893 = vpop.f32.mrb[0].mxu0
        %1894 = vmatprep.mubr.bf16.mxu0 0
        %1895 = vmatmul.mubr.bf16.gmra.mrb[0].mxu0 %v1796
        %v1896 = vpop.f32.mrb[0].mxu0
        %v1897 = vadd.f32 %v697, %v1896
        %v1898 = vpop.f32.mrb[0].mxu0
        %v1899 = vpop.f32.mrb[0].mxu0
        %v1900 = vadd.f32 %v697, %v1899
        %v1901 = vpop.f32.mrb[0].mxu0
        %1902 = vmatprep.mubr.bf16.mxu0 0
        %1903 = vmatmul.mubr.bf16.gmra.mrb[0].mxu0 %v1799
        %v1904 = vpop.f32.mrb[0].mxu0
        %v1905 = vadd.f32 %v697, %v1904
        %v1906 = vpop.f32.mrb[0].mxu0
        %v1907 = vpop.f32.mrb[0].mxu0
        %v1908 = vadd.f32 %v697, %v1907
        %v1909 = vpop.f32.mrb[0].mxu0
        %1910 = vmatprep.mubr.bf16.mxu0 0
        %1911 = vmatmul.mubr.bf16.gmra.mrb[0].mxu0 %v1802
        %v1912 = vpop.f32.mrb[0].mxu0
        %v1913 = vadd.f32 %v697, %v1912
        %v1914 = vpop.f32.mrb[0].mxu0
        %v1915 = vpop.f32.mrb[0].mxu0
        %v1916 = vadd.f32 %v697, %v1915
        %v1917 = vpop.f32.mrb[0].mxu0
        %1918 = vmatprep.mubr.bf16.mxu0 0
        %1919 = vmatmul.mubr.bf16.gmra.mrb[0].mxu0 %v1805
        %v1920 = vpop.f32.mrb[0].mxu0
        %v1921 = vadd.f32 %v697, %v1920
        %v1922 = vpop.f32.mrb[0].mxu0
        %v1923 = vpop.f32.mrb[0].mxu0
        %v1924 = vadd.f32 %v697, %v1923
        %v1925 = vpop.f32.mrb[0].mxu0
        %1926 = vmatprep.mubr.bf16.mxu0 0
        %1927 = vmatmul.mubr.bf16.gmra.mrb[0].mxu0 %v1808
        %v1928 = vpop.f32.mrb[0].mxu0
        %v1929 = vadd.f32 %v697, %v1928
        %v1930 = vpop.f32.mrb[0].mxu0
        %v1931 = vpop.f32.mrb[0].mxu0
        %v1932 = vadd.f32 %v697, %v1931
        %v1933 = vpop.f32.mrb[0].mxu0
        %1934 = vmatprep.mubr.bf16.mxu0 0
        %1935 = vmatmul.mubr.bf16.gmra.mrb[0].mxu0 %v1811
        %v1936 = vpop.f32.mrb[0].mxu0
        %v1937 = vadd.f32 %v697, %v1936
        %v1938 = vpop.f32.mrb[0].mxu0
        %v1939 = vpop.f32.mrb[0].mxu0
        %v1940 = vadd.f32 %v697, %v1939
        %v1941 = vpop.f32.mrb[0].mxu0
        %1942 = vmatprep.mubr.bf16.mxu0 0
        %1943 = vmatmul.mubr.bf16.gmra.mrb[0].mxu0 %v1814
        %v1944 = vpop.f32.mrb[0].mxu0
        %v1945 = vadd.f32 %v697, %v1944
        %v1946 = vpop.f32.mrb[0].mxu0
        %v1947 = vpop.f32.mrb[0].mxu0
        %v1948 = vadd.f32 %v697, %v1947
        %v1949 = vpop.f32.mrb[0].mxu0
        %1950 = vmatprep.mubr.bf16.mxu0 0
        %1951 = vmatmul.mubr.bf16.gmra.mrb[0].mxu0 %v1817
        %v1952 = vpop.f32.mrb[0].mxu0
        %v1953 = vadd.f32 %v697, %v1952
        %v1954 = vpop.f32.mrb[0].mxu0
        %v1955 = vpop.f32.mrb[0].mxu0
        %v1956 = vadd.f32 %v697, %v1955
        %v1957 = vpop.f32.mrb[0].mxu0
        %1958 = vmatprep.mubr.bf16.mxu0 0
        %1959 = vmatmul.mubr.bf16.gmra.mrb[0].mxu0 %v1820
        %v1960 = vpop.f32.mrb[0].mxu0
        %v1961 = vadd.f32 %v697, %v1960
        %v1962 = vpop.f32.mrb[0].mxu0
        %v1963 = vpop.f32.mrb[0].mxu0
        %v1964 = vadd.f32 %v697, %v1963
        %v1965 = vpop.f32.mrb[0].mxu0
        %1966 = vdwg.mxu0
        %v1967 = vmax.f32 %v1857, 0.0
        %v1968 = vmax.f32 %v1860, 0.0
        %v1969 = vmax.f32 %v1865, 0.0
        %v1970 = vmax.f32 %v1868, 0.0
        %v1971 = vmax.f32 %v1873, 0.0
        %v1972 = vmax.f32 %v1876, 0.0
        %v1973 = vmax.f32 %v1881, 0.0
        %v1974 = vmax.f32 %v1884, 0.0
        %v1975 = vmax.f32 %v1889, 0.0
        %v1976 = vmax.f32 %v1892, 0.0
        %v1977 = vmax.f32 %v1897, 0.0
        %v1978 = vmax.f32 %v1900, 0.0
        %v1979 = vmax.f32 %v1905, 0.0
        %v1980 = vmax.f32 %v1908, 0.0
        %v1981 = vmax.f32 %v1913, 0.0
        %v1982 = vmax.f32 %v1916, 0.0
        %v1983 = vmax.f32 %v1921, 0.0
        %v1984 = vmax.f32 %v1924, 0.0
        %v1985 = vmax.f32 %v1929, 0.0
        %v1986 = vmax.f32 %v1932, 0.0
        %v1987 = vmax.f32 %v1937, 0.0
        %v1988 = vmax.f32 %v1940, 0.0
        %v1989 = vmax.f32 %v1945, 0.0
        %v1990 = vmax.f32 %v1948, 0.0
        %v1991 = vmax.f32 %v1953, 0.0
        %v1992 = vmax.f32 %v1956, 0.0
        %v1993 = vmax.f32 %v1961, 0.0
        %v1994 = vmax.f32 %v1964, 0.0
        %v1995 = vadd.f32 %v1653, %v1967
        %v1996 = vadd.f32 %v1654, %v1968
        %v1997 = vadd.f32 %v1655, %v1969
        %v1998 = vadd.f32 %v1656, %v1970
        %v1999 = vadd.f32 %v1657, %v1971
        %v2000 = vadd.f32 %v1658, %v1972
        %v2001 = vadd.f32 %v1659, %v1973
        %v2002 = vadd.f32 %v1660, %v1974
        %v2003 = vadd.f32 %v1661, %v1975
        %v2004 = vadd.f32 %v1662, %v1976
        %v2005 = vadd.f32 %v1663, %v1977
        %v2006 = vadd.f32 %v1664, %v1978
        %v2007 = vadd.f32 %v1665, %v1979
        %v2008 = vadd.f32 %v1666, %v1980
        %v2009 = vadd.f32 %v1667, %v1981
        %v2010 = vadd.f32 %v1668, %v1982
        %v2011 = vadd.f32 %v1669, %v1983
        %v2012 = vadd.f32 %v1670, %v1984
        %v2013 = vadd.f32 %v1671, %v1985
        %v2014 = vadd.f32 %v1672, %v1986
        %v2015 = vadd.f32 %v1673, %v1987
        %v2016 = vadd.f32 %v1674, %v1988
        %v2017 = vadd.f32 %v1675, %v1989
        %v2018 = vadd.f32 %v1676, %v1990
        %v2019 = vadd.f32 %v1677, %v1991
        %v2020 = vadd.f32 %v1678, %v1992
        %v2021 = vadd.f32 %v1679, %v1993
        %v2022 = vadd.f32 %v1680, %v1994
        %v2023 = vmul.f32 %v1995, 0.25
        %v2024 = vmul.f32 %v1996, 0.25
        %v2025 = vmul.f32 %v1997, 0.25
        %v2026 = vmul.f32 %v1998, 0.25
        %v2027 = vmul.f32 %v1999, 0.25
        %v2028 = vmul.f32 %v2000, 0.25
        %v2029 = vmul.f32 %v2001, 0.25
        %v2030 = vmul.f32 %v2002, 0.25
        %v2031 = vmul.f32 %v2003, 0.25
        %v2032 = vmul.f32 %v2004, 0.25
        %v2033 = vmul.f32 %v2005, 0.25
        %v2034 = vmul.f32 %v2006, 0.25
        %v2035 = vmul.f32 %v2007, 0.25
        %v2036 = vmul.f32 %v2008, 0.25
        %v2037 = vmul.f32 %v2009, 0.25
        %v2038 = vmul.f32 %v2010, 0.25
        %v2039 = vmul.f32 %v2011, 0.25
        %v2040 = vmul.f32 %v2012, 0.25
        %v2041 = vmul.f32 %v2013, 0.25
        %v2042 = vmul.f32 %v2014, 0.25
        %v2043 = vmul.f32 %v2015, 0.25
        %v2044 = vmul.f32 %v2016, 0.25
        %v2045 = vmul.f32 %v2017, 0.25
        %v2046 = vmul.f32 %v2018, 0.25
        %v2047 = vmul.f32 %v2019, 0.25
        %v2048 = vmul.f32 %v2020, 0.25
        %v2049 = vmul.f32 %v2021, 0.25
        %v2050 = vmul.f32 %v2022, 0.25
        %v2051 = vpack.c.bf16 %v2024, %v2023
        %v2052 = vpack.c.bf16 %v2026, %v2025
        %v2053 = vpack.c.bf16 %v2028, %v2027
        %v2054 = vpack.c.bf16 %v2030, %v2029
        %v2055 = vpack.c.bf16 %v2032, %v2031
        %v2056 = vpack.c.bf16 %v2034, %v2033
        %v2057 = vpack.c.bf16 %v2036, %v2035
        %v2058 = vpack.c.bf16 %v2038, %v2037
        %v2059 = vpack.c.bf16 %v2040, %v2039
        %v2060 = vpack.c.bf16 %v2042, %v2041
        %v2061 = vpack.c.bf16 %v2044, %v2043
        %v2062 = vpack.c.bf16 %v2046, %v2045
        %v2063 = vpack.c.bf16 %v2048, %v2047
        %v2064 = vpack.c.bf16 %v2050, %v2049
        %v2079 = vunpack.c.l.b16 %v2051
        %v2080 = vunpack.c.h.b16 %v2051
        %v2081 = vunpack.c.l.b16 %v2052
        %v2082 = vunpack.c.h.b16 %v2052
        %v2083 = vunpack.c.l.b16 %v2053
        %v2084 = vunpack.c.h.b16 %v2053
        %v2085 = vunpack.c.l.b16 %v2054
        %v2086 = vunpack.c.h.b16 %v2054
        %v2087 = vunpack.c.l.b16 %v2055
        %v2088 = vunpack.c.h.b16 %v2055
        %v2089 = vunpack.c.l.b16 %v2056
        %v2090 = vunpack.c.h.b16 %v2056
        %v2091 = vunpack.c.l.b16 %v2057
        %v2092 = vunpack.c.h.b16 %v2057
        %v2093 = vunpack.c.l.b16 %v2058
        %v2094 = vunpack.c.h.b16 %v2058
        %v2095 = vunpack.c.l.b16 %v2059
        %v2096 = vunpack.c.h.b16 %v2059
        %v2097 = vunpack.c.l.b16 %v2060
        %v2098 = vunpack.c.h.b16 %v2060
        %v2099 = vunpack.c.l.b16 %v2061
        %v2100 = vunpack.c.h.b16 %v2061
        %v2101 = vunpack.c.l.b16 %v2062
        %v2102 = vunpack.c.h.b16 %v2062
        %v2103 = vunpack.c.l.b16 %v2063
        %v2104 = vunpack.c.h.b16 %v2063
        %v2105 = vunpack.c.l.b16 %v2064
        %v2106 = vunpack.c.h.b16 %v2064
        %v2107 = vpack.c.b16 %v2079, %v2079
        %v2108 = vpack.c.b16 %v2080, %v2080
        %v2109 = vpack.c.b16 %v2081, %v2081
        %v2110 = vpack.c.b16 %v2082, %v2082
        %v2111 = vpack.c.b16 %v2083, %v2083
        %v2112 = vpack.c.b16 %v2084, %v2084
        %v2113 = vpack.c.b16 %v2085, %v2085
        %v2114 = vpack.c.b16 %v2086, %v2086
        %v2115 = vpack.c.b16 %v2087, %v2087
        %v2116 = vpack.c.b16 %v2088, %v2088
        %v2117 = vpack.c.b16 %v2089, %v2089
        %v2118 = vpack.c.b16 %v2090, %v2090
        %v2119 = vpack.c.b16 %v2091, %v2091
        %v2120 = vpack.c.b16 %v2092, %v2092
        %v2121 = vpack.c.b16 %v2093, %v2093
        %v2122 = vpack.c.b16 %v2094, %v2094
        %v2123 = vpack.c.b16 %v2095, %v2095
        %v2124 = vpack.c.b16 %v2096, %v2096
        %v2125 = vpack.c.b16 %v2097, %v2097
        %v2126 = vpack.c.b16 %v2098, %v2098
        %v2127 = vpack.c.b16 %v2099, %v2099
        %v2128 = vpack.c.b16 %v2100, %v2100
        %v2129 = vpack.c.b16 %v2101, %v2101
        %v2130 = vpack.c.b16 %v2102, %v2102
        %v2131 = vpack.c.b16 %v2103, %v2103
        %v2132 = vpack.c.b16 %v2104, %v2104
        %v2133 = vpack.c.b16 %v2105, %v2105
        %v2134 = vpack.c.b16 %v2106, %v2106
        %vm2163 = vcmask 44032
        %2164 = vst.msk [vmem:[%s657] sm:$0xf] %vm2163, %v2107
        %2165 = vst.msk [vmem:[%s657 + $0x4] sm:$0xf] %vm2163, %v2108
        %2166 = vst.msk [vmem:[%s657 + $0x8] sm:$0xf] %vm2163, %v2109
        %2167 = vst.msk [vmem:[%s657 + $0xc] sm:$0xf] %vm2163, %v2110
        %2168 = vst.msk [vmem:[%s657 + $0x10] sm:$0xf] %vm2163, %v2111
        %2169 = vst.msk [vmem:[%s657 + $0x14] sm:$0xf] %vm2163, %v2112
        %2170 = vst.msk [vmem:[%s657 + $0x18] sm:$0xf] %vm2163, %v2113
        %2171 = vst.msk [vmem:[%s657 + $0x1c] sm:$0xf] %vm2163, %v2114
        %2172 = vst.msk [vmem:[%s657 + $0x20] sm:$0xf] %vm2163, %v2115
        %2173 = vst.msk [vmem:[%s657 + $0x24] sm:$0xf] %vm2163, %v2116
        %2174 = vst.msk [vmem:[%s657 + $0x28] sm:$0xf] %vm2163, %v2117
        %2175 = vst.msk [vmem:[%s657 + $0x2c] sm:$0xf] %vm2163, %v2118
        %2176 = vst.msk [vmem:[%s657 + $0x30] sm:$0xf] %vm2163, %v2119
        %2177 = vst.msk [vmem:[%s657 + $0x34] sm:$0xf] %vm2163, %v2120
        %2178 = vst.msk [vmem:[%s657 + $0x38] sm:$0xf] %vm2163, %v2121
        %2179 = vst.msk [vmem:[%s657 + $0x3c] sm:$0xf] %vm2163, %v2122
        %2180 = vst.msk [vmem:[%s657 + $0x40] sm:$0xf] %vm2163, %v2123
        %2181 = vst.msk [vmem:[%s657 + $0x44] sm:$0xf] %vm2163, %v2124
        %2182 = vst.msk [vmem:[%s657 + $0x48] sm:$0xf] %vm2163, %v2125
        %2183 = vst.msk [vmem:[%s657 + $0x4c] sm:$0xf] %vm2163, %v2126
        %2184 = vst.msk [vmem:[%s657 + $0x50] sm:$0xf] %vm2163, %v2127
        %2185 = vst.msk [vmem:[%s657 + $0x54] sm:$0xf] %vm2163, %v2128
        %2186 = vst.msk [vmem:[%s657 + $0x58] sm:$0xf] %vm2163, %v2129
        %2187 = vst.msk [vmem:[%s657 + $0x5c] sm:$0xf] %vm2163, %v2130
        %2188 = vst.msk [vmem:[%s657 + $0x60] sm:$0xf] %vm2163, %v2131
        %2189 = vst.msk [vmem:[%s657 + $0x64] sm:$0xf] %vm2163, %v2132
        %2190 = vst.msk [vmem:[%s657 + $0x68] sm:$0xf] %vm2163, %v2133
        %2191 = vst.msk [vmem:[%s657 + $0x6c] sm:$0xf] %vm2163, %v2134
        %s2192 = smul.u32 28, %s14
        %p2193 = scmp.lt.s32.totalorder %s2192, 55
        %s2194 = scalar_select %p2193, %s2192, 55
        %s2195 = smul.addr %s2194, 4
        %s2196 = scalar_lea.vmem %s3, %s2195
        // Predicated region
        $region74: #{lenet5_forward.2} parent=68 // pred_check
          %p2197 = pneg %p100
        $region75: #{lenet5_forward.2} parent=68 // pred_check_branch
          %2199 = sbr.rel (%p2197) target = $region77
        $region76: #{lenet5_forward.2} parent=68 // pred_region
          %s2200 = smul.u32 28, %s14
        $region77: #{lenet5_forward.2} parent=68 // pred_fallthru
          _
      $region69: #{lenet5_forward.2} parent=5 // pred_fallthru
        _
      %p2201 = scmp.le.s32.totalorder 2, %s9
      // Predicated region
      $region78: #{lenet5_forward.2} parent=5 // pred_check
        %p2202 = pneg %p2201
      $region79: #{lenet5_forward.2} parent=5 // pred_check_branch
        %2204 = sbr.rel (%p2202) target = $region81
      $region80: #{lenet5_forward.2} parent=5 // pred_region
        %s2205 = ssub.s32 %s9, 2
        // Predicated region
        $region82: #{lenet5_forward.2} parent=80 // pred_check
          %p2206 = pneg %p106
        $region83: #{lenet5_forward.2} parent=80 // pred_check_branch
          %2208 = sbr.rel (%p2206) target = $region85
        $region84: #{lenet5_forward.2} parent=80 // pred_region
          %s2209 = smul.u32 28, %s15
          %p2210 = scmp.lt.s32.totalorder %s2209, 55
          %s2211 = scalar_select %p2210, %s2209, 55
          %s2212 = smul.addr %s2211, 4
          %s2213 = scalar_lea.vmem %s3, %s2212
        $region85: #{lenet5_forward.2} parent=80 // pred_fallthru
          _
      $region81: #{lenet5_forward.2} parent=5 // pred_fallthru
        _
    $region6: #{lenet5_forward.2} parent=1 // loop_footer
      %s13 = sadd.s32 1, %s9
    $region7: #{lenet5_forward.2} parent=1 // loop_footer_branch
      %8 = sbr.rel target = $region3
    $region8: #{lenet5_forward.2} parent=1 // loop_exit
      _

// kernel: lenet5_forward.3
$region0: #{lenet5_forward.3}
  #allocation0 [shape = 'u32[]', space=smem, size = 0x4, offset = 0x4, fixed_abs, tag = 'smem constant byte address 0x4 - core index']
  #allocation1 [shape = 'u32[144,128]{1,0:T(1,128)}', space=vmem, size = 0x12000, scoped, tag = 'internal scratch']
  %s0 = inlined_call_operand.vmem [shape: bf16[800,160], index: 0, kind: input, shape index: {}]
  %s1 = inlined_call_operand.vmem [shape: bf16[160,16], index: 1, kind: input, shape index: {}]
  %s2 = inlined_call_operand.vmem [shape: f32[1,16], index: 2, kind: input, shape index: {}]
  %s3 = inlined_call_operand.vmem [shape: bf16[400,128], index: 3, kind: input, shape index: {}]
  %s4 = inlined_call_operand.vmem [shape: f32[1,128], index: 4, kind: input, shape index: {}]
  %s5 = inlined_call_operand.vmem [shape: bf16[128,128], index: 5, kind: input, shape index: {}]
  %s6 = inlined_call_operand.vmem [shape: f32[1,128], index: 6, kind: input, shape index: {}]
  %s7 = inlined_call_operand.vmem [shape: bf16[128,128], index: 7, kind: input, shape index: {}]
  %s8 = inlined_call_operand.vmem [shape: f32[1,128], index: 8, kind: input, shape index: {}]
  %s9 = inlined_call_operand.vmem [shape: f32[8,128], index: 9, kind: output, shape index: {}]
  %s10 = sld [smem:[#allocation0]]
  $region46: #{lenet5_forward.3} parent=0
    _
  %s12 = ssub.s32 1, %s10
  %s13 = scalar_select 0, %s12, %s10
  // Predicated region
  $region2: #{lenet5_forward.3} parent=0 // pred_check
    _
  $region3: #{lenet5_forward.3} parent=0 // pred_check_branch
    %15 = sbr.rel (0) target = $region5
  $region4: #{lenet5_forward.3} parent=0 // pred_region
    _
  $region5: #{lenet5_forward.3} parent=0 // pred_fallthru
    _
  // Predicated region
  $region6: #{lenet5_forward.3} parent=0 // pred_check
    _
  $region7: #{lenet5_forward.3} parent=0 // pred_check_branch
    %17 = sbr.rel (0) target = $region9
  $region8: #{lenet5_forward.3} parent=0 // pred_region
    _
  $region9: #{lenet5_forward.3} parent=0 // pred_fallthru
    _
  // Predicated region
  $region10: #{lenet5_forward.3} parent=0 // pred_check
    _
  $region11: #{lenet5_forward.3} parent=0 // pred_check_branch
    %19 = sbr.rel (0) target = $region13
  $region12: #{lenet5_forward.3} parent=0 // pred_region
    _
  $region13: #{lenet5_forward.3} parent=0 // pred_fallthru
    _
  // Predicated region
  $region14: #{lenet5_forward.3} parent=0 // pred_check
    _
  $region15: #{lenet5_forward.3} parent=0 // pred_check_branch
    %21 = sbr.rel (0) target = $region17
  $region16: #{lenet5_forward.3} parent=0 // pred_region
    _
  $region17: #{lenet5_forward.3} parent=0 // pred_fallthru
    _
  // Predicated region
  $region18: #{lenet5_forward.3} parent=0 // pred_check
    _
  $region19: #{lenet5_forward.3} parent=0 // pred_check_branch
    %23 = sbr.rel (0) target = $region21
  $region20: #{lenet5_forward.3} parent=0 // pred_region
    _
  $region21: #{lenet5_forward.3} parent=0 // pred_fallthru
    _
  // Predicated region
  $region22: #{lenet5_forward.3} parent=0 // pred_check
    _
  $region23: #{lenet5_forward.3} parent=0 // pred_check_branch
    %25 = sbr.rel (0) target = $region25
  $region24: #{lenet5_forward.3} parent=0 // pred_region
    _
  $region25: #{lenet5_forward.3} parent=0 // pred_fallthru
    _
  // Predicated region
  $region26: #{lenet5_forward.3} parent=0 // pred_check
    _
  $region27: #{lenet5_forward.3} parent=0 // pred_check_branch
    %27 = sbr.rel (0) target = $region29
  $region28: #{lenet5_forward.3} parent=0 // pred_region
    _
  $region29: #{lenet5_forward.3} parent=0 // pred_fallthru
    _
  // Predicated region
  $region30: #{lenet5_forward.3} parent=0 // pred_check
    _
  $region31: #{lenet5_forward.3} parent=0 // pred_check_branch
    %29 = sbr.rel (0) target = $region33
  $region32: #{lenet5_forward.3} parent=0 // pred_region
    _
  $region33: #{lenet5_forward.3} parent=0 // pred_fallthru
    _
  // Predicated region
  $region34: #{lenet5_forward.3} parent=0 // pred_check
    _
  $region35: #{lenet5_forward.3} parent=0 // pred_check_branch
    %31 = sbr.rel (0) target = $region37
  $region36: #{lenet5_forward.3} parent=0 // pred_region
    _
  $region37: #{lenet5_forward.3} parent=0 // pred_fallthru
    _
  %v33 = vld [vmem:[%s0] sm:$0xff]
  %v34 = vld [vmem:[%s0 + $0x8] sm:$0xff]
  %v35 = vld [vmem:[%s0 + $0x10] sm:$0xff]
  %v36 = vld [vmem:[%s0 + $0x18] sm:$0xff]
  %v37 = vld [vmem:[%s0 + $0x20] sm:$0xff]
  %v38 = vld [vmem:[%s0 + $0x28] sm:$0xff]
  %v39 = vld [vmem:[%s0 + $0x30] sm:$0xff]
  %v40 = vld [vmem:[%s0 + $0x38] sm:$0xff]
  %v41 = vld [vmem:[%s0 + $0x40] sm:$0xff]
  %v42 = vld [vmem:[%s0 + $0x48] sm:$0xff]
  %v43 = vld [vmem:[%s0 + $0x50] sm:$0xff]
  %v44 = vld [vmem:[%s0 + $0x58] sm:$0xff]
  %v45 = vld [vmem:[%s0 + $0x60] sm:$0xff]
  %v46 = vld [vmem:[%s0 + $0x68] sm:$0xff]
  %v47 = vld [vmem:[%s0 + $0x70] sm:$0xff]
  %v48 = vld [vmem:[%s0 + $0x78] sm:$0xff]
  %v49 = vld [vmem:[%s0 + $0x80] sm:$0xff]
  %v50 = vld [vmem:[%s0 + $0x88] sm:$0xff]
  %v51 = vld [vmem:[%s0 + $0x90] sm:$0xff]
  %v52 = vld [vmem:[%s0 + $0x98] sm:$0xff]
  %v53 = vld [vmem:[%s0 + $0xa0] sm:$0xff]
  %v54 = vld [vmem:[%s0 + $0xa8] sm:$0xff]
  %v55 = vld [vmem:[%s0 + $0xb0] sm:$0xff]
  %v56 = vld [vmem:[%s0 + $0xb8] sm:$0xff]
  %v57 = vld [vmem:[%s0 + $0xc0] sm:$0xff]
  %v58 = vld [vmem:[%s0 + $0xc8] sm:$0xff]
  %v59 = vld [vmem:[%s0 + $0xd0] sm:$0xff]
  %v60 = vld [vmem:[%s0 + $0xd8] sm:$0xff]
  %v61 = vld [vmem:[%s0 + $0xe0] sm:$0xff]
  %v62 = vld [vmem:[%s0 + $0xe8] sm:$0xff]
  %v63 = vld [vmem:[%s0 + $0xf0] sm:$0xff]
  %v64 = vld [vmem:[%s0 + $0xf8] sm:$0xff]
  %v65 = vld [vmem:[%s0 + $0x100] sm:$0xff]
  %v66 = vld [vmem:[%s0 + $0x108] sm:$0xff]
  %v67 = vld [vmem:[%s0 + $0x110] sm:$0xff]
  %v68 = vld [vmem:[%s0 + $0x118] sm:$0xff]
  %v69 = vld [vmem:[%s0 + $0x120] sm:$0xff]
  %v70 = vld [vmem:[%s0 + $0x128] sm:$0xff]
  %v71 = vld [vmem:[%s0 + $0x130] sm:$0xff]
  %v72 = vld [vmem:[%s0 + $0x138] sm:$0xff]
  %v73 = vld [vmem:[%s0 + $0x140] sm:$0xff]
  %v74 = vld [vmem:[%s0 + $0x148] sm:$0xff]
  %v75 = vld [vmem:[%s0 + $0x150] sm:$0xff]
  %v76 = vld [vmem:[%s0 + $0x158] sm:$0xff]
  %v77 = vld [vmem:[%s0 + $0x160] sm:$0xff]
  %v78 = vld [vmem:[%s0 + $0x168] sm:$0xff]
  %v79 = vld [vmem:[%s0 + $0x170] sm:$0xff]
  %v80 = vld [vmem:[%s0 + $0x178] sm:$0xff]
  %v81 = vld [vmem:[%s0 + $0x180] sm:$0xff]
  %v82 = vld [vmem:[%s0 + $0x188] sm:$0xff]
  %v83 = vld [vmem:[%s0 + $0x190] sm:$0xff]
  %v84 = vld [vmem:[%s0 + $0x198] sm:$0xff]
  %v85 = vld [vmem:[%s0 + $0x1a0] sm:$0xff]
  %v86 = vld [vmem:[%s0 + $0x1a8] sm:$0xff]
  %v87 = vld [vmem:[%s0 + $0x1b0] sm:$0xff]
  %v88 = vld [vmem:[%s0 + $0x1b8] sm:$0xff]
  %v89 = vld [vmem:[%s0 + $0x1c0] sm:$0xff]
  %v90 = vld [vmem:[%s0 + $0x1c8] sm:$0xff]
  %v91 = vld [vmem:[%s0 + $0x1d0] sm:$0xff]
  %v92 = vld [vmem:[%s0 + $0x1d8] sm:$0xff]
  %v93 = vld [vmem:[%s0 + $0x1e0] sm:$0xff]
  %v94 = vld [vmem:[%s0 + $0x1e8] sm:$0xff]
  %v95 = vld [vmem:[%s0 + $0x1f0] sm:$0xff]
  %v96 = vld [vmem:[%s0 + $0x1f8] sm:$0xff]
  %v97 = vld [vmem:[%s0 + $0x200] sm:$0xff]
  %v98 = vld [vmem:[%s0 + $0x208] sm:$0xff]
  %v99 = vld [vmem:[%s0 + $0x210] sm:$0xff]
  %v100 = vld [vmem:[%s0 + $0x218] sm:$0xff]
  %v101 = vld [vmem:[%s0 + $0x220] sm:$0xff]
  %v102 = vld [vmem:[%s0 + $0x228] sm:$0xff]
  %v103 = vld [vmem:[%s0 + $0x230] sm:$0xff]
  %v104 = vld [vmem:[%s0 + $0x238] sm:$0xff]
  %v105 = vld [vmem:[%s0 + $0x240] sm:$0xff]
  %v106 = vld [vmem:[%s0 + $0x248] sm:$0xff]
  %v107 = vld [vmem:[%s0 + $0x250] sm:$0xff]
  %v108 = vld [vmem:[%s0 + $0x258] sm:$0xff]
  %v109 = vld [vmem:[%s0 + $0x260] sm:$0xff]
  %v110 = vld [vmem:[%s0 + $0x268] sm:$0xff]
  %v111 = vld [vmem:[%s0 + $0x270] sm:$0xff]
  %v112 = vld [vmem:[%s0 + $0x278] sm:$0xff]
  %v113 = vld [vmem:[%s0 + $0x280] sm:$0xff]
  %v114 = vld [vmem:[%s0 + $0x288] sm:$0xff]
  %v115 = vld [vmem:[%s0 + $0x290] sm:$0xff]
  %v116 = vld [vmem:[%s0 + $0x298] sm:$0xff]
  %v117 = vld [vmem:[%s0 + $0x2a0] sm:$0xff]
  %v118 = vld [vmem:[%s0 + $0x2a8] sm:$0xff]
  %v119 = vld [vmem:[%s0 + $0x2b0] sm:$0xff]
  %v120 = vld [vmem:[%s0 + $0x2b8] sm:$0xff]
  %v121 = vld [vmem:[%s0 + $0x2c0] sm:$0xff]
  %v122 = vld [vmem:[%s0 + $0x2c8] sm:$0xff]
  %v123 = vld [vmem:[%s0 + $0x2d0] sm:$0xff]
  %v124 = vld [vmem:[%s0 + $0x2d8] sm:$0xff]
  %v125 = vld [vmem:[%s0 + $0x2e0] sm:$0xff]
  %v126 = vld [vmem:[%s0 + $0x2e8] sm:$0xff]
  %v127 = vld [vmem:[%s0 + $0x2f0] sm:$0xff]
  %v128 = vld [vmem:[%s0 + $0x2f8] sm:$0xff]
  %v129 = vld [vmem:[%s0 + $0x300] sm:$0xff]
  %v130 = vld [vmem:[%s0 + $0x308] sm:$0xff]
  %v131 = vld [vmem:[%s0 + $0x310] sm:$0xff]
  %v132 = vld [vmem:[%s0 + $0x318] sm:$0xff]
  %v133 = vld [vmem:[%s1] sm:$0xf]
  %v134 = vld [vmem:[%s1 + $0x4] sm:$0xf]
  %v135 = vld [vmem:[%s1 + $0x8] sm:$0xf]
  %v136 = vld [vmem:[%s1 + $0xc] sm:$0xf]
  %v137 = vld [vmem:[%s1 + $0x10] sm:$0xf]
  %v138 = vld [vmem:[%s1 + $0x14] sm:$0xf]
  %v139 = vld [vmem:[%s1 + $0x18] sm:$0xf]
  %v140 = vld [vmem:[%s1 + $0x1c] sm:$0xf]
  %v141 = vld [vmem:[%s1 + $0x20] sm:$0xf]
  %v142 = vld [vmem:[%s1 + $0x24] sm:$0xf]
  %v143 = vld [vmem:[%s1 + $0x28] sm:$0xf]
  %v144 = vld [vmem:[%s1 + $0x2c] sm:$0xf]
  %v145 = vld [vmem:[%s1 + $0x30] sm:$0xf]
  %v146 = vld [vmem:[%s1 + $0x34] sm:$0xf]
  %v147 = vld [vmem:[%s1 + $0x38] sm:$0xf]
  %v148 = vld [vmem:[%s1 + $0x3c] sm:$0xf]
  %v149 = vld [vmem:[%s1 + $0x40] sm:$0xf]
  %v150 = vld [vmem:[%s1 + $0x44] sm:$0xf]
  %v151 = vld [vmem:[%s1 + $0x48] sm:$0xf]
  %v152 = vld [vmem:[%s1 + $0x4c] sm:$0xf]
  %v153 = vld [vmem:[%s2] sm:$0x1]
  %v155 = vlaneseq
  %v156 = vshrl.u32 %v155, 7
  %v157 = vsub.s32 0, %v156
  %v158 = vrot.slane %v153, %v157
  %v260 = vunpack.c.l.b16 %v33
  %v261 = vunpack.c.h.b16 %v33
  %v262 = vunpack.c.l.b16 %v34
  %v263 = vunpack.c.h.b16 %v34
  %v264 = vunpack.c.l.b16 %v35
  %v265 = vunpack.c.h.b16 %v35
  %v266 = vunpack.c.l.b16 %v36
  %v267 = vunpack.c.h.b16 %v36
  %v268 = vunpack.c.l.b16 %v37
  %v269 = vunpack.c.h.b16 %v37
  %v270 = vunpack.c.l.b16 %v38
  %v271 = vunpack.c.h.b16 %v38
  %v272 = vunpack.c.l.b16 %v39
  %v273 = vunpack.c.h.b16 %v39
  %v274 = vunpack.c.l.b16 %v40
  %v275 = vunpack.c.h.b16 %v40
  %v276 = vunpack.c.l.b16 %v41
  %v277 = vunpack.c.h.b16 %v41
  %v278 = vunpack.c.l.b16 %v42
  %v279 = vunpack.c.h.b16 %v42
  %v280 = vunpack.c.l.b16 %v43
  %v281 = vunpack.c.h.b16 %v43
  %v282 = vunpack.c.l.b16 %v44
  %v283 = vunpack.c.h.b16 %v44
  %v284 = vunpack.c.l.b16 %v45
  %v285 = vunpack.c.h.b16 %v45
  %v286 = vunpack.c.l.b16 %v46
  %v287 = vunpack.c.h.b16 %v46
  %v288 = vunpack.c.l.b16 %v47
  %v289 = vunpack.c.h.b16 %v47
  %v290 = vunpack.c.l.b16 %v48
  %v291 = vunpack.c.h.b16 %v48
  %v292 = vunpack.c.l.b16 %v49
  %v293 = vunpack.c.h.b16 %v49
  %v294 = vunpack.c.l.b16 %v50
  %v295 = vunpack.c.h.b16 %v50
  %v296 = vunpack.c.l.b16 %v51
  %v297 = vunpack.c.h.b16 %v51
  %v298 = vunpack.c.l.b16 %v52
  %v299 = vunpack.c.h.b16 %v52
  %v300 = vunpack.c.l.b16 %v53
  %v301 = vunpack.c.h.b16 %v53
  %v302 = vunpack.c.l.b16 %v54
  %v303 = vunpack.c.h.b16 %v54
  %v304 = vunpack.c.l.b16 %v55
  %v305 = vunpack.c.h.b16 %v55
  %v306 = vunpack.c.l.b16 %v56
  %v307 = vunpack.c.h.b16 %v56
  %v308 = vunpack.c.l.b16 %v57
  %v309 = vunpack.c.h.b16 %v57
  %v310 = vunpack.c.l.b16 %v58
  %v311 = vunpack.c.h.b16 %v58
  %v312 = vunpack.c.l.b16 %v59
  %v313 = vunpack.c.h.b16 %v59
  %v314 = vunpack.c.l.b16 %v60
  %v315 = vunpack.c.h.b16 %v60
  %v316 = vunpack.c.l.b16 %v61
  %v317 = vunpack.c.h.b16 %v61
  %v318 = vunpack.c.l.b16 %v62
  %v319 = vunpack.c.h.b16 %v62
  %v320 = vunpack.c.l.b16 %v63
  %v321 = vunpack.c.h.b16 %v63
  %v322 = vunpack.c.l.b16 %v64
  %v323 = vunpack.c.h.b16 %v64
  %v324 = vunpack.c.l.b16 %v65
  %v325 = vunpack.c.h.b16 %v65
  %v326 = vunpack.c.l.b16 %v66
  %v327 = vunpack.c.h.b16 %v66
  %v328 = vunpack.c.l.b16 %v67
  %v329 = vunpack.c.h.b16 %v67
  %v330 = vunpack.c.l.b16 %v68
  %v331 = vunpack.c.h.b16 %v68
  %v332 = vunpack.c.l.b16 %v69
  %v333 = vunpack.c.h.b16 %v69
  %v334 = vunpack.c.l.b16 %v70
  %v335 = vunpack.c.h.b16 %v70
  %v336 = vunpack.c.l.b16 %v71
  %v337 = vunpack.c.h.b16 %v71
  %v338 = vunpack.c.l.b16 %v72
  %v339 = vunpack.c.h.b16 %v72
  %v340 = vunpack.c.l.b16 %v73
  %v341 = vunpack.c.h.b16 %v73
  %v342 = vunpack.c.l.b16 %v74
  %v343 = vunpack.c.h.b16 %v74
  %v344 = vunpack.c.l.b16 %v75
  %v345 = vunpack.c.h.b16 %v75
  %v346 = vunpack.c.l.b16 %v76
  %v347 = vunpack.c.h.b16 %v76
  %v348 = vunpack.c.l.b16 %v77
  %v349 = vunpack.c.h.b16 %v77
  %v350 = vunpack.c.l.b16 %v78
  %v351 = vunpack.c.h.b16 %v78
  %v352 = vunpack.c.l.b16 %v79
  %v353 = vunpack.c.h.b16 %v79
  %v354 = vunpack.c.l.b16 %v80
  %v355 = vunpack.c.h.b16 %v80
  %v356 = vunpack.c.l.b16 %v81
  %v357 = vunpack.c.h.b16 %v81
  %v358 = vunpack.c.l.b16 %v82
  %v359 = vunpack.c.h.b16 %v82
  %v360 = vunpack.c.l.b16 %v83
  %v361 = vunpack.c.h.b16 %v83
  %v362 = vunpack.c.l.b16 %v84
  %v363 = vunpack.c.h.b16 %v84
  %v364 = vunpack.c.l.b16 %v85
  %v365 = vunpack.c.h.b16 %v85
  %v366 = vunpack.c.l.b16 %v86
  %v367 = vunpack.c.h.b16 %v86
  %v368 = vunpack.c.l.b16 %v87
  %v369 = vunpack.c.h.b16 %v87
  %v370 = vunpack.c.l.b16 %v88
  %v371 = vunpack.c.h.b16 %v88
  %v372 = vunpack.c.l.b16 %v89
  %v373 = vunpack.c.h.b16 %v89
  %v374 = vunpack.c.l.b16 %v90
  %v375 = vunpack.c.h.b16 %v90
  %v376 = vunpack.c.l.b16 %v91
  %v377 = vunpack.c.h.b16 %v91
  %v378 = vunpack.c.l.b16 %v92
  %v379 = vunpack.c.h.b16 %v92
  %v380 = vunpack.c.l.b16 %v93
  %v381 = vunpack.c.h.b16 %v93
  %v382 = vunpack.c.l.b16 %v94
  %v383 = vunpack.c.h.b16 %v94
  %v384 = vunpack.c.l.b16 %v95
  %v385 = vunpack.c.h.b16 %v95
  %v386 = vunpack.c.l.b16 %v96
  %v387 = vunpack.c.h.b16 %v96
  %v388 = vunpack.c.l.b16 %v97
  %v389 = vunpack.c.h.b16 %v97
  %v390 = vunpack.c.l.b16 %v98
  %v391 = vunpack.c.h.b16 %v98
  %v392 = vunpack.c.l.b16 %v99
  %v393 = vunpack.c.h.b16 %v99
  %v394 = vunpack.c.l.b16 %v100
  %v395 = vunpack.c.h.b16 %v100
  %v396 = vunpack.c.l.b16 %v101
  %v397 = vunpack.c.h.b16 %v101
  %v398 = vunpack.c.l.b16 %v102
  %v399 = vunpack.c.h.b16 %v102
  %v400 = vunpack.c.l.b16 %v103
  %v401 = vunpack.c.h.b16 %v103
  %v402 = vunpack.c.l.b16 %v104
  %v403 = vunpack.c.h.b16 %v104
  %v404 = vunpack.c.l.b16 %v105
  %v405 = vunpack.c.h.b16 %v105
  %v406 = vunpack.c.l.b16 %v106
  %v407 = vunpack.c.h.b16 %v106
  %v408 = vunpack.c.l.b16 %v107
  %v409 = vunpack.c.h.b16 %v107
  %v410 = vunpack.c.l.b16 %v108
  %v411 = vunpack.c.h.b16 %v108
  %v412 = vunpack.c.l.b16 %v109
  %v413 = vunpack.c.h.b16 %v109
  %v414 = vunpack.c.l.b16 %v110
  %v415 = vunpack.c.h.b16 %v110
  %v416 = vunpack.c.l.b16 %v111
  %v417 = vunpack.c.h.b16 %v111
  %v418 = vunpack.c.l.b16 %v112
  %v419 = vunpack.c.h.b16 %v112
  %v420 = vunpack.c.l.b16 %v113
  %v421 = vunpack.c.h.b16 %v113
  %v422 = vunpack.c.l.b16 %v114
  %v423 = vunpack.c.h.b16 %v114
  %v424 = vunpack.c.l.b16 %v115
  %v425 = vunpack.c.h.b16 %v115
  %v426 = vunpack.c.l.b16 %v116
  %v427 = vunpack.c.h.b16 %v116
  %v428 = vunpack.c.l.b16 %v117
  %v429 = vunpack.c.h.b16 %v117
  %v430 = vunpack.c.l.b16 %v118
  %v431 = vunpack.c.h.b16 %v118
  %v432 = vunpack.c.l.b16 %v119
  %v433 = vunpack.c.h.b16 %v119
  %v434 = vunpack.c.l.b16 %v120
  %v435 = vunpack.c.h.b16 %v120
  %v436 = vunpack.c.l.b16 %v121
  %v437 = vunpack.c.h.b16 %v121
  %v438 = vunpack.c.l.b16 %v122
  %v439 = vunpack.c.h.b16 %v122
  %v440 = vunpack.c.l.b16 %v123
  %v441 = vunpack.c.h.b16 %v123
  %v442 = vunpack.c.l.b16 %v124
  %v443 = vunpack.c.h.b16 %v124
  %v444 = vunpack.c.l.b16 %v125
  %v445 = vunpack.c.h.b16 %v125
  %v446 = vunpack.c.l.b16 %v126
  %v447 = vunpack.c.h.b16 %v126
  %v448 = vunpack.c.l.b16 %v127
  %v449 = vunpack.c.h.b16 %v127
  %v450 = vunpack.c.l.b16 %v128
  %v451 = vunpack.c.h.b16 %v128
  %v452 = vunpack.c.l.b16 %v129
  %v453 = vunpack.c.h.b16 %v129
  %v454 = vunpack.c.l.b16 %v130
  %v455 = vunpack.c.h.b16 %v130
  %v456 = vunpack.c.l.b16 %v131
  %v457 = vunpack.c.h.b16 %v131
  %v458 = vunpack.c.l.b16 %v132
  %v459 = vunpack.c.h.b16 %v132
  %v460 = vpack.c.b16 %v262, %v260
  %v461 = vpack.c.b16 %v263, %v261
  %v462 = vpack.c.b16 %v266, %v264
  %v463 = vpack.c.b16 %v267, %v265
  %v464 = vpack.c.b16 %v270, %v268
  %v465 = vpack.c.b16 %v271, %v269
  %v466 = vpack.c.b16 %v274, %v272
  %v467 = vpack.c.b16 %v275, %v273
  %v468 = vpack.c.b16 %v278, %v276
  %v469 = vpack.c.b16 %v279, %v277
  %v470 = vpack.c.b16 %v282, %v280
  %v471 = vpack.c.b16 %v283, %v281
  %v472 = vpack.c.b16 %v286, %v284
  %v473 = vpack.c.b16 %v287, %v285
  %v474 = vpack.c.b16 %v290, %v288
  %v475 = vpack.c.b16 %v291, %v289
  %v476 = vpack.c.b16 %v294, %v292
  %v477 = vpack.c.b16 %v295, %v293
  %v478 = vpack.c.b16 %v298, %v296
  %v479 = vpack.c.b16 %v299, %v297
  %v480 = vpack.c.b16 %v302, %v300
  %v481 = vpack.c.b16 %v303, %v301
  %v482 = vpack.c.b16 %v306, %v304
  %v483 = vpack.c.b16 %v307, %v305
  %v484 = vpack.c.b16 %v310, %v308
  %v485 = vpack.c.b16 %v311, %v309
  %v486 = vpack.c.b16 %v314, %v312
  %v487 = vpack.c.b16 %v315, %v313
  %v488 = vpack.c.b16 %v318, %v316
  %v489 = vpack.c.b16 %v319, %v317
  %v490 = vpack.c.b16 %v322, %v320
  %v491 = vpack.c.b16 %v323, %v321
  %v492 = vpack.c.b16 %v326, %v324
  %v493 = vpack.c.b16 %v327, %v325
  %v494 = vpack.c.b16 %v330, %v328
  %v495 = vpack.c.b16 %v331, %v329
  %v496 = vpack.c.b16 %v334, %v332
  %v497 = vpack.c.b16 %v335, %v333
  %v498 = vpack.c.b16 %v338, %v336
  %v499 = vpack.c.b16 %v339, %v337
  %v500 = vpack.c.b16 %v342, %v340
  %v501 = vpack.c.b16 %v343, %v341
  %v502 = vpack.c.b16 %v346, %v344
  %v503 = vpack.c.b16 %v347, %v345
  %v504 = vpack.c.b16 %v350, %v348
  %v505 = vpack.c.b16 %v351, %v349
  %v506 = vpack.c.b16 %v354, %v352
  %v507 = vpack.c.b16 %v355, %v353
  %v508 = vpack.c.b16 %v358, %v356
  %v509 = vpack.c.b16 %v359, %v357
  %v510 = vpack.c.b16 %v362, %v360
  %v511 = vpack.c.b16 %v363, %v361
  %v512 = vpack.c.b16 %v366, %v364
  %v513 = vpack.c.b16 %v367, %v365
  %v514 = vpack.c.b16 %v370, %v368
  %v515 = vpack.c.b16 %v371, %v369
  %v516 = vpack.c.b16 %v374, %v372
  %v517 = vpack.c.b16 %v375, %v373
  %v518 = vpack.c.b16 %v378, %v376
  %v519 = vpack.c.b16 %v379, %v377
  %v520 = vpack.c.b16 %v382, %v380
  %v521 = vpack.c.b16 %v383, %v381
  %v522 = vpack.c.b16 %v386, %v384
  %v523 = vpack.c.b16 %v387, %v385
  %v524 = vpack.c.b16 %v390, %v388
  %v525 = vpack.c.b16 %v391, %v389
  %v526 = vpack.c.b16 %v394, %v392
  %v527 = vpack.c.b16 %v395, %v393
  %v528 = vpack.c.b16 %v398, %v396
  %v529 = vpack.c.b16 %v399, %v397
  %v530 = vpack.c.b16 %v402, %v400
  %v531 = vpack.c.b16 %v403, %v401
  %v532 = vpack.c.b16 %v406, %v404
  %v533 = vpack.c.b16 %v407, %v405
  %v534 = vpack.c.b16 %v410, %v408
  %v535 = vpack.c.b16 %v411, %v409
  %v536 = vpack.c.b16 %v414, %v412
  %v537 = vpack.c.b16 %v415, %v413
  %v538 = vpack.c.b16 %v418, %v416
  %v539 = vpack.c.b16 %v419, %v417
  %v540 = vpack.c.b16 %v422, %v420
  %v541 = vpack.c.b16 %v423, %v421
  %v542 = vpack.c.b16 %v426, %v424
  %v543 = vpack.c.b16 %v427, %v425
  %v544 = vpack.c.b16 %v430, %v428
  %v545 = vpack.c.b16 %v431, %v429
  %v546 = vpack.c.b16 %v434, %v432
  %v547 = vpack.c.b16 %v435, %v433
  %v548 = vpack.c.b16 %v438, %v436
  %v549 = vpack.c.b16 %v439, %v437
  %v550 = vpack.c.b16 %v442, %v440
  %v551 = vpack.c.b16 %v443, %v441
  %v552 = vpack.c.b16 %v446, %v444
  %v553 = vpack.c.b16 %v447, %v445
  %v554 = vpack.c.b16 %v450, %v448
  %v555 = vpack.c.b16 %v451, %v449
  %v556 = vpack.c.b16 %v454, %v452
  %v557 = vpack.c.b16 %v455, %v453
  %v558 = vpack.c.b16 %v458, %v456
  %v559 = vpack.c.b16 %v459, %v457
  %v630 = vunpack.c.l.b16 %v133
  %v631 = vunpack.c.l.b16 %v134
  %v632 = vunpack.c.l.b16 %v135
  %v633 = vunpack.c.l.b16 %v136
  %v634 = vunpack.c.l.b16 %v137
  %v635 = vunpack.c.l.b16 %v138
  %v636 = vunpack.c.l.b16 %v139
  %v637 = vunpack.c.l.b16 %v140
  %v638 = vunpack.c.l.b16 %v141
  %v639 = vunpack.c.l.b16 %v142
  %v640 = vunpack.c.l.b16 %v143
  %v641 = vunpack.c.l.b16 %v144
  %v642 = vunpack.c.l.b16 %v145
  %v643 = vunpack.c.l.b16 %v146
  %v644 = vunpack.c.l.b16 %v147
  %v645 = vunpack.c.l.b16 %v148
  %v646 = vunpack.c.l.b16 %v149
  %v647 = vunpack.c.l.b16 %v150
  %v648 = vunpack.c.l.b16 %v151
  %v649 = vunpack.c.l.b16 %v152
  %v650 = vpack.c.b16 %v631, %v630
  %v651 = vpack.c.b16 %v633, %v632
  %v652 = vpack.c.b16 %v635, %v634
  %v653 = vpack.c.b16 %v637, %v636
  %v654 = vpack.c.b16 %v639, %v638
  %v655 = vpack.c.b16 %v641, %v640
  %v656 = vpack.c.b16 %v643, %v642
  %v657 = vpack.c.b16 %v645, %v644
  %v658 = vpack.c.b16 %v647, %v646
  %v659 = vpack.c.b16 %v649, %v648
  %vm670 = vcmask 261120
  %v672 = vsel %vm670, %v461, 0
  %v675 = vsel %vm670, %v463, 0
  %v678 = vsel %vm670, %v465, 0
  %v681 = vsel %vm670, %v467, 0
  %v684 = vsel %vm670, %v469, 0
  %v687 = vsel %vm670, %v471, 0
  %v690 = vsel %vm670, %v473, 0
  %v693 = vsel %vm670, %v475, 0
  %v696 = vsel %vm670, %v477, 0
  %v699 = vsel %vm670, %v479, 0
  %v702 = vsel %vm670, %v481, 0
  %v705 = vsel %vm670, %v483, 0
  %v708 = vsel %vm670, %v485, 0
  %v711 = vsel %vm670, %v487, 0
  %v714 = vsel %vm670, %v489, 0
  %v717 = vsel %vm670, %v491, 0
  %v720 = vsel %vm670, %v493, 0
  %v723 = vsel %vm670, %v495, 0
  %v726 = vsel %vm670, %v497, 0
  %v729 = vsel %vm670, %v499, 0
  %v732 = vsel %vm670, %v501, 0
  %v735 = vsel %vm670, %v503, 0
  %v738 = vsel %vm670, %v505, 0
  %v741 = vsel %vm670, %v507, 0
  %v744 = vsel %vm670, %v509, 0
  %v747 = vsel %vm670, %v511, 0
  %v750 = vsel %vm670, %v513, 0
  %v753 = vsel %vm670, %v515, 0
  %v756 = vsel %vm670, %v517, 0
  %v759 = vsel %vm670, %v519, 0
  %v762 = vsel %vm670, %v521, 0
  %v765 = vsel %vm670, %v523, 0
  %v768 = vsel %vm670, %v525, 0
  %v771 = vsel %vm670, %v527, 0
  %v774 = vsel %vm670, %v529, 0
  %v777 = vsel %vm670, %v531, 0
  %v780 = vsel %vm670, %v533, 0
  %v783 = vsel %vm670, %v535, 0
  %v786 = vsel %vm670, %v537, 0
  %v789 = vsel %vm670, %v539, 0
  %v792 = vsel %vm670, %v541, 0
  %v795 = vsel %vm670, %v543, 0
  %v798 = vsel %vm670, %v545, 0
  %v801 = vsel %vm670, %v547, 0
  %v804 = vsel %vm670, %v549, 0
  %v807 = vsel %vm670, %v551, 0
  %v810 = vsel %vm670, %v553, 0
  %v813 = vsel %vm670, %v555, 0
  %v816 = vsel %vm670, %v557, 0
  %v819 = vsel %vm670, %v559, 0
  %821 = vmatprep.subr.bf16.mxu0 0
  %822 = vmatpush1.bf16.msra.mxu0 %v650
  %823 = vmatprep.subr.bf16.mxu0 0
  %824 = vmatpush1.bf16.msra.mxu0 %v651
  %825 = vmatprep.subr.bf16.mxu0 0
  %826 = vmatpush1.bf16.msra.mxu0 %v652
  %827 = vmatprep.subr.bf16.mxu0 0
  %828 = vmatpush1.bf16.msra.mxu0 %v653
  %829 = vmatprep.subr.bf16.mxu0 0
  %830 = vmatpush1.bf16.msra.mxu0 %v654
  %831 = vmatprep.subr.bf16.mxu0 0
  %832 = vmatpush1.bf16.msra.mxu0 %v655
  %833 = vmatprep.subr.bf16.mxu0 0
  %834 = vmatpush1.bf16.msra.mxu0 %v656
  %835 = vmatprep.subr.bf16.mxu0 0
  %836 = vmatpush1.bf16.msra.mxu0 %v657
  %837 = vmatprep.subr.bf16.mxu0 0
  %838 = vmatpush1.bf16.msra.mxu0 %v658
  %839 = vmatprep.subr.bf16.mxu0 0
  %840 = vmatpush1.bf16.msra.mxu0 %v659
  %841 = vmatprep.subr.bf16.mxu0 0
  %842 = vmatpush1.bf16.msra.mxu0 0
  %843 = vmatprep.subr.bf16.mxu0 0
  %844 = vmatpush1.bf16.msra.mxu0 0
  %845 = vmatprep.subr.bf16.mxu0 0
  %846 = vmatpush1.bf16.msra.mxu0 0
  %847 = vmatprep.subr.bf16.mxu0 0
  %848 = vmatpush1.bf16.msra.mxu0 0
  %849 = vmatprep.subr.bf16.mxu0 0
  %850 = vmatpush1.bf16.msra.mxu0 0
  %851 = vmatprep.subr.bf16.mxu0 0
  %852 = vmatpush1.bf16.msra.mxu0 0
  %853 = vmatprep.mubr.bf16.mxu0 %v672
  %854 = vmatmul.mubr.bf16.gmra.mrb[0].mxu0 %v460
  %v855 = vpop.f32.mrb[0].mxu0
  %v856 = vadd.f32 %v158, %v855
  %v857 = vpop.f32.mrb[0].mxu0
  %v858 = vpop.f32.mrb[0].mxu0
  %v859 = vadd.f32 %v158, %v858
  %v860 = vpop.f32.mrb[0].mxu0
  %861 = vmatprep.mubr.bf16.mxu0 %v675
  %862 = vmatmul.mubr.bf16.gmra.mrb[0].mxu0 %v462
  %v863 = vpop.f32.mrb[0].mxu0
  %v864 = vadd.f32 %v158, %v863
  %v865 = vpop.f32.mrb[0].mxu0
  %v866 = vpop.f32.mrb[0].mxu0
  %v867 = vadd.f32 %v158, %v866
  %v868 = vpop.f32.mrb[0].mxu0
  %869 = vmatprep.mubr.bf16.mxu0 %v678
  %870 = vmatmul.mubr.bf16.gmra.mrb[0].mxu0 %v464
  %v871 = vpop.f32.mrb[0].mxu0
  %v872 = vadd.f32 %v158, %v871
  %v873 = vpop.f32.mrb[0].mxu0
  %v874 = vpop.f32.mrb[0].mxu0
  %v875 = vadd.f32 %v158, %v874
  %v876 = vpop.f32.mrb[0].mxu0
  %877 = vmatprep.mubr.bf16.mxu0 %v681
  %878 = vmatmul.mubr.bf16.gmra.mrb[0].mxu0 %v466
  %v879 = vpop.f32.mrb[0].mxu0
  %v880 = vadd.f32 %v158, %v879
  %v881 = vpop.f32.mrb[0].mxu0
  %v882 = vpop.f32.mrb[0].mxu0
  %v883 = vadd.f32 %v158, %v882
  %v884 = vpop.f32.mrb[0].mxu0
  %885 = vmatprep.mubr.bf16.mxu0 %v684
  %886 = vmatmul.mubr.bf16.gmra.mrb[0].mxu0 %v468
  %v887 = vpop.f32.mrb[0].mxu0
  %v888 = vadd.f32 %v158, %v887
  %v889 = vpop.f32.mrb[0].mxu0
  %v890 = vpop.f32.mrb[0].mxu0
  %v891 = vadd.f32 %v158, %v890
  %v892 = vpop.f32.mrb[0].mxu0
  %893 = vmatprep.mubr.bf16.mxu0 %v687
  %894 = vmatmul.mubr.bf16.gmra.mrb[0].mxu0 %v470
  %v895 = vpop.f32.mrb[0].mxu0
  %v896 = vadd.f32 %v158, %v895
  %v897 = vpop.f32.mrb[0].mxu0
  %v898 = vpop.f32.mrb[0].mxu0
  %v899 = vadd.f32 %v158, %v898
  %v900 = vpop.f32.mrb[0].mxu0
  %901 = vmatprep.mubr.bf16.mxu0 %v690
  %902 = vmatmul.mubr.bf16.gmra.mrb[0].mxu0 %v472
  %v903 = vpop.f32.mrb[0].mxu0
  %v904 = vadd.f32 %v158, %v903
  %v905 = vpop.f32.mrb[0].mxu0
  %v906 = vpop.f32.mrb[0].mxu0
  %v907 = vadd.f32 %v158, %v906
  %v908 = vpop.f32.mrb[0].mxu0
  %909 = vmatprep.mubr.bf16.mxu0 %v693
  %910 = vmatmul.mubr.bf16.gmra.mrb[0].mxu0 %v474
  %v911 = vpop.f32.mrb[0].mxu0
  %v912 = vadd.f32 %v158, %v911
  %v913 = vpop.f32.mrb[0].mxu0
  %v914 = vpop.f32.mrb[0].mxu0
  %v915 = vadd.f32 %v158, %v914
  %v916 = vpop.f32.mrb[0].mxu0
  %917 = vmatprep.mubr.bf16.mxu0 %v696
  %918 = vmatmul.mubr.bf16.gmra.mrb[0].mxu0 %v476
  %v919 = vpop.f32.mrb[0].mxu0
  %v920 = vadd.f32 %v158, %v919
  %v921 = vpop.f32.mrb[0].mxu0
  %v922 = vpop.f32.mrb[0].mxu0
  %v923 = vadd.f32 %v158, %v922
  %v924 = vpop.f32.mrb[0].mxu0
  %925 = vmatprep.mubr.bf16.mxu0 %v699
  %926 = vmatmul.mubr.bf16.gmra.mrb[0].mxu0 %v478
  %v927 = vpop.f32.mrb[0].mxu0
  %v928 = vadd.f32 %v158, %v927
  %v929 = vpop.f32.mrb[0].mxu0
  %v930 = vpop.f32.mrb[0].mxu0
  %v931 = vadd.f32 %v158, %v930
  %v932 = vpop.f32.mrb[0].mxu0
  %933 = vmatprep.mubr.bf16.mxu0 %v702
  %934 = vmatmul.mubr.bf16.gmra.mrb[0].mxu0 %v480
  %v935 = vpop.f32.mrb[0].mxu0
  %v936 = vadd.f32 %v158, %v935
  %v937 = vpop.f32.mrb[0].mxu0
  %v938 = vpop.f32.mrb[0].mxu0
  %v939 = vadd.f32 %v158, %v938
  %v940 = vpop.f32.mrb[0].mxu0
  %941 = vmatprep.mubr.bf16.mxu0 %v705
  %942 = vmatmul.mubr.bf16.gmra.mrb[0].mxu0 %v482
  %v943 = vpop.f32.mrb[0].mxu0
  %v944 = vadd.f32 %v158, %v943
  %v945 = vpop.f32.mrb[0].mxu0
  %v946 = vpop.f32.mrb[0].mxu0
  %v947 = vadd.f32 %v158, %v946
  %v948 = vpop.f32.mrb[0].mxu0
  %949 = vmatprep.mubr.bf16.mxu0 %v708
  %950 = vmatmul.mubr.bf16.gmra.mrb[0].mxu0 %v484
  %v951 = vpop.f32.mrb[0].mxu0
  %v952 = vadd.f32 %v158, %v951
  %v953 = vpop.f32.mrb[0].mxu0
  %v954 = vpop.f32.mrb[0].mxu0
  %v955 = vadd.f32 %v158, %v954
  %v956 = vpop.f32.mrb[0].mxu0
  %957 = vmatprep.mubr.bf16.mxu0 %v711
  %958 = vmatmul.mubr.bf16.gmra.mrb[0].mxu0 %v486
  %v959 = vpop.f32.mrb[0].mxu0
  %v960 = vadd.f32 %v158, %v959
  %v961 = vpop.f32.mrb[0].mxu0
  %v962 = vpop.f32.mrb[0].mxu0
  %v963 = vadd.f32 %v158, %v962
  %v964 = vpop.f32.mrb[0].mxu0
  %965 = vmatprep.mubr.bf16.mxu0 %v714
  %966 = vmatmul.mubr.bf16.gmra.mrb[0].mxu0 %v488
  %v967 = vpop.f32.mrb[0].mxu0
  %v968 = vadd.f32 %v158, %v967
  %v969 = vpop.f32.mrb[0].mxu0
  %v970 = vpop.f32.mrb[0].mxu0
  %v971 = vadd.f32 %v158, %v970
  %v972 = vpop.f32.mrb[0].mxu0
  %973 = vmatprep.mubr.bf16.mxu0 %v717
  %974 = vmatmul.mubr.bf16.gmra.mrb[0].mxu0 %v490
  %v975 = vpop.f32.mrb[0].mxu0
  %v976 = vadd.f32 %v158, %v975
  %v977 = vpop.f32.mrb[0].mxu0
  %v978 = vpop.f32.mrb[0].mxu0
  %v979 = vadd.f32 %v158, %v978
  %v980 = vpop.f32.mrb[0].mxu0
  %981 = vmatprep.mubr.bf16.mxu0 %v720
  %982 = vmatmul.mubr.bf16.gmra.mrb[0].mxu0 %v492
  %v983 = vpop.f32.mrb[0].mxu0
  %v984 = vadd.f32 %v158, %v983
  %v985 = vpop.f32.mrb[0].mxu0
  %v986 = vpop.f32.mrb[0].mxu0
  %v987 = vadd.f32 %v158, %v986
  %v988 = vpop.f32.mrb[0].mxu0
  %989 = vmatprep.mubr.bf16.mxu0 %v723
  %990 = vmatmul.mubr.bf16.gmra.mrb[0].mxu0 %v494
  %v991 = vpop.f32.mrb[0].mxu0
  %v992 = vadd.f32 %v158, %v991
  %v993 = vpop.f32.mrb[0].mxu0
  %v994 = vpop.f32.mrb[0].mxu0
  %v995 = vadd.f32 %v158, %v994
  %v996 = vpop.f32.mrb[0].mxu0
  %997 = vmatprep.mubr.bf16.mxu0 %v726
  %998 = vmatmul.mubr.bf16.gmra.mrb[0].mxu0 %v496
  %v999 = vpop.f32.mrb[0].mxu0
  %v1000 = vadd.f32 %v158, %v999
  %v1001 = vpop.f32.mrb[0].mxu0
  %v1002 = vpop.f32.mrb[0].mxu0
  %v1003 = vadd.f32 %v158, %v1002
  %v1004 = vpop.f32.mrb[0].mxu0
  %1005 = vmatprep.mubr.bf16.mxu0 %v729
  %1006 = vmatmul.mubr.bf16.gmra.mrb[0].mxu0 %v498
  %v1007 = vpop.f32.mrb[0].mxu0
  %v1008 = vadd.f32 %v158, %v1007
  %v1009 = vpop.f32.mrb[0].mxu0
  %v1010 = vpop.f32.mrb[0].mxu0
  %v1011 = vadd.f32 %v158, %v1010
  %v1012 = vpop.f32.mrb[0].mxu0
  %1013 = vmatprep.mubr.bf16.mxu0 %v732
  %1014 = vmatmul.mubr.bf16.gmra.mrb[0].mxu0 %v500
  %v1015 = vpop.f32.mrb[0].mxu0
  %v1016 = vadd.f32 %v158, %v1015
  %v1017 = vpop.f32.mrb[0].mxu0
  %v1018 = vpop.f32.mrb[0].mxu0
  %v1019 = vadd.f32 %v158, %v1018
  %v1020 = vpop.f32.mrb[0].mxu0
  %1021 = vmatprep.mubr.bf16.mxu0 %v735
  %1022 = vmatmul.mubr.bf16.gmra.mrb[0].mxu0 %v502
  %v1023 = vpop.f32.mrb[0].mxu0
  %v1024 = vadd.f32 %v158, %v1023
  %v1025 = vpop.f32.mrb[0].mxu0
  %v1026 = vpop.f32.mrb[0].mxu0
  %v1027 = vadd.f32 %v158, %v1026
  %v1028 = vpop.f32.mrb[0].mxu0
  %1029 = vmatprep.mubr.bf16.mxu0 %v738
  %1030 = vmatmul.mubr.bf16.gmra.mrb[0].mxu0 %v504
  %v1031 = vpop.f32.mrb[0].mxu0
  %v1032 = vadd.f32 %v158, %v1031
  %v1033 = vpop.f32.mrb[0].mxu0
  %v1034 = vpop.f32.mrb[0].mxu0
  %v1035 = vadd.f32 %v158, %v1034
  %v1036 = vpop.f32.mrb[0].mxu0
  %1037 = vmatprep.mubr.bf16.mxu0 %v741
  %1038 = vmatmul.mubr.bf16.gmra.mrb[0].mxu0 %v506
  %v1039 = vpop.f32.mrb[0].mxu0
  %v1040 = vadd.f32 %v158, %v1039
  %v1041 = vpop.f32.mrb[0].mxu0
  %v1042 = vpop.f32.mrb[0].mxu0
  %v1043 = vadd.f32 %v158, %v1042
  %v1044 = vpop.f32.mrb[0].mxu0
  %1045 = vmatprep.mubr.bf16.mxu0 %v744
  %1046 = vmatmul.mubr.bf16.gmra.mrb[0].mxu0 %v508
  %v1047 = vpop.f32.mrb[0].mxu0
  %v1048 = vadd.f32 %v158, %v1047
  %v1049 = vpop.f32.mrb[0].mxu0
  %v1050 = vpop.f32.mrb[0].mxu0
  %v1051 = vadd.f32 %v158, %v1050
  %v1052 = vpop.f32.mrb[0].mxu0
  %1053 = vmatprep.mubr.bf16.mxu0 %v747
  %1054 = vmatmul.mubr.bf16.gmra.mrb[0].mxu0 %v510
  %v1055 = vpop.f32.mrb[0].mxu0
  %v1056 = vadd.f32 %v158, %v1055
  %v1057 = vpop.f32.mrb[0].mxu0
  %v1058 = vpop.f32.mrb[0].mxu0
  %v1059 = vadd.f32 %v158, %v1058
  %v1060 = vpop.f32.mrb[0].mxu0
  %1061 = vmatprep.mubr.bf16.mxu0 %v750
  %1062 = vmatmul.mubr.bf16.gmra.mrb[0].mxu0 %v512
  %v1063 = vpop.f32.mrb[0].mxu0
  %v1064 = vadd.f32 %v158, %v1063
  %v1065 = vpop.f32.mrb[0].mxu0
  %v1066 = vpop.f32.mrb[0].mxu0
  %v1067 = vadd.f32 %v158, %v1066
  %v1068 = vpop.f32.mrb[0].mxu0
  %1069 = vmatprep.mubr.bf16.mxu0 %v753
  %1070 = vmatmul.mubr.bf16.gmra.mrb[0].mxu0 %v514
  %v1071 = vpop.f32.mrb[0].mxu0
  %v1072 = vadd.f32 %v158, %v1071
  %v1073 = vpop.f32.mrb[0].mxu0
  %v1074 = vpop.f32.mrb[0].mxu0
  %v1075 = vadd.f32 %v158, %v1074
  %v1076 = vpop.f32.mrb[0].mxu0
  %1077 = vmatprep.mubr.bf16.mxu0 %v756
  %1078 = vmatmul.mubr.bf16.gmra.mrb[0].mxu0 %v516
  %v1079 = vpop.f32.mrb[0].mxu0
  %v1080 = vadd.f32 %v158, %v1079
  %v1081 = vpop.f32.mrb[0].mxu0
  %v1082 = vpop.f32.mrb[0].mxu0
  %v1083 = vadd.f32 %v158, %v1082
  %v1084 = vpop.f32.mrb[0].mxu0
  %1085 = vmatprep.mubr.bf16.mxu0 %v759
  %1086 = vmatmul.mubr.bf16.gmra.mrb[0].mxu0 %v518
  %v1087 = vpop.f32.mrb[0].mxu0
  %v1088 = vadd.f32 %v158, %v1087
  %v1089 = vpop.f32.mrb[0].mxu0
  %v1090 = vpop.f32.mrb[0].mxu0
  %v1091 = vadd.f32 %v158, %v1090
  %v1092 = vpop.f32.mrb[0].mxu0
  %1093 = vmatprep.mubr.bf16.mxu0 %v762
  %1094 = vmatmul.mubr.bf16.gmra.mrb[0].mxu0 %v520
  %v1095 = vpop.f32.mrb[0].mxu0
  %v1096 = vadd.f32 %v158, %v1095
  %v1097 = vpop.f32.mrb[0].mxu0
  %v1098 = vpop.f32.mrb[0].mxu0
  %v1099 = vadd.f32 %v158, %v1098
  %v1100 = vpop.f32.mrb[0].mxu0
  %1101 = vmatprep.mubr.bf16.mxu0 %v765
  %1102 = vmatmul.mubr.bf16.gmra.mrb[0].mxu0 %v522
  %v1103 = vpop.f32.mrb[0].mxu0
  %v1104 = vadd.f32 %v158, %v1103
  %v1105 = vpop.f32.mrb[0].mxu0
  %v1106 = vpop.f32.mrb[0].mxu0
  %v1107 = vadd.f32 %v158, %v1106
  %v1108 = vpop.f32.mrb[0].mxu0
  %1109 = vmatprep.mubr.bf16.mxu0 %v768
  %1110 = vmatmul.mubr.bf16.gmra.mrb[0].mxu0 %v524
  %v1111 = vpop.f32.mrb[0].mxu0
  %v1112 = vadd.f32 %v158, %v1111
  %v1113 = vpop.f32.mrb[0].mxu0
  %v1114 = vpop.f32.mrb[0].mxu0
  %v1115 = vadd.f32 %v158, %v1114
  %v1116 = vpop.f32.mrb[0].mxu0
  %1117 = vmatprep.mubr.bf16.mxu0 %v771
  %1118 = vmatmul.mubr.bf16.gmra.mrb[0].mxu0 %v526
  %v1119 = vpop.f32.mrb[0].mxu0
  %v1120 = vadd.f32 %v158, %v1119
  %v1121 = vpop.f32.mrb[0].mxu0
  %v1122 = vpop.f32.mrb[0].mxu0
  %v1123 = vadd.f32 %v158, %v1122
  %v1124 = vpop.f32.mrb[0].mxu0
  %1125 = vmatprep.mubr.bf16.mxu0 %v774
  %1126 = vmatmul.mubr.bf16.gmra.mrb[0].mxu0 %v528
  %v1127 = vpop.f32.mrb[0].mxu0
  %v1128 = vadd.f32 %v158, %v1127
  %v1129 = vpop.f32.mrb[0].mxu0
  %v1130 = vpop.f32.mrb[0].mxu0
  %v1131 = vadd.f32 %v158, %v1130
  %v1132 = vpop.f32.mrb[0].mxu0
  %1133 = vmatprep.mubr.bf16.mxu0 %v777
  %1134 = vmatmul.mubr.bf16.gmra.mrb[0].mxu0 %v530
  %v1135 = vpop.f32.mrb[0].mxu0
  %v1136 = vadd.f32 %v158, %v1135
  %v1137 = vpop.f32.mrb[0].mxu0
  %v1138 = vpop.f32.mrb[0].mxu0
  %v1139 = vadd.f32 %v158, %v1138
  %v1140 = vpop.f32.mrb[0].mxu0
  %1141 = vmatprep.mubr.bf16.mxu0 %v780
  %1142 = vmatmul.mubr.bf16.gmra.mrb[0].mxu0 %v532
  %v1143 = vpop.f32.mrb[0].mxu0
  %v1144 = vadd.f32 %v158, %v1143
  %v1145 = vpop.f32.mrb[0].mxu0
  %v1146 = vpop.f32.mrb[0].mxu0
  %v1147 = vadd.f32 %v158, %v1146
  %v1148 = vpop.f32.mrb[0].mxu0
  %1149 = vmatprep.mubr.bf16.mxu0 %v783
  %1150 = vmatmul.mubr.bf16.gmra.mrb[0].mxu0 %v534
  %v1151 = vpop.f32.mrb[0].mxu0
  %v1152 = vadd.f32 %v158, %v1151
  %v1153 = vpop.f32.mrb[0].mxu0
  %v1154 = vpop.f32.mrb[0].mxu0
  %v1155 = vadd.f32 %v158, %v1154
  %v1156 = vpop.f32.mrb[0].mxu0
  %1157 = vmatprep.mubr.bf16.mxu0 %v786
  %1158 = vmatmul.mubr.bf16.gmra.mrb[0].mxu0 %v536
  %v1159 = vpop.f32.mrb[0].mxu0
  %v1160 = vadd.f32 %v158, %v1159
  %v1161 = vpop.f32.mrb[0].mxu0
  %v1162 = vpop.f32.mrb[0].mxu0
  %v1163 = vadd.f32 %v158, %v1162
  %v1164 = vpop.f32.mrb[0].mxu0
  %1165 = vmatprep.mubr.bf16.mxu0 %v789
  %1166 = vmatmul.mubr.bf16.gmra.mrb[0].mxu0 %v538
  %v1167 = vpop.f32.mrb[0].mxu0
  %v1168 = vadd.f32 %v158, %v1167
  %v1169 = vpop.f32.mrb[0].mxu0
  %v1170 = vpop.f32.mrb[0].mxu0
  %v1171 = vadd.f32 %v158, %v1170
  %v1172 = vpop.f32.mrb[0].mxu0
  %1173 = vmatprep.mubr.bf16.mxu0 %v792
  %1174 = vmatmul.mubr.bf16.gmra.mrb[0].mxu0 %v540
  %v1175 = vpop.f32.mrb[0].mxu0
  %v1176 = vadd.f32 %v158, %v1175
  %v1177 = vpop.f32.mrb[0].mxu0
  %v1178 = vpop.f32.mrb[0].mxu0
  %v1179 = vadd.f32 %v158, %v1178
  %v1180 = vpop.f32.mrb[0].mxu0
  %1181 = vmatprep.mubr.bf16.mxu0 %v795
  %1182 = vmatmul.mubr.bf16.gmra.mrb[0].mxu0 %v542
  %v1183 = vpop.f32.mrb[0].mxu0
  %v1184 = vadd.f32 %v158, %v1183
  %v1185 = vpop.f32.mrb[0].mxu0
  %v1186 = vpop.f32.mrb[0].mxu0
  %v1187 = vadd.f32 %v158, %v1186
  %v1188 = vpop.f32.mrb[0].mxu0
  %1189 = vmatprep.mubr.bf16.mxu0 %v798
  %1190 = vmatmul.mubr.bf16.gmra.mrb[0].mxu0 %v544
  %v1191 = vpop.f32.mrb[0].mxu0
  %v1192 = vadd.f32 %v158, %v1191
  %v1193 = vpop.f32.mrb[0].mxu0
  %v1194 = vpop.f32.mrb[0].mxu0
  %v1195 = vadd.f32 %v158, %v1194
  %v1196 = vpop.f32.mrb[0].mxu0
  %1197 = vmatprep.mubr.bf16.mxu0 %v801
  %1198 = vmatmul.mubr.bf16.gmra.mrb[0].mxu0 %v546
  %v1199 = vpop.f32.mrb[0].mxu0
  %v1200 = vadd.f32 %v158, %v1199
  %v1201 = vpop.f32.mrb[0].mxu0
  %v1202 = vpop.f32.mrb[0].mxu0
  %v1203 = vadd.f32 %v158, %v1202
  %v1204 = vpop.f32.mrb[0].mxu0
  %1205 = vmatprep.mubr.bf16.mxu0 %v804
  %1206 = vmatmul.mubr.bf16.gmra.mrb[0].mxu0 %v548
  %v1207 = vpop.f32.mrb[0].mxu0
  %v1208 = vadd.f32 %v158, %v1207
  %v1209 = vpop.f32.mrb[0].mxu0
  %v1210 = vpop.f32.mrb[0].mxu0
  %v1211 = vadd.f32 %v158, %v1210
  %v1212 = vpop.f32.mrb[0].mxu0
  %1213 = vmatprep.mubr.bf16.mxu0 %v807
  %1214 = vmatmul.mubr.bf16.gmra.mrb[0].mxu0 %v550
  %v1215 = vpop.f32.mrb[0].mxu0
  %v1216 = vadd.f32 %v158, %v1215
  %v1217 = vpop.f32.mrb[0].mxu0
  %v1218 = vpop.f32.mrb[0].mxu0
  %v1219 = vadd.f32 %v158, %v1218
  %v1220 = vpop.f32.mrb[0].mxu0
  %1221 = vmatprep.mubr.bf16.mxu0 %v810
  %1222 = vmatmul.mubr.bf16.gmra.mrb[0].mxu0 %v552
  %v1223 = vpop.f32.mrb[0].mxu0
  %v1224 = vadd.f32 %v158, %v1223
  %v1225 = vpop.f32.mrb[0].mxu0
  %v1226 = vpop.f32.mrb[0].mxu0
  %v1227 = vadd.f32 %v158, %v1226
  %v1228 = vpop.f32.mrb[0].mxu0
  %1229 = vmatprep.mubr.bf16.mxu0 %v813
  %1230 = vmatmul.mubr.bf16.gmra.mrb[0].mxu0 %v554
  %v1231 = vpop.f32.mrb[0].mxu0
  %v1232 = vadd.f32 %v158, %v1231
  %v1233 = vpop.f32.mrb[0].mxu0
  %v1234 = vpop.f32.mrb[0].mxu0
  %v1235 = vadd.f32 %v158, %v1234
  %v1236 = vpop.f32.mrb[0].mxu0
  %1237 = vmatprep.mubr.bf16.mxu0 %v816
  %1238 = vmatmul.mubr.bf16.gmra.mrb[0].mxu0 %v556
  %v1239 = vpop.f32.mrb[0].mxu0
  %v1240 = vadd.f32 %v158, %v1239
  %v1241 = vpop.f32.mrb[0].mxu0
  %v1242 = vpop.f32.mrb[0].mxu0
  %v1243 = vadd.f32 %v158, %v1242
  %v1244 = vpop.f32.mrb[0].mxu0
  %1245 = vmatprep.mubr.bf16.mxu0 %v819
  %1246 = vmatmul.mubr.bf16.gmra.mrb[0].mxu0 %v558
  %v1247 = vpop.f32.mrb[0].mxu0
  %v1248 = vadd.f32 %v158, %v1247
  %v1249 = vpop.f32.mrb[0].mxu0
  %v1250 = vpop.f32.mrb[0].mxu0
  %v1251 = vadd.f32 %v158, %v1250
  %v1252 = vpop.f32.mrb[0].mxu0
  %1253 = vdwg.mxu0
  %v1254 = vmax.f32 %v856, 0.0
  %v1255 = vmax.f32 %v859, 0.0
  %v1256 = vmax.f32 %v864, 0.0
  %v1257 = vmax.f32 %v867, 0.0
  %v1258 = vmax.f32 %v872, 0.0
  %v1259 = vmax.f32 %v875, 0.0
  %v1260 = vmax.f32 %v880, 0.0
  %v1261 = vmax.f32 %v883, 0.0
  %v1262 = vmax.f32 %v888, 0.0
  %v1263 = vmax.f32 %v891, 0.0
  %v1264 = vmax.f32 %v896, 0.0
  %v1265 = vmax.f32 %v899, 0.0
  %v1266 = vmax.f32 %v904, 0.0
  %v1267 = vmax.f32 %v907, 0.0
  %v1268 = vmax.f32 %v912, 0.0
  %v1269 = vmax.f32 %v915, 0.0
  %v1270 = vmax.f32 %v920, 0.0
  %v1271 = vmax.f32 %v923, 0.0
  %v1272 = vmax.f32 %v928, 0.0
  %v1273 = vmax.f32 %v931, 0.0
  %v1274 = vmax.f32 %v936, 0.0
  %v1275 = vmax.f32 %v939, 0.0
  %v1276 = vmax.f32 %v944, 0.0
  %v1277 = vmax.f32 %v947, 0.0
  %v1278 = vmax.f32 %v952, 0.0
  %v1279 = vmax.f32 %v955, 0.0
  %v1280 = vmax.f32 %v960, 0.0
  %v1281 = vmax.f32 %v963, 0.0
  %v1282 = vmax.f32 %v968, 0.0
  %v1283 = vmax.f32 %v971, 0.0
  %v1284 = vmax.f32 %v976, 0.0
  %v1285 = vmax.f32 %v979, 0.0
  %v1286 = vmax.f32 %v984, 0.0
  %v1287 = vmax.f32 %v987, 0.0
  %v1288 = vmax.f32 %v992, 0.0
  %v1289 = vmax.f32 %v995, 0.0
  %v1290 = vmax.f32 %v1000, 0.0
  %v1291 = vmax.f32 %v1003, 0.0
  %v1292 = vmax.f32 %v1008, 0.0
  %v1293 = vmax.f32 %v1011, 0.0
  %v1294 = vmax.f32 %v1016, 0.0
  %v1295 = vmax.f32 %v1019, 0.0
  %v1296 = vmax.f32 %v1024, 0.0
  %v1297 = vmax.f32 %v1027, 0.0
  %v1298 = vmax.f32 %v1032, 0.0
  %v1299 = vmax.f32 %v1035, 0.0
  %v1300 = vmax.f32 %v1040, 0.0
  %v1301 = vmax.f32 %v1043, 0.0
  %v1302 = vmax.f32 %v1048, 0.0
  %v1303 = vmax.f32 %v1051, 0.0
  %v1304 = vmax.f32 %v1056, 0.0
  %v1305 = vmax.f32 %v1059, 0.0
  %v1306 = vmax.f32 %v1064, 0.0
  %v1307 = vmax.f32 %v1067, 0.0
  %v1308 = vmax.f32 %v1072, 0.0
  %v1309 = vmax.f32 %v1075, 0.0
  %v1310 = vmax.f32 %v1080, 0.0
  %v1311 = vmax.f32 %v1083, 0.0
  %v1312 = vmax.f32 %v1088, 0.0
  %v1313 = vmax.f32 %v1091, 0.0
  %v1314 = vmax.f32 %v1096, 0.0
  %v1315 = vmax.f32 %v1099, 0.0
  %v1316 = vmax.f32 %v1104, 0.0
  %v1317 = vmax.f32 %v1107, 0.0
  %v1318 = vmax.f32 %v1112, 0.0
  %v1319 = vmax.f32 %v1115, 0.0
  %v1320 = vmax.f32 %v1120, 0.0
  %v1321 = vmax.f32 %v1123, 0.0
  %v1322 = vmax.f32 %v1128, 0.0
  %v1323 = vmax.f32 %v1131, 0.0
  %v1324 = vmax.f32 %v1136, 0.0
  %v1325 = vmax.f32 %v1139, 0.0
  %v1326 = vmax.f32 %v1144, 0.0
  %v1327 = vmax.f32 %v1147, 0.0
  %v1328 = vmax.f32 %v1152, 0.0
  %v1329 = vmax.f32 %v1155, 0.0
  %v1330 = vmax.f32 %v1160, 0.0
  %v1331 = vmax.f32 %v1163, 0.0
  %v1332 = vmax.f32 %v1168, 0.0
  %v1333 = vmax.f32 %v1171, 0.0
  %v1334 = vmax.f32 %v1176, 0.0
  %v1335 = vmax.f32 %v1179, 0.0
  %v1336 = vmax.f32 %v1184, 0.0
  %v1337 = vmax.f32 %v1187, 0.0
  %v1338 = vmax.f32 %v1192, 0.0
  %v1339 = vmax.f32 %v1195, 0.0
  %v1340 = vmax.f32 %v1200, 0.0
  %v1341 = vmax.f32 %v1203, 0.0
  %v1342 = vmax.f32 %v1208, 0.0
  %v1343 = vmax.f32 %v1211, 0.0
  %v1344 = vmax.f32 %v1216, 0.0
  %v1345 = vmax.f32 %v1219, 0.0
  %v1346 = vmax.f32 %v1224, 0.0
  %v1347 = vmax.f32 %v1227, 0.0
  %v1348 = vmax.f32 %v1232, 0.0
  %v1349 = vmax.f32 %v1235, 0.0
  %v1350 = vmax.f32 %v1240, 0.0
  %v1351 = vmax.f32 %v1243, 0.0
  %v1352 = vmax.f32 %v1248, 0.0
  %v1353 = vmax.f32 %v1251, 0.0
  %v1354 = vadd.f32 %v1254, %v1279
  %v1355 = vadd.f32 %v1255, %v1280
  %v1356 = vadd.f32 %v1256, %v1281
  %v1357 = vadd.f32 %v1257, %v1282
  %v1358 = vadd.f32 %v1258, %v1283
  %v1359 = vadd.f32 %v1259, %v1284
  %v1360 = vadd.f32 %v1260, %v1285
  %v1361 = vadd.f32 %v1261, %v1286
  %v1362 = vadd.f32 %v1262, %v1287
  %v1363 = vadd.f32 %v1263, %v1288
  %v1364 = vadd.f32 %v1264, %v1289
  %v1365 = vadd.f32 %v1265, %v1290
  %v1366 = vadd.f32 %v1266, %v1291
  %v1367 = vadd.f32 %v1267, %v1292
  %v1368 = vadd.f32 %v1268, %v1293
  %v1369 = vadd.f32 %v1269, %v1294
  %v1370 = vadd.f32 %v1270, %v1295
  %v1371 = vadd.f32 %v1271, %v1296
  %v1372 = vadd.f32 %v1272, %v1297
  %v1373 = vadd.f32 %v1273, %v1298
  %v1374 = vadd.f32 %v1274, %v1299
  %v1375 = vadd.f32 %v1275, %v1300
  %v1376 = vadd.f32 %v1276, %v1301
  %v1377 = vadd.f32 %v1277, %v1302
  %v1378 = vadd.f32 %v1278, %v1303
  %v1379 = vadd.f32 %v1354, %v1304
  %v1380 = vadd.f32 %v1355, %v1305
  %v1381 = vadd.f32 %v1356, %v1306
  %v1382 = vadd.f32 %v1357, %v1307
  %v1383 = vadd.f32 %v1358, %v1308
  %v1384 = vadd.f32 %v1359, %v1309
  %v1385 = vadd.f32 %v1360, %v1310
  %v1386 = vadd.f32 %v1361, %v1311
  %v1387 = vadd.f32 %v1362, %v1312
  %v1388 = vadd.f32 %v1363, %v1313
  %v1389 = vadd.f32 %v1364, %v1314
  %v1390 = vadd.f32 %v1365, %v1315
  %v1391 = vadd.f32 %v1366, %v1316
  %v1392 = vadd.f32 %v1367, %v1317
  %v1393 = vadd.f32 %v1368, %v1318
  %v1394 = vadd.f32 %v1369, %v1319
  %v1395 = vadd.f32 %v1370, %v1320
  %v1396 = vadd.f32 %v1371, %v1321
  %v1397 = vadd.f32 %v1372, %v1322
  %v1398 = vadd.f32 %v1373, %v1323
  %v1399 = vadd.f32 %v1374, %v1324
  %v1400 = vadd.f32 %v1375, %v1325
  %v1401 = vadd.f32 %v1376, %v1326
  %v1402 = vadd.f32 %v1377, %v1327
  %v1403 = vadd.f32 %v1378, %v1328
  %v1404 = vadd.f32 %v1379, %v1329
  %v1405 = vadd.f32 %v1380, %v1330
  %v1406 = vadd.f32 %v1381, %v1331
  %v1407 = vadd.f32 %v1382, %v1332
  %v1408 = vadd.f32 %v1383, %v1333
  %v1409 = vadd.f32 %v1384, %v1334
  %v1410 = vadd.f32 %v1385, %v1335
  %v1411 = vadd.f32 %v1386, %v1336
  %v1412 = vadd.f32 %v1387, %v1337
  %v1413 = vadd.f32 %v1388, %v1338
  %v1414 = vadd.f32 %v1389, %v1339
  %v1415 = vadd.f32 %v1390, %v1340
  %v1416 = vadd.f32 %v1391, %v1341
  %v1417 = vadd.f32 %v1392, %v1342
  %v1418 = vadd.f32 %v1393, %v1343
  %v1419 = vadd.f32 %v1394, %v1344
  %v1420 = vadd.f32 %v1395, %v1345
  %v1421 = vadd.f32 %v1396, %v1346
  %v1422 = vadd.f32 %v1397, %v1347
  %v1423 = vadd.f32 %v1398, %v1348
  %v1424 = vadd.f32 %v1399, %v1349
  %v1425 = vadd.f32 %v1400, %v1350
  %v1426 = vadd.f32 %v1401, %v1351
  %v1427 = vadd.f32 %v1402, %v1352
  %v1428 = vadd.f32 %v1403, %v1353
  %v1429 = vmul.f32 %v1404, 0.25
  %v1430 = vmul.f32 %v1405, 0.25
  %v1431 = vmul.f32 %v1406, 0.25
  %v1432 = vmul.f32 %v1407, 0.25
  %v1433 = vmul.f32 %v1408, 0.25
  %v1434 = vmul.f32 %v1409, 0.25
  %v1435 = vmul.f32 %v1410, 0.25
  %v1436 = vmul.f32 %v1411, 0.25
  %v1437 = vmul.f32 %v1412, 0.25
  %v1438 = vmul.f32 %v1413, 0.25
  %v1439 = vmul.f32 %v1414, 0.25
  %v1440 = vmul.f32 %v1415, 0.25
  %v1441 = vmul.f32 %v1416, 0.25
  %v1442 = vmul.f32 %v1417, 0.25
  %v1443 = vmul.f32 %v1418, 0.25
  %v1444 = vmul.f32 %v1419, 0.25
  %v1445 = vmul.f32 %v1420, 0.25
  %v1446 = vmul.f32 %v1421, 0.25
  %v1447 = vmul.f32 %v1422, 0.25
  %v1448 = vmul.f32 %v1423, 0.25
  %v1449 = vmul.f32 %v1424, 0.25
  %v1450 = vmul.f32 %v1425, 0.25
  %v1451 = vmul.f32 %v1426, 0.25
  %v1452 = vmul.f32 %v1427, 0.25
  %v1453 = vmul.f32 %v1428, 0.25
  %v1454 = vpack.c.bf16 %v1430, %v1429
  %v1455 = vpack.c.bf16 %v1432, %v1431
  %v1456 = vpack.c.bf16 %v1434, %v1433
  %v1457 = vpack.c.bf16 %v1436, %v1435
  %v1458 = vpack.c.bf16 %v1438, %v1437
  %v1459 = vpack.c.bf16 %v1440, %v1439
  %v1460 = vpack.c.bf16 %v1442, %v1441
  %v1461 = vpack.c.bf16 %v1444, %v1443
  %v1462 = vpack.c.bf16 %v1446, %v1445
  %v1463 = vpack.c.bf16 %v1448, %v1447
  %v1464 = vpack.c.bf16 %v1450, %v1449
  %v1465 = vpack.c.bf16 %v1452, %v1451
  %v1466 = vpack.c.bf16 %v1453, %v1453
  %v1467 = vld [vmem:[%s3] sm:$0xf]
  %v1468 = vld [vmem:[%s3 + $0x4] sm:$0xf]
  %v1469 = vld [vmem:[%s3 + $0x8] sm:$0xf]
  %v1470 = vld [vmem:[%s3 + $0xc] sm:$0xf]
  %v1472 = vrot.slane %v1454, 4
  %v1475 = vunpack.c.l.b16 %v1469
  %v1476 = vunpack.c.l.b16 %v1470
  %v1477 = vpack.c.b16 %v1476, %v1475
  %vm1479 = vcmask 130048
  %v1481 = vsel %vm1479, %v1472, 0
  %1483 = vmatprep.subr.bf16.mxu0 0
  %1484 = vmatpush1.bf16.msra.mxu0 %v1477
  %1485 = vmatprep.subr.bf16.mxu0 0
  %1486 = vmatpush1.bf16.msra.mxu0 0
  %1487 = vmatprep.subr.bf16.mxu0 0
  %1488 = vmatpush1.bf16.msra.mxu0 0
  %1489 = vmatprep.subr.bf16.mxu0 0
  %1490 = vmatpush1.bf16.msra.mxu0 0
  %1491 = vmatprep.subr.bf16.mxu0 0
  %1492 = vmatpush1.bf16.msra.mxu0 0
  %1493 = vmatprep.subr.bf16.mxu0 0
  %1494 = vmatpush1.bf16.msra.mxu0 0
  %1495 = vmatprep.subr.bf16.mxu0 0
  %1496 = vmatpush1.bf16.msra.mxu0 0
  %1497 = vmatprep.subr.bf16.mxu0 0
  %1498 = vmatpush1.bf16.msra.mxu0 0
  %1499 = vmatprep.subr.bf16.mxu0 0
  %1500 = vmatpush1.bf16.msra.mxu0 0
  %1501 = vmatprep.subr.bf16.mxu0 0
  %1502 = vmatpush1.bf16.msra.mxu0 0
  %1503 = vmatprep.subr.bf16.mxu0 0
  %1504 = vmatpush1.bf16.msra.mxu0 0
  %1505 = vmatprep.subr.bf16.mxu0 0
  %1506 = vmatpush1.bf16.msra.mxu0 0
  %1507 = vmatprep.subr.bf16.mxu0 0
  %1508 = vmatpush1.bf16.msra.mxu0 0
  %1509 = vmatprep.subr.bf16.mxu0 0
  %1510 = vmatpush1.bf16.msra.mxu0 0
  %1511 = vmatprep.subr.bf16.mxu0 0
  %1512 = vmatpush1.bf16.msra.mxu0 0
  %1513 = vmatprep.subr.bf16.mxu0 0
  %1514 = vmatpush1.bf16.msra.mxu0 0
  %1515 = vmatprep.mubr.bf16.mxu0 0
  %1516 = vmatmul.mubr.bf16.gmra.mrb[0].mxu0 %v1481
  %v1517 = vpop.f32.mrb[0].mxu0
  %v1518 = vadd.f32 0.0, %v1517
  %v1519 = vpop.f32.mrb[0].mxu0
  %v1520 = vpop.f32.mrb[0].mxu0
  %v1521 = vpop.f32.mrb[0].mxu0
  %1522 = vdwg.mxu0
  %v1525 = vunpack.c.l.b16 %v1467
  %v1526 = vunpack.c.l.b16 %v1468
  %v1527 = vpack.c.b16 %v1526, %v1525
  %v1530 = vsel %vm1479, %v1454, 0
  %1532 = vmatprep.subr.bf16.mxu0 0
  %1533 = vmatpush1.bf16.msra.mxu0 %v1527
  %1534 = vmatprep.subr.bf16.mxu0 0
  %1535 = vmatpush1.bf16.msra.mxu0 0
  %1536 = vmatprep.subr.bf16.mxu0 0
  %1537 = vmatpush1.bf16.msra.mxu0 0
  %1538 = vmatprep.subr.bf16.mxu0 0
  %1539 = vmatpush1.bf16.msra.mxu0 0
  %1540 = vmatprep.subr.bf16.mxu0 0
  %1541 = vmatpush1.bf16.msra.mxu0 0
  %1542 = vmatprep.subr.bf16.mxu0 0
  %1543 = vmatpush1.bf16.msra.mxu0 0
  %1544 = vmatprep.subr.bf16.mxu0 0
  %1545 = vmatpush1.bf16.msra.mxu0 0
  %1546 = vmatprep.subr.bf16.mxu0 0
  %1547 = vmatpush1.bf16.msra.mxu0 0
  %1548 = vmatprep.subr.bf16.mxu0 0
  %1549 = vmatpush1.bf16.msra.mxu0 0
  %1550 = vmatprep.subr.bf16.mxu0 0
  %1551 = vmatpush1.bf16.msra.mxu0 0
  %1552 = vmatprep.subr.bf16.mxu0 0
  %1553 = vmatpush1.bf16.msra.mxu0 0
  %1554 = vmatprep.subr.bf16.mxu0 0
  %1555 = vmatpush1.bf16.msra.mxu0 0
  %1556 = vmatprep.subr.bf16.mxu0 0
  %1557 = vmatpush1.bf16.msra.mxu0 0
  %1558 = vmatprep.subr.bf16.mxu0 0
  %1559 = vmatpush1.bf16.msra.mxu0 0
  %1560 = vmatprep.subr.bf16.mxu0 0
  %1561 = vmatpush1.bf16.msra.mxu0 0
  %1562 = vmatprep.subr.bf16.mxu0 0
  %1563 = vmatpush1.bf16.msra.mxu0 0
  %1564 = vmatprep.mubr.bf16.mxu0 0
  %1565 = vmatmul.mubr.bf16.gmra.mrb[0].mxu0 %v1530
  %v1566 = vpop.f32.mrb[0].mxu0
  %v1567 = vadd.f32 %v1518, %v1566
  %v1568 = vpop.f32.mrb[0].mxu0
  %v1569 = vpop.f32.mrb[0].mxu0
  %v1570 = vpop.f32.mrb[0].mxu0
  %1571 = vdwg.mxu0
  %v1572 = vld [vmem:[%s3 + $0x10] sm:$0xf]
  %v1573 = vld [vmem:[%s3 + $0x14] sm:$0xf]
  %v1576 = vunpack.c.l.b16 %v1572
  %v1577 = vunpack.c.l.b16 %v1573
  %v1578 = vpack.c.b16 %v1577, %v1576
  %v1581 = vsel %vm1479, %v1455, 0
  %1583 = vmatprep.subr.bf16.mxu0 0
  %1584 = vmatpush1.bf16.msra.mxu0 %v1578
  %1585 = vmatprep.subr.bf16.mxu0 0
  %1586 = vmatpush1.bf16.msra.mxu0 0
  %1587 = vmatprep.subr.bf16.mxu0 0
  %1588 = vmatpush1.bf16.msra.mxu0 0
  %1589 = vmatprep.subr.bf16.mxu0 0
  %1590 = vmatpush1.bf16.msra.mxu0 0
  %1591 = vmatprep.subr.bf16.mxu0 0
  %1592 = vmatpush1.bf16.msra.mxu0 0
  %1593 = vmatprep.subr.bf16.mxu0 0
  %1594 = vmatpush1.bf16.msra.mxu0 0
  %1595 = vmatprep.subr.bf16.mxu0 0
  %1596 = vmatpush1.bf16.msra.mxu0 0
  %1597 = vmatprep.subr.bf16.mxu0 0
  %1598 = vmatpush1.bf16.msra.mxu0 0
  %1599 = vmatprep.subr.bf16.mxu0 0
  %1600 = vmatpush1.bf16.msra.mxu0 0
  %1601 = vmatprep.subr.bf16.mxu0 0
  %1602 = vmatpush1.bf16.msra.mxu0 0
  %1603 = vmatprep.subr.bf16.mxu0 0
  %1604 = vmatpush1.bf16.msra.mxu0 0
  %1605 = vmatprep.subr.bf16.mxu0 0
  %1606 = vmatpush1.bf16.msra.mxu0 0
  %1607 = vmatprep.subr.bf16.mxu0 0
  %1608 = vmatpush1.bf16.msra.mxu0 0
  %1609 = vmatprep.subr.bf16.mxu0 0
  %1610 = vmatpush1.bf16.msra.mxu0 0
  %1611 = vmatprep.subr.bf16.mxu0 0
  %1612 = vmatpush1.bf16.msra.mxu0 0
  %1613 = vmatprep.subr.bf16.mxu0 0
  %1614 = vmatpush1.bf16.msra.mxu0 0
  %1615 = vmatprep.mubr.bf16.mxu0 0
  %1616 = vmatmul.mubr.bf16.gmra.mrb[0].mxu0 %v1581
  %v1617 = vpop.f32.mrb[0].mxu0
  %v1618 = vadd.f32 0.0, %v1617
  %v1619 = vpop.f32.mrb[0].mxu0
  %v1620 = vpop.f32.mrb[0].mxu0
  %v1621 = vpop.f32.mrb[0].mxu0
  %1622 = vdwg.mxu0
  %v1623 = vadd.f32 %v1567, %v1618
  %v1624 = vld [vmem:[%s3 + $0x18] sm:$0xf]
  %v1625 = vld [vmem:[%s3 + $0x1c] sm:$0xf]
  %v1627 = vrot.slane %v1455, 4
  %v1630 = vunpack.c.l.b16 %v1624
  %v1631 = vunpack.c.l.b16 %v1625
  %v1632 = vpack.c.b16 %v1631, %v1630
  %v1635 = vsel %vm1479, %v1627, 0
  %1637 = vmatprep.subr.bf16.mxu0 0
  %1638 = vmatpush1.bf16.msra.mxu0 %v1632
  %1639 = vmatprep.subr.bf16.mxu0 0
  %1640 = vmatpush1.bf16.msra.mxu0 0
  %1641 = vmatprep.subr.bf16.mxu0 0
  %1642 = vmatpush1.bf16.msra.mxu0 0
  %1643 = vmatprep.subr.bf16.mxu0 0
  %1644 = vmatpush1.bf16.msra.mxu0 0
  %1645 = vmatprep.subr.bf16.mxu0 0
  %1646 = vmatpush1.bf16.msra.mxu0 0
  %1647 = vmatprep.subr.bf16.mxu0 0
  %1648 = vmatpush1.bf16.msra.mxu0 0
  %1649 = vmatprep.subr.bf16.mxu0 0
  %1650 = vmatpush1.bf16.msra.mxu0 0
  %1651 = vmatprep.subr.bf16.mxu0 0
  %1652 = vmatpush1.bf16.msra.mxu0 0
  %1653 = vmatprep.subr.bf16.mxu0 0
  %1654 = vmatpush1.bf16.msra.mxu0 0
  %1655 = vmatprep.subr.bf16.mxu0 0
  %1656 = vmatpush1.bf16.msra.mxu0 0
  %1657 = vmatprep.subr.bf16.mxu0 0
  %1658 = vmatpush1.bf16.msra.mxu0 0
  %1659 = vmatprep.subr.bf16.mxu0 0
  %1660 = vmatpush1.bf16.msra.mxu0 0
  %1661 = vmatprep.subr.bf16.mxu0 0
  %1662 = vmatpush1.bf16.msra.mxu0 0
  %1663 = vmatprep.subr.bf16.mxu0 0
  %1664 = vmatpush1.bf16.msra.mxu0 0
  %1665 = vmatprep.subr.bf16.mxu0 0
  %1666 = vmatpush1.bf16.msra.mxu0 0
  %1667 = vmatprep.subr.bf16.mxu0 0
  %1668 = vmatpush1.bf16.msra.mxu0 0
  %1669 = vmatprep.mubr.bf16.mxu0 0
  %1670 = vmatmul.mubr.bf16.gmra.mrb[0].mxu0 %v1635
  %v1671 = vpop.f32.mrb[0].mxu0
  %v1672 = vadd.f32 0.0, %v1671
  %v1673 = vpop.f32.mrb[0].mxu0
  %v1674 = vpop.f32.mrb[0].mxu0
  %v1675 = vpop.f32.mrb[0].mxu0
  %1676 = vdwg.mxu0
  %v1677 = vadd.f32 %v1623, %v1672
  %v1678 = vld [vmem:[%s3 + $0x20] sm:$0xf]
  %v1679 = vld [vmem:[%s3 + $0x24] sm:$0xf]
  %v1682 = vunpack.c.l.b16 %v1678
  %v1683 = vunpack.c.l.b16 %v1679
  %v1684 = vpack.c.b16 %v1683, %v1682
  %v1687 = vsel %vm1479, %v1456, 0
  %1689 = vmatprep.subr.bf16.mxu0 0
  %1690 = vmatpush1.bf16.msra.mxu0 %v1684
  %1691 = vmatprep.subr.bf16.mxu0 0
  %1692 = vmatpush1.bf16.msra.mxu0 0
  %1693 = vmatprep.subr.bf16.mxu0 0
  %1694 = vmatpush1.bf16.msra.mxu0 0
  %1695 = vmatprep.subr.bf16.mxu0 0
  %1696 = vmatpush1.bf16.msra.mxu0 0
  %1697 = vmatprep.subr.bf16.mxu0 0
  %1698 = vmatpush1.bf16.msra.mxu0 0
  %1699 = vmatprep.subr.bf16.mxu0 0
  %1700 = vmatpush1.bf16.msra.mxu0 0
  %1701 = vmatprep.subr.bf16.mxu0 0
  %1702 = vmatpush1.bf16.msra.mxu0 0
  %1703 = vmatprep.subr.bf16.mxu0 0
  %1704 = vmatpush1.bf16.msra.mxu0 0
  %1705 = vmatprep.subr.bf16.mxu0 0
  %1706 = vmatpush1.bf16.msra.mxu0 0
  %1707 = vmatprep.subr.bf16.mxu0 0
  %1708 = vmatpush1.bf16.msra.mxu0 0
  %1709 = vmatprep.subr.bf16.mxu0 0
  %1710 = vmatpush1.bf16.msra.mxu0 0
  %1711 = vmatprep.subr.bf16.mxu0 0
  %1712 = vmatpush1.bf16.msra.mxu0 0
  %1713 = vmatprep.subr.bf16.mxu0 0
  %1714 = vmatpush1.bf16.msra.mxu0 0
  %1715 = vmatprep.subr.bf16.mxu0 0
  %1716 = vmatpush1.bf16.msra.mxu0 0
  %1717 = vmatprep.subr.bf16.mxu0 0
  %1718 = vmatpush1.bf16.msra.mxu0 0
  %1719 = vmatprep.subr.bf16.mxu0 0
  %1720 = vmatpush1.bf16.msra.mxu0 0
  %1721 = vmatprep.mubr.bf16.mxu0 0
  %1722 = vmatmul.mubr.bf16.gmra.mrb[0].mxu0 %v1687
  %v1723 = vpop.f32.mrb[0].mxu0
  %v1724 = vadd.f32 0.0, %v1723
  %v1725 = vpop.f32.mrb[0].mxu0
  %v1726 = vpop.f32.mrb[0].mxu0
  %v1727 = vpop.f32.mrb[0].mxu0
  %1728 = vdwg.mxu0
  %v1729 = vadd.f32 %v1677, %v1724
  %v1730 = vld [vmem:[%s3 + $0x28] sm:$0xf]
  %v1731 = vld [vmem:[%s3 + $0x2c] sm:$0xf]
  %v1733 = vrot.slane %v1456, 4
  %v1736 = vunpack.c.l.b16 %v1730
  %v1737 = vunpack.c.l.b16 %v1731
  %v1738 = vpack.c.b16 %v1737, %v1736
  %v1741 = vsel %vm1479, %v1733, 0
  %1743 = vmatprep.subr.bf16.mxu0 0
  %1744 = vmatpush1.bf16.msra.mxu0 %v1738
  %1745 = vmatprep.subr.bf16.mxu0 0
  %1746 = vmatpush1.bf16.msra.mxu0 0
  %1747 = vmatprep.subr.bf16.mxu0 0
  %1748 = vmatpush1.bf16.msra.mxu0 0
  %1749 = vmatprep.subr.bf16.mxu0 0
  %1750 = vmatpush1.bf16.msra.mxu0 0
  %1751 = vmatprep.subr.bf16.mxu0 0
  %1752 = vmatpush1.bf16.msra.mxu0 0
  %1753 = vmatprep.subr.bf16.mxu0 0
  %1754 = vmatpush1.bf16.msra.mxu0 0
  %1755 = vmatprep.subr.bf16.mxu0 0
  %1756 = vmatpush1.bf16.msra.mxu0 0
  %1757 = vmatprep.subr.bf16.mxu0 0
  %1758 = vmatpush1.bf16.msra.mxu0 0
  %1759 = vmatprep.subr.bf16.mxu0 0
  %1760 = vmatpush1.bf16.msra.mxu0 0
  %1761 = vmatprep.subr.bf16.mxu0 0
  %1762 = vmatpush1.bf16.msra.mxu0 0
  %1763 = vmatprep.subr.bf16.mxu0 0
  %1764 = vmatpush1.bf16.msra.mxu0 0
  %1765 = vmatprep.subr.bf16.mxu0 0
  %1766 = vmatpush1.bf16.msra.mxu0 0
  %1767 = vmatprep.subr.bf16.mxu0 0
  %1768 = vmatpush1.bf16.msra.mxu0 0
  %1769 = vmatprep.subr.bf16.mxu0 0
  %1770 = vmatpush1.bf16.msra.mxu0 0
  %1771 = vmatprep.subr.bf16.mxu0 0
  %1772 = vmatpush1.bf16.msra.mxu0 0
  %1773 = vmatprep.subr.bf16.mxu0 0
  %1774 = vmatpush1.bf16.msra.mxu0 0
  %1775 = vmatprep.mubr.bf16.mxu0 0
  %1776 = vmatmul.mubr.bf16.gmra.mrb[0].mxu0 %v1741
  %v1777 = vpop.f32.mrb[0].mxu0
  %v1778 = vadd.f32 0.0, %v1777
  %v1779 = vpop.f32.mrb[0].mxu0
  %v1780 = vpop.f32.mrb[0].mxu0
  %v1781 = vpop.f32.mrb[0].mxu0
  %1782 = vdwg.mxu0
  %v1783 = vadd.f32 %v1729, %v1778
  %v1784 = vld [vmem:[%s3 + $0x30] sm:$0xf]
  %v1785 = vld [vmem:[%s3 + $0x34] sm:$0xf]
  %v1788 = vunpack.c.l.b16 %v1784
  %v1789 = vunpack.c.l.b16 %v1785
  %v1790 = vpack.c.b16 %v1789, %v1788
  %v1793 = vsel %vm1479, %v1457, 0
  %1795 = vmatprep.subr.bf16.mxu0 0
  %1796 = vmatpush1.bf16.msra.mxu0 %v1790
  %1797 = vmatprep.subr.bf16.mxu0 0
  %1798 = vmatpush1.bf16.msra.mxu0 0
  %1799 = vmatprep.subr.bf16.mxu0 0
  %1800 = vmatpush1.bf16.msra.mxu0 0
  %1801 = vmatprep.subr.bf16.mxu0 0
  %1802 = vmatpush1.bf16.msra.mxu0 0
  %1803 = vmatprep.subr.bf16.mxu0 0
  %1804 = vmatpush1.bf16.msra.mxu0 0
  %1805 = vmatprep.subr.bf16.mxu0 0
  %1806 = vmatpush1.bf16.msra.mxu0 0
  %1807 = vmatprep.subr.bf16.mxu0 0
  %1808 = vmatpush1.bf16.msra.mxu0 0
  %1809 = vmatprep.subr.bf16.mxu0 0
  %1810 = vmatpush1.bf16.msra.mxu0 0
  %1811 = vmatprep.subr.bf16.mxu0 0
  %1812 = vmatpush1.bf16.msra.mxu0 0
  %1813 = vmatprep.subr.bf16.mxu0 0
  %1814 = vmatpush1.bf16.msra.mxu0 0
  %1815 = vmatprep.subr.bf16.mxu0 0
  %1816 = vmatpush1.bf16.msra.mxu0 0
  %1817 = vmatprep.subr.bf16.mxu0 0
  %1818 = vmatpush1.bf16.msra.mxu0 0
  %1819 = vmatprep.subr.bf16.mxu0 0
  %1820 = vmatpush1.bf16.msra.mxu0 0
  %1821 = vmatprep.subr.bf16.mxu0 0
  %1822 = vmatpush1.bf16.msra.mxu0 0
  %1823 = vmatprep.subr.bf16.mxu0 0
  %1824 = vmatpush1.bf16.msra.mxu0 0
  %1825 = vmatprep.subr.bf16.mxu0 0
  %1826 = vmatpush1.bf16.msra.mxu0 0
  %1827 = vmatprep.mubr.bf16.mxu0 0
  %1828 = vmatmul.mubr.bf16.gmra.mrb[0].mxu0 %v1793
  %v1829 = vpop.f32.mrb[0].mxu0
  %v1830 = vadd.f32 0.0, %v1829
  %v1831 = vpop.f32.mrb[0].mxu0
  %v1832 = vpop.f32.mrb[0].mxu0
  %v1833 = vpop.f32.mrb[0].mxu0
  %1834 = vdwg.mxu0
  %v1835 = vadd.f32 %v1783, %v1830
  %v1836 = vld [vmem:[%s3 + $0x38] sm:$0xf]
  %v1837 = vld [vmem:[%s3 + $0x3c] sm:$0xf]
  %v1839 = vrot.slane %v1457, 4
  %v1842 = vunpack.c.l.b16 %v1836
  %v1843 = vunpack.c.l.b16 %v1837
  %v1844 = vpack.c.b16 %v1843, %v1842
  %v1847 = vsel %vm1479, %v1839, 0
  %1849 = vmatprep.subr.bf16.mxu0 0
  %1850 = vmatpush1.bf16.msra.mxu0 %v1844
  %1851 = vmatprep.subr.bf16.mxu0 0
  %1852 = vmatpush1.bf16.msra.mxu0 0
  %1853 = vmatprep.subr.bf16.mxu0 0
  %1854 = vmatpush1.bf16.msra.mxu0 0
  %1855 = vmatprep.subr.bf16.mxu0 0
  %1856 = vmatpush1.bf16.msra.mxu0 0
  %1857 = vmatprep.subr.bf16.mxu0 0
  %1858 = vmatpush1.bf16.msra.mxu0 0
  %1859 = vmatprep.subr.bf16.mxu0 0
  %1860 = vmatpush1.bf16.msra.mxu0 0
  %1861 = vmatprep.subr.bf16.mxu0 0
  %1862 = vmatpush1.bf16.msra.mxu0 0
  %1863 = vmatprep.subr.bf16.mxu0 0
  %1864 = vmatpush1.bf16.msra.mxu0 0
  %1865 = vmatprep.subr.bf16.mxu0 0
  %1866 = vmatpush1.bf16.msra.mxu0 0
  %1867 = vmatprep.subr.bf16.mxu0 0
  %1868 = vmatpush1.bf16.msra.mxu0 0
  %1869 = vmatprep.subr.bf16.mxu0 0
  %1870 = vmatpush1.bf16.msra.mxu0 0
  %1871 = vmatprep.subr.bf16.mxu0 0
  %1872 = vmatpush1.bf16.msra.mxu0 0
  %1873 = vmatprep.subr.bf16.mxu0 0
  %1874 = vmatpush1.bf16.msra.mxu0 0
  %1875 = vmatprep.subr.bf16.mxu0 0
  %1876 = vmatpush1.bf16.msra.mxu0 0
  %1877 = vmatprep.subr.bf16.mxu0 0
  %1878 = vmatpush1.bf16.msra.mxu0 0
  %1879 = vmatprep.subr.bf16.mxu0 0
  %1880 = vmatpush1.bf16.msra.mxu0 0
  %1881 = vmatprep.mubr.bf16.mxu0 0
  %1882 = vmatmul.mubr.bf16.gmra.mrb[0].mxu0 %v1847
  %v1883 = vpop.f32.mrb[0].mxu0
  %v1884 = vadd.f32 0.0, %v1883
  %v1885 = vpop.f32.mrb[0].mxu0
  %v1886 = vpop.f32.mrb[0].mxu0
  %v1887 = vpop.f32.mrb[0].mxu0
  %1888 = vdwg.mxu0
  %v1889 = vadd.f32 %v1835, %v1884
  %v1890 = vld [vmem:[%s3 + $0x40] sm:$0xf]
  %v1891 = vld [vmem:[%s3 + $0x44] sm:$0xf]
  %v1894 = vunpack.c.l.b16 %v1890
  %v1895 = vunpack.c.l.b16 %v1891
  %v1896 = vpack.c.b16 %v1895, %v1894
  %v1899 = vsel %vm1479, %v1458, 0
  %1901 = vmatprep.subr.bf16.mxu0 0
  %1902 = vmatpush1.bf16.msra.mxu0 %v1896
  %1903 = vmatprep.subr.bf16.mxu0 0
  %1904 = vmatpush1.bf16.msra.mxu0 0
  %1905 = vmatprep.subr.bf16.mxu0 0
  %1906 = vmatpush1.bf16.msra.mxu0 0
  %1907 = vmatprep.subr.bf16.mxu0 0
  %1908 = vmatpush1.bf16.msra.mxu0 0
  %1909 = vmatprep.subr.bf16.mxu0 0
  %1910 = vmatpush1.bf16.msra.mxu0 0
  %1911 = vmatprep.subr.bf16.mxu0 0
  %1912 = vmatpush1.bf16.msra.mxu0 0
  %1913 = vmatprep.subr.bf16.mxu0 0
  %1914 = vmatpush1.bf16.msra.mxu0 0
  %1915 = vmatprep.subr.bf16.mxu0 0
  %1916 = vmatpush1.bf16.msra.mxu0 0
  %1917 = vmatprep.subr.bf16.mxu0 0
  %1918 = vmatpush1.bf16.msra.mxu0 0
  %1919 = vmatprep.subr.bf16.mxu0 0
  %1920 = vmatpush1.bf16.msra.mxu0 0
  %1921 = vmatprep.subr.bf16.mxu0 0
  %1922 = vmatpush1.bf16.msra.mxu0 0
  %1923 = vmatprep.subr.bf16.mxu0 0
  %1924 = vmatpush1.bf16.msra.mxu0 0
  %1925 = vmatprep.subr.bf16.mxu0 0
  %1926 = vmatpush1.bf16.msra.mxu0 0
  %1927 = vmatprep.subr.bf16.mxu0 0
  %1928 = vmatpush1.bf16.msra.mxu0 0
  %1929 = vmatprep.subr.bf16.mxu0 0
  %1930 = vmatpush1.bf16.msra.mxu0 0
  %1931 = vmatprep.subr.bf16.mxu0 0
  %1932 = vmatpush1.bf16.msra.mxu0 0
  %1933 = vmatprep.mubr.bf16.mxu0 0
  %1934 = vmatmul.mubr.bf16.gmra.mrb[0].mxu0 %v1899
  %v1935 = vpop.f32.mrb[0].mxu0
  %v1936 = vadd.f32 0.0, %v1935
  %v1937 = vpop.f32.mrb[0].mxu0
  %v1938 = vpop.f32.mrb[0].mxu0
  %v1939 = vpop.f32.mrb[0].mxu0
  %1940 = vdwg.mxu0
  %v1941 = vadd.f32 %v1889, %v1936
  %v1942 = vld [vmem:[%s3 + $0x48] sm:$0xf]
  %v1943 = vld [vmem:[%s3 + $0x4c] sm:$0xf]
  %v1945 = vrot.slane %v1458, 4
  %v1948 = vunpack.c.l.b16 %v1942
  %v1949 = vunpack.c.l.b16 %v1943
  %v1950 = vpack.c.b16 %v1949, %v1948
  %v1953 = vsel %vm1479, %v1945, 0
  %1955 = vmatprep.subr.bf16.mxu0 0
  %1956 = vmatpush1.bf16.msra.mxu0 %v1950
  %1957 = vmatprep.subr.bf16.mxu0 0
  %1958 = vmatpush1.bf16.msra.mxu0 0
  %1959 = vmatprep.subr.bf16.mxu0 0
  %1960 = vmatpush1.bf16.msra.mxu0 0
  %1961 = vmatprep.subr.bf16.mxu0 0
  %1962 = vmatpush1.bf16.msra.mxu0 0
  %1963 = vmatprep.subr.bf16.mxu0 0
  %1964 = vmatpush1.bf16.msra.mxu0 0
  %1965 = vmatprep.subr.bf16.mxu0 0
  %1966 = vmatpush1.bf16.msra.mxu0 0
  %1967 = vmatprep.subr.bf16.mxu0 0
  %1968 = vmatpush1.bf16.msra.mxu0 0
  %1969 = vmatprep.subr.bf16.mxu0 0
  %1970 = vmatpush1.bf16.msra.mxu0 0
  %1971 = vmatprep.subr.bf16.mxu0 0
  %1972 = vmatpush1.bf16.msra.mxu0 0
  %1973 = vmatprep.subr.bf16.mxu0 0
  %1974 = vmatpush1.bf16.msra.mxu0 0
  %1975 = vmatprep.subr.bf16.mxu0 0
  %1976 = vmatpush1.bf16.msra.mxu0 0
  %1977 = vmatprep.subr.bf16.mxu0 0
  %1978 = vmatpush1.bf16.msra.mxu0 0
  %1979 = vmatprep.subr.bf16.mxu0 0
  %1980 = vmatpush1.bf16.msra.mxu0 0
  %1981 = vmatprep.subr.bf16.mxu0 0
  %1982 = vmatpush1.bf16.msra.mxu0 0
  %1983 = vmatprep.subr.bf16.mxu0 0
  %1984 = vmatpush1.bf16.msra.mxu0 0
  %1985 = vmatprep.subr.bf16.mxu0 0
  %1986 = vmatpush1.bf16.msra.mxu0 0
  %1987 = vmatprep.mubr.bf16.mxu0 0
  %1988 = vmatmul.mubr.bf16.gmra.mrb[0].mxu0 %v1953
  %v1989 = vpop.f32.mrb[0].mxu0
  %v1990 = vadd.f32 0.0, %v1989
  %v1991 = vpop.f32.mrb[0].mxu0
  %v1992 = vpop.f32.mrb[0].mxu0
  %v1993 = vpop.f32.mrb[0].mxu0
  %1994 = vdwg.mxu0
  %v1995 = vadd.f32 %v1941, %v1990
  %v1996 = vld [vmem:[%s3 + $0x50] sm:$0xf]
  %v1997 = vld [vmem:[%s3 + $0x54] sm:$0xf]
  %v2000 = vunpack.c.l.b16 %v1996
  %v2001 = vunpack.c.l.b16 %v1997
  %v2002 = vpack.c.b16 %v2001, %v2000
  %v2005 = vsel %vm1479, %v1459, 0
  %2007 = vmatprep.subr.bf16.mxu0 0
  %2008 = vmatpush1.bf16.msra.mxu0 %v2002
  %2009 = vmatprep.subr.bf16.mxu0 0
  %2010 = vmatpush1.bf16.msra.mxu0 0
  %2011 = vmatprep.subr.bf16.mxu0 0
  %2012 = vmatpush1.bf16.msra.mxu0 0
  %2013 = vmatprep.subr.bf16.mxu0 0
  %2014 = vmatpush1.bf16.msra.mxu0 0
  %2015 = vmatprep.subr.bf16.mxu0 0
  %2016 = vmatpush1.bf16.msra.mxu0 0
  %2017 = vmatprep.subr.bf16.mxu0 0
  %2018 = vmatpush1.bf16.msra.mxu0 0
  %2019 = vmatprep.subr.bf16.mxu0 0
  %2020 = vmatpush1.bf16.msra.mxu0 0
  %2021 = vmatprep.subr.bf16.mxu0 0
  %2022 = vmatpush1.bf16.msra.mxu0 0
  %2023 = vmatprep.subr.bf16.mxu0 0
  %2024 = vmatpush1.bf16.msra.mxu0 0
  %2025 = vmatprep.subr.bf16.mxu0 0
  %2026 = vmatpush1.bf16.msra.mxu0 0
  %2027 = vmatprep.subr.bf16.mxu0 0
  %2028 = vmatpush1.bf16.msra.mxu0 0
  %2029 = vmatprep.subr.bf16.mxu0 0
  %2030 = vmatpush1.bf16.msra.mxu0 0
  %2031 = vmatprep.subr.bf16.mxu0 0
  %2032 = vmatpush1.bf16.msra.mxu0 0
  %2033 = vmatprep.subr.bf16.mxu0 0
  %2034 = vmatpush1.bf16.msra.mxu0 0
  %2035 = vmatprep.subr.bf16.mxu0 0
  %2036 = vmatpush1.bf16.msra.mxu0 0
  %2037 = vmatprep.subr.bf16.mxu0 0
  %2038 = vmatpush1.bf16.msra.mxu0 0
  %2039 = vmatprep.mubr.bf16.mxu0 0
  %2040 = vmatmul.mubr.bf16.gmra.mrb[0].mxu0 %v2005
  %v2041 = vpop.f32.mrb[0].mxu0
  %v2042 = vadd.f32 0.0, %v2041
  %v2043 = vpop.f32.mrb[0].mxu0
  %v2044 = vpop.f32.mrb[0].mxu0
  %v2045 = vpop.f32.mrb[0].mxu0
  %2046 = vdwg.mxu0
  %v2047 = vadd.f32 %v1995, %v2042
  %v2048 = vld [vmem:[%s3 + $0x58] sm:$0xf]
  %v2049 = vld [vmem:[%s3 + $0x5c] sm:$0xf]
  %v2051 = vrot.slane %v1459, 4
  %v2054 = vunpack.c.l.b16 %v2048
  %v2055 = vunpack.c.l.b16 %v2049
  %v2056 = vpack.c.b16 %v2055, %v2054
  %v2059 = vsel %vm1479, %v2051, 0
  %2061 = vmatprep.subr.bf16.mxu0 0
  %2062 = vmatpush1.bf16.msra.mxu0 %v2056
  %2063 = vmatprep.subr.bf16.mxu0 0
  %2064 = vmatpush1.bf16.msra.mxu0 0
  %2065 = vmatprep.subr.bf16.mxu0 0
  %2066 = vmatpush1.bf16.msra.mxu0 0
  %2067 = vmatprep.subr.bf16.mxu0 0
  %2068 = vmatpush1.bf16.msra.mxu0 0
  %2069 = vmatprep.subr.bf16.mxu0 0
  %2070 = vmatpush1.bf16.msra.mxu0 0
  %2071 = vmatprep.subr.bf16.mxu0 0
  %2072 = vmatpush1.bf16.msra.mxu0 0
  %2073 = vmatprep.subr.bf16.mxu0 0
  %2074 = vmatpush1.bf16.msra.mxu0 0
  %2075 = vmatprep.subr.bf16.mxu0 0
  %2076 = vmatpush1.bf16.msra.mxu0 0
  %2077 = vmatprep.subr.bf16.mxu0 0
  %2078 = vmatpush1.bf16.msra.mxu0 0
  %2079 = vmatprep.subr.bf16.mxu0 0
  %2080 = vmatpush1.bf16.msra.mxu0 0
  %2081 = vmatprep.subr.bf16.mxu0 0
  %2082 = vmatpush1.bf16.msra.mxu0 0
  %2083 = vmatprep.subr.bf16.mxu0 0
  %2084 = vmatpush1.bf16.msra.mxu0 0
  %2085 = vmatprep.subr.bf16.mxu0 0
  %2086 = vmatpush1.bf16.msra.mxu0 0
  %2087 = vmatprep.subr.bf16.mxu0 0
  %2088 = vmatpush1.bf16.msra.mxu0 0
  %2089 = vmatprep.subr.bf16.mxu0 0
  %2090 = vmatpush1.bf16.msra.mxu0 0
  %2091 = vmatprep.subr.bf16.mxu0 0
  %2092 = vmatpush1.bf16.msra.mxu0 0
  %2093 = vmatprep.mubr.bf16.mxu0 0
  %2094 = vmatmul.mubr.bf16.gmra.mrb[0].mxu0 %v2059
  %v2095 = vpop.f32.mrb[0].mxu0
  %v2096 = vadd.f32 0.0, %v2095
  %v2097 = vpop.f32.mrb[0].mxu0
  %v2098 = vpop.f32.mrb[0].mxu0
  %v2099 = vpop.f32.mrb[0].mxu0
  %2100 = vdwg.mxu0
  %v2101 = vadd.f32 %v2047, %v2096
  %v2102 = vld [vmem:[%s3 + $0x60] sm:$0xf]
  %v2103 = vld [vmem:[%s3 + $0x64] sm:$0xf]
  %v2106 = vunpack.c.l.b16 %v2102
  %v2107 = vunpack.c.l.b16 %v2103
  %v2108 = vpack.c.b16 %v2107, %v2106
  %v2111 = vsel %vm1479, %v1460, 0
  %2113 = vmatprep.subr.bf16.mxu0 0
  %2114 = vmatpush1.bf16.msra.mxu0 %v2108
  %2115 = vmatprep.subr.bf16.mxu0 0
  %2116 = vmatpush1.bf16.msra.mxu0 0
  %2117 = vmatprep.subr.bf16.mxu0 0
  %2118 = vmatpush1.bf16.msra.mxu0 0
  %2119 = vmatprep.subr.bf16.mxu0 0
  %2120 = vmatpush1.bf16.msra.mxu0 0
  %2121 = vmatprep.subr.bf16.mxu0 0
  %2122 = vmatpush1.bf16.msra.mxu0 0
  %2123 = vmatprep.subr.bf16.mxu0 0
  %2124 = vmatpush1.bf16.msra.mxu0 0
  %2125 = vmatprep.subr.bf16.mxu0 0
  %2126 = vmatpush1.bf16.msra.mxu0 0
  %2127 = vmatprep.subr.bf16.mxu0 0
  %2128 = vmatpush1.bf16.msra.mxu0 0
  %2129 = vmatprep.subr.bf16.mxu0 0
  %2130 = vmatpush1.bf16.msra.mxu0 0
  %2131 = vmatprep.subr.bf16.mxu0 0
  %2132 = vmatpush1.bf16.msra.mxu0 0
  %2133 = vmatprep.subr.bf16.mxu0 0
  %2134 = vmatpush1.bf16.msra.mxu0 0
  %2135 = vmatprep.subr.bf16.mxu0 0
  %2136 = vmatpush1.bf16.msra.mxu0 0
  %2137 = vmatprep.subr.bf16.mxu0 0
  %2138 = vmatpush1.bf16.msra.mxu0 0
  %2139 = vmatprep.subr.bf16.mxu0 0
  %2140 = vmatpush1.bf16.msra.mxu0 0
  %2141 = vmatprep.subr.bf16.mxu0 0
  %2142 = vmatpush1.bf16.msra.mxu0 0
  %2143 = vmatprep.subr.bf16.mxu0 0
  %2144 = vmatpush1.bf16.msra.mxu0 0
  %2145 = vmatprep.mubr.bf16.mxu0 0
  %2146 = vmatmul.mubr.bf16.gmra.mrb[0].mxu0 %v2111
  %v2147 = vpop.f32.mrb[0].mxu0
  %v2148 = vadd.f32 0.0, %v2147
  %v2149 = vpop.f32.mrb[0].mxu0
  %v2150 = vpop.f32.mrb[0].mxu0
  %v2151 = vpop.f32.mrb[0].mxu0
  %2152 = vdwg.mxu0
  %v2153 = vadd.f32 %v2101, %v2148
  %v2154 = vld [vmem:[%s3 + $0x68] sm:$0xf]
  %v2155 = vld [vmem:[%s3 + $0x6c] sm:$0xf]
  %v2157 = vrot.slane %v1460, 4
  %v2160 = vunpack.c.l.b16 %v2154
  %v2161 = vunpack.c.l.b16 %v2155
  %v2162 = vpack.c.b16 %v2161, %v2160
  %v2165 = vsel %vm1479, %v2157, 0
  %2167 = vmatprep.subr.bf16.mxu0 0
  %2168 = vmatpush1.bf16.msra.mxu0 %v2162
  %2169 = vmatprep.subr.bf16.mxu0 0
  %2170 = vmatpush1.bf16.msra.mxu0 0
  %2171 = vmatprep.subr.bf16.mxu0 0
  %2172 = vmatpush1.bf16.msra.mxu0 0
  %2173 = vmatprep.subr.bf16.mxu0 0
  %2174 = vmatpush1.bf16.msra.mxu0 0
  %2175 = vmatprep.subr.bf16.mxu0 0
  %2176 = vmatpush1.bf16.msra.mxu0 0
  %2177 = vmatprep.subr.bf16.mxu0 0
  %2178 = vmatpush1.bf16.msra.mxu0 0
  %2179 = vmatprep.subr.bf16.mxu0 0
  %2180 = vmatpush1.bf16.msra.mxu0 0
  %2181 = vmatprep.subr.bf16.mxu0 0
  %2182 = vmatpush1.bf16.msra.mxu0 0
  %2183 = vmatprep.subr.bf16.mxu0 0
  %2184 = vmatpush1.bf16.msra.mxu0 0
  %2185 = vmatprep.subr.bf16.mxu0 0
  %2186 = vmatpush1.bf16.msra.mxu0 0
  %2187 = vmatprep.subr.bf16.mxu0 0
  %2188 = vmatpush1.bf16.msra.mxu0 0
  %2189 = vmatprep.subr.bf16.mxu0 0
  %2190 = vmatpush1.bf16.msra.mxu0 0
  %2191 = vmatprep.subr.bf16.mxu0 0
  %2192 = vmatpush1.bf16.msra.mxu0 0
  %2193 = vmatprep.subr.bf16.mxu0 0
  %2194 = vmatpush1.bf16.msra.mxu0 0
  %2195 = vmatprep.subr.bf16.mxu0 0
  %2196 = vmatpush1.bf16.msra.mxu0 0
  %2197 = vmatprep.subr.bf16.mxu0 0
  %2198 = vmatpush1.bf16.msra.mxu0 0
  %2199 = vmatprep.mubr.bf16.mxu0 0
  %2200 = vmatmul.mubr.bf16.gmra.mrb[0].mxu0 %v2165
  %v2201 = vpop.f32.mrb[0].mxu0
  %v2202 = vadd.f32 0.0, %v2201
  %v2203 = vpop.f32.mrb[0].mxu0
  %v2204 = vpop.f32.mrb[0].mxu0
  %v2205 = vpop.f32.mrb[0].mxu0
  %2206 = vdwg.mxu0
  %v2207 = vadd.f32 %v2153, %v2202
  %v2208 = vld [vmem:[%s3 + $0x70] sm:$0xf]
  %v2209 = vld [vmem:[%s3 + $0x74] sm:$0xf]
  %v2212 = vunpack.c.l.b16 %v2208
  %v2213 = vunpack.c.l.b16 %v2209
  %v2214 = vpack.c.b16 %v2213, %v2212
  %v2217 = vsel %vm1479, %v1461, 0
  %2219 = vmatprep.subr.bf16.mxu0 0
  %2220 = vmatpush1.bf16.msra.mxu0 %v2214
  %2221 = vmatprep.subr.bf16.mxu0 0
  %2222 = vmatpush1.bf16.msra.mxu0 0
  %2223 = vmatprep.subr.bf16.mxu0 0
  %2224 = vmatpush1.bf16.msra.mxu0 0
  %2225 = vmatprep.subr.bf16.mxu0 0
  %2226 = vmatpush1.bf16.msra.mxu0 0
  %2227 = vmatprep.subr.bf16.mxu0 0
  %2228 = vmatpush1.bf16.msra.mxu0 0
  %2229 = vmatprep.subr.bf16.mxu0 0
  %2230 = vmatpush1.bf16.msra.mxu0 0
  %2231 = vmatprep.subr.bf16.mxu0 0
  %2232 = vmatpush1.bf16.msra.mxu0 0
  %2233 = vmatprep.subr.bf16.mxu0 0
  %2234 = vmatpush1.bf16.msra.mxu0 0
  %2235 = vmatprep.subr.bf16.mxu0 0
  %2236 = vmatpush1.bf16.msra.mxu0 0
  %2237 = vmatprep.subr.bf16.mxu0 0
  %2238 = vmatpush1.bf16.msra.mxu0 0
  %2239 = vmatprep.subr.bf16.mxu0 0
  %2240 = vmatpush1.bf16.msra.mxu0 0
  %2241 = vmatprep.subr.bf16.mxu0 0
  %2242 = vmatpush1.bf16.msra.mxu0 0
  %2243 = vmatprep.subr.bf16.mxu0 0
  %2244 = vmatpush1.bf16.msra.mxu0 0
  %2245 = vmatprep.subr.bf16.mxu0 0
  %2246 = vmatpush1.bf16.msra.mxu0 0
  %2247 = vmatprep.subr.bf16.mxu0 0
  %2248 = vmatpush1.bf16.msra.mxu0 0
  %2249 = vmatprep.subr.bf16.mxu0 0
  %2250 = vmatpush1.bf16.msra.mxu0 0
  %2251 = vmatprep.mubr.bf16.mxu0 0
  %2252 = vmatmul.mubr.bf16.gmra.mrb[0].mxu0 %v2217
  %v2253 = vpop.f32.mrb[0].mxu0
  %v2254 = vadd.f32 0.0, %v2253
  %v2255 = vpop.f32.mrb[0].mxu0
  %v2256 = vpop.f32.mrb[0].mxu0
  %v2257 = vpop.f32.mrb[0].mxu0
  %2258 = vdwg.mxu0
  %v2259 = vadd.f32 %v2207, %v2254
  %v2260 = vld [vmem:[%s3 + $0x78] sm:$0xf]
  %v2261 = vld [vmem:[%s3 + $0x7c] sm:$0xf]
  %v2263 = vrot.slane %v1461, 4
  %v2266 = vunpack.c.l.b16 %v2260
  %v2267 = vunpack.c.l.b16 %v2261
  %v2268 = vpack.c.b16 %v2267, %v2266
  %v2271 = vsel %vm1479, %v2263, 0
  %2273 = vmatprep.subr.bf16.mxu0 0
  %2274 = vmatpush1.bf16.msra.mxu0 %v2268
  %2275 = vmatprep.subr.bf16.mxu0 0
  %2276 = vmatpush1.bf16.msra.mxu0 0
  %2277 = vmatprep.subr.bf16.mxu0 0
  %2278 = vmatpush1.bf16.msra.mxu0 0
  %2279 = vmatprep.subr.bf16.mxu0 0
  %2280 = vmatpush1.bf16.msra.mxu0 0
  %2281 = vmatprep.subr.bf16.mxu0 0
  %2282 = vmatpush1.bf16.msra.mxu0 0
  %2283 = vmatprep.subr.bf16.mxu0 0
  %2284 = vmatpush1.bf16.msra.mxu0 0
  %2285 = vmatprep.subr.bf16.mxu0 0
  %2286 = vmatpush1.bf16.msra.mxu0 0
  %2287 = vmatprep.subr.bf16.mxu0 0
  %2288 = vmatpush1.bf16.msra.mxu0 0
  %2289 = vmatprep.subr.bf16.mxu0 0
  %2290 = vmatpush1.bf16.msra.mxu0 0
  %2291 = vmatprep.subr.bf16.mxu0 0
  %2292 = vmatpush1.bf16.msra.mxu0 0
  %2293 = vmatprep.subr.bf16.mxu0 0
  %2294 = vmatpush1.bf16.msra.mxu0 0
  %2295 = vmatprep.subr.bf16.mxu0 0
  %2296 = vmatpush1.bf16.msra.mxu0 0
  %2297 = vmatprep.subr.bf16.mxu0 0
  %2298 = vmatpush1.bf16.msra.mxu0 0
  %2299 = vmatprep.subr.bf16.mxu0 0
  %2300 = vmatpush1.bf16.msra.mxu0 0
  %2301 = vmatprep.subr.bf16.mxu0 0
  %2302 = vmatpush1.bf16.msra.mxu0 0
  %2303 = vmatprep.subr.bf16.mxu0 0
  %2304 = vmatpush1.bf16.msra.mxu0 0
  %2305 = vmatprep.mubr.bf16.mxu0 0
  %2306 = vmatmul.mubr.bf16.gmra.mrb[0].mxu0 %v2271
  %v2307 = vpop.f32.mrb[0].mxu0
  %v2308 = vadd.f32 0.0, %v2307
  %v2309 = vpop.f32.mrb[0].mxu0
  %v2310 = vpop.f32.mrb[0].mxu0
  %v2311 = vpop.f32.mrb[0].mxu0
  %2312 = vdwg.mxu0
  %v2313 = vadd.f32 %v2259, %v2308
  %v2314 = vld [vmem:[%s3 + $0x80] sm:$0xf]
  %v2315 = vld [vmem:[%s3 + $0x84] sm:$0xf]
  %v2318 = vunpack.c.l.b16 %v2314
  %v2319 = vunpack.c.l.b16 %v2315
  %v2320 = vpack.c.b16 %v2319, %v2318
  %v2323 = vsel %vm1479, %v1462, 0
  %2325 = vmatprep.subr.bf16.mxu0 0
  %2326 = vmatpush1.bf16.msra.mxu0 %v2320
  %2327 = vmatprep.subr.bf16.mxu0 0
  %2328 = vmatpush1.bf16.msra.mxu0 0
  %2329 = vmatprep.subr.bf16.mxu0 0
  %2330 = vmatpush1.bf16.msra.mxu0 0
  %2331 = vmatprep.subr.bf16.mxu0 0
  %2332 = vmatpush1.bf16.msra.mxu0 0
  %2333 = vmatprep.subr.bf16.mxu0 0
  %2334 = vmatpush1.bf16.msra.mxu0 0
  %2335 = vmatprep.subr.bf16.mxu0 0
  %2336 = vmatpush1.bf16.msra.mxu0 0
  %2337 = vmatprep.subr.bf16.mxu0 0
  %2338 = vmatpush1.bf16.msra.mxu0 0
  %2339 = vmatprep.subr.bf16.mxu0 0
  %2340 = vmatpush1.bf16.msra.mxu0 0
  %2341 = vmatprep.subr.bf16.mxu0 0
  %2342 = vmatpush1.bf16.msra.mxu0 0
  %2343 = vmatprep.subr.bf16.mxu0 0
  %2344 = vmatpush1.bf16.msra.mxu0 0
  %2345 = vmatprep.subr.bf16.mxu0 0
  %2346 = vmatpush1.bf16.msra.mxu0 0
  %2347 = vmatprep.subr.bf16.mxu0 0
  %2348 = vmatpush1.bf16.msra.mxu0 0
  %2349 = vmatprep.subr.bf16.mxu0 0
  %2350 = vmatpush1.bf16.msra.mxu0 0
  %2351 = vmatprep.subr.bf16.mxu0 0
  %2352 = vmatpush1.bf16.msra.mxu0 0
  %2353 = vmatprep.subr.bf16.mxu0 0
  %2354 = vmatpush1.bf16.msra.mxu0 0
  %2355 = vmatprep.subr.bf16.mxu0 0
  %2356 = vmatpush1.bf16.msra.mxu0 0
  %2357 = vmatprep.mubr.bf16.mxu0 0
  %2358 = vmatmul.mubr.bf16.gmra.mrb[0].mxu0 %v2323
  %v2359 = vpop.f32.mrb[0].mxu0
  %v2360 = vadd.f32 0.0, %v2359
  %v2361 = vpop.f32.mrb[0].mxu0
  %v2362 = vpop.f32.mrb[0].mxu0
  %v2363 = vpop.f32.mrb[0].mxu0
  %2364 = vdwg.mxu0
  %v2365 = vadd.f32 %v2313, %v2360
  %v2366 = vld [vmem:[%s3 + $0x88] sm:$0xf]
  %v2367 = vld [vmem:[%s3 + $0x8c] sm:$0xf]
  %v2369 = vrot.slane %v1462, 4
  %v2372 = vunpack.c.l.b16 %v2366
  %v2373 = vunpack.c.l.b16 %v2367
  %v2374 = vpack.c.b16 %v2373, %v2372
  %v2377 = vsel %vm1479, %v2369, 0
  %2379 = vmatprep.subr.bf16.mxu0 0
  %2380 = vmatpush1.bf16.msra.mxu0 %v2374
  %2381 = vmatprep.subr.bf16.mxu0 0
  %2382 = vmatpush1.bf16.msra.mxu0 0
  %2383 = vmatprep.subr.bf16.mxu0 0
  %2384 = vmatpush1.bf16.msra.mxu0 0
  %2385 = vmatprep.subr.bf16.mxu0 0
  %2386 = vmatpush1.bf16.msra.mxu0 0
  %2387 = vmatprep.subr.bf16.mxu0 0
  %2388 = vmatpush1.bf16.msra.mxu0 0
  %2389 = vmatprep.subr.bf16.mxu0 0
  %2390 = vmatpush1.bf16.msra.mxu0 0
  %2391 = vmatprep.subr.bf16.mxu0 0
  %2392 = vmatpush1.bf16.msra.mxu0 0
  %2393 = vmatprep.subr.bf16.mxu0 0
  %2394 = vmatpush1.bf16.msra.mxu0 0
  %2395 = vmatprep.subr.bf16.mxu0 0
  %2396 = vmatpush1.bf16.msra.mxu0 0
  %2397 = vmatprep.subr.bf16.mxu0 0
  %2398 = vmatpush1.bf16.msra.mxu0 0
  %2399 = vmatprep.subr.bf16.mxu0 0
  %2400 = vmatpush1.bf16.msra.mxu0 0
  %2401 = vmatprep.subr.bf16.mxu0 0
  %2402 = vmatpush1.bf16.msra.mxu0 0
  %2403 = vmatprep.subr.bf16.mxu0 0
  %2404 = vmatpush1.bf16.msra.mxu0 0
  %2405 = vmatprep.subr.bf16.mxu0 0
  %2406 = vmatpush1.bf16.msra.mxu0 0
  %2407 = vmatprep.subr.bf16.mxu0 0
  %2408 = vmatpush1.bf16.msra.mxu0 0
  %2409 = vmatprep.subr.bf16.mxu0 0
  %2410 = vmatpush1.bf16.msra.mxu0 0
  %2411 = vmatprep.mubr.bf16.mxu0 0
  %2412 = vmatmul.mubr.bf16.gmra.mrb[0].mxu0 %v2377
  %v2413 = vpop.f32.mrb[0].mxu0
  %v2414 = vadd.f32 0.0, %v2413
  %v2415 = vpop.f32.mrb[0].mxu0
  %v2416 = vpop.f32.mrb[0].mxu0
  %v2417 = vpop.f32.mrb[0].mxu0
  %2418 = vdwg.mxu0
  %v2419 = vadd.f32 %v2365, %v2414
  %v2420 = vld [vmem:[%s3 + $0x90] sm:$0xf]
  %v2421 = vld [vmem:[%s3 + $0x94] sm:$0xf]
  %v2424 = vunpack.c.l.b16 %v2420
  %v2425 = vunpack.c.l.b16 %v2421
  %v2426 = vpack.c.b16 %v2425, %v2424
  %v2429 = vsel %vm1479, %v1463, 0
  %2431 = vmatprep.subr.bf16.mxu0 0
  %2432 = vmatpush1.bf16.msra.mxu0 %v2426
  %2433 = vmatprep.subr.bf16.mxu0 0
  %2434 = vmatpush1.bf16.msra.mxu0 0
  %2435 = vmatprep.subr.bf16.mxu0 0
  %2436 = vmatpush1.bf16.msra.mxu0 0
  %2437 = vmatprep.subr.bf16.mxu0 0
  %2438 = vmatpush1.bf16.msra.mxu0 0
  %2439 = vmatprep.subr.bf16.mxu0 0
  %2440 = vmatpush1.bf16.msra.mxu0 0
  %2441 = vmatprep.subr.bf16.mxu0 0
  %2442 = vmatpush1.bf16.msra.mxu0 0
  %2443 = vmatprep.subr.bf16.mxu0 0
  %2444 = vmatpush1.bf16.msra.mxu0 0
  %2445 = vmatprep.subr.bf16.mxu0 0
  %2446 = vmatpush1.bf16.msra.mxu0 0
  %2447 = vmatprep.subr.bf16.mxu0 0
  %2448 = vmatpush1.bf16.msra.mxu0 0
  %2449 = vmatprep.subr.bf16.mxu0 0
  %2450 = vmatpush1.bf16.msra.mxu0 0
  %2451 = vmatprep.subr.bf16.mxu0 0
  %2452 = vmatpush1.bf16.msra.mxu0 0
  %2453 = vmatprep.subr.bf16.mxu0 0
  %2454 = vmatpush1.bf16.msra.mxu0 0
  %2455 = vmatprep.subr.bf16.mxu0 0
  %2456 = vmatpush1.bf16.msra.mxu0 0
  %2457 = vmatprep.subr.bf16.mxu0 0
  %2458 = vmatpush1.bf16.msra.mxu0 0
  %2459 = vmatprep.subr.bf16.mxu0 0
  %2460 = vmatpush1.bf16.msra.mxu0 0
  %2461 = vmatprep.subr.bf16.mxu0 0
  %2462 = vmatpush1.bf16.msra.mxu0 0
  %2463 = vmatprep.mubr.bf16.mxu0 0
  %2464 = vmatmul.mubr.bf16.gmra.mrb[0].mxu0 %v2429
  %v2465 = vpop.f32.mrb[0].mxu0
  %v2466 = vadd.f32 0.0, %v2465
  %v2467 = vpop.f32.mrb[0].mxu0
  %v2468 = vpop.f32.mrb[0].mxu0
  %v2469 = vpop.f32.mrb[0].mxu0
  %2470 = vdwg.mxu0
  %v2471 = vadd.f32 %v2419, %v2466
  %v2472 = vld [vmem:[%s3 + $0x98] sm:$0xf]
  %v2473 = vld [vmem:[%s3 + $0x9c] sm:$0xf]
  %v2475 = vrot.slane %v1463, 4
  %v2478 = vunpack.c.l.b16 %v2472
  %v2479 = vunpack.c.l.b16 %v2473
  %v2480 = vpack.c.b16 %v2479, %v2478
  %v2483 = vsel %vm1479, %v2475, 0
  %2485 = vmatprep.subr.bf16.mxu0 0
  %2486 = vmatpush1.bf16.msra.mxu0 %v2480
  %2487 = vmatprep.subr.bf16.mxu0 0
  %2488 = vmatpush1.bf16.msra.mxu0 0
  %2489 = vmatprep.subr.bf16.mxu0 0
  %2490 = vmatpush1.bf16.msra.mxu0 0
  %2491 = vmatprep.subr.bf16.mxu0 0
  %2492 = vmatpush1.bf16.msra.mxu0 0
  %2493 = vmatprep.subr.bf16.mxu0 0
  %2494 = vmatpush1.bf16.msra.mxu0 0
  %2495 = vmatprep.subr.bf16.mxu0 0
  %2496 = vmatpush1.bf16.msra.mxu0 0
  %2497 = vmatprep.subr.bf16.mxu0 0
  %2498 = vmatpush1.bf16.msra.mxu0 0
  %2499 = vmatprep.subr.bf16.mxu0 0
  %2500 = vmatpush1.bf16.msra.mxu0 0
  %2501 = vmatprep.subr.bf16.mxu0 0
  %2502 = vmatpush1.bf16.msra.mxu0 0
  %2503 = vmatprep.subr.bf16.mxu0 0
  %2504 = vmatpush1.bf16.msra.mxu0 0
  %2505 = vmatprep.subr.bf16.mxu0 0
  %2506 = vmatpush1.bf16.msra.mxu0 0
  %2507 = vmatprep.subr.bf16.mxu0 0
  %2508 = vmatpush1.bf16.msra.mxu0 0
  %2509 = vmatprep.subr.bf16.mxu0 0
  %2510 = vmatpush1.bf16.msra.mxu0 0
  %2511 = vmatprep.subr.bf16.mxu0 0
  %2512 = vmatpush1.bf16.msra.mxu0 0
  %2513 = vmatprep.subr.bf16.mxu0 0
  %2514 = vmatpush1.bf16.msra.mxu0 0
  %2515 = vmatprep.subr.bf16.mxu0 0
  %2516 = vmatpush1.bf16.msra.mxu0 0
  %2517 = vmatprep.mubr.bf16.mxu0 0
  %2518 = vmatmul.mubr.bf16.gmra.mrb[0].mxu0 %v2483
  %v2519 = vpop.f32.mrb[0].mxu0
  %v2520 = vadd.f32 0.0, %v2519
  %v2521 = vpop.f32.mrb[0].mxu0
  %v2522 = vpop.f32.mrb[0].mxu0
  %v2523 = vpop.f32.mrb[0].mxu0
  %2524 = vdwg.mxu0
  %v2525 = vadd.f32 %v2471, %v2520
  %v2526 = vld [vmem:[%s3 + $0xa0] sm:$0xf]
  %v2527 = vld [vmem:[%s3 + $0xa4] sm:$0xf]
  %v2530 = vunpack.c.l.b16 %v2526
  %v2531 = vunpack.c.l.b16 %v2527
  %v2532 = vpack.c.b16 %v2531, %v2530
  %v2535 = vsel %vm1479, %v1464, 0
  %2537 = vmatprep.subr.bf16.mxu0 0
  %2538 = vmatpush1.bf16.msra.mxu0 %v2532
  %2539 = vmatprep.subr.bf16.mxu0 0
  %2540 = vmatpush1.bf16.msra.mxu0 0
  %2541 = vmatprep.subr.bf16.mxu0 0
  %2542 = vmatpush1.bf16.msra.mxu0 0
  %2543 = vmatprep.subr.bf16.mxu0 0
  %2544 = vmatpush1.bf16.msra.mxu0 0
  %2545 = vmatprep.subr.bf16.mxu0 0
  %2546 = vmatpush1.bf16.msra.mxu0 0
  %2547 = vmatprep.subr.bf16.mxu0 0
  %2548 = vmatpush1.bf16.msra.mxu0 0
  %2549 = vmatprep.subr.bf16.mxu0 0
  %2550 = vmatpush1.bf16.msra.mxu0 0
  %2551 = vmatprep.subr.bf16.mxu0 0
  %2552 = vmatpush1.bf16.msra.mxu0 0
  %2553 = vmatprep.subr.bf16.mxu0 0
  %2554 = vmatpush1.bf16.msra.mxu0 0
  %2555 = vmatprep.subr.bf16.mxu0 0
  %2556 = vmatpush1.bf16.msra.mxu0 0
  %2557 = vmatprep.subr.bf16.mxu0 0
  %2558 = vmatpush1.bf16.msra.mxu0 0
  %2559 = vmatprep.subr.bf16.mxu0 0
  %2560 = vmatpush1.bf16.msra.mxu0 0
  %2561 = vmatprep.subr.bf16.mxu0 0
  %2562 = vmatpush1.bf16.msra.mxu0 0
  %2563 = vmatprep.subr.bf16.mxu0 0
  %2564 = vmatpush1.bf16.msra.mxu0 0
  %2565 = vmatprep.subr.bf16.mxu0 0
  %2566 = vmatpush1.bf16.msra.mxu0 0
  %2567 = vmatprep.subr.bf16.mxu0 0
  %2568 = vmatpush1.bf16.msra.mxu0 0
  %2569 = vmatprep.mubr.bf16.mxu0 0
  %2570 = vmatmul.mubr.bf16.gmra.mrb[0].mxu0 %v2535
  %v2571 = vpop.f32.mrb[0].mxu0
  %v2572 = vadd.f32 0.0, %v2571
  %v2573 = vpop.f32.mrb[0].mxu0
  %v2574 = vpop.f32.mrb[0].mxu0
  %v2575 = vpop.f32.mrb[0].mxu0
  %2576 = vdwg.mxu0
  %v2577 = vadd.f32 %v2525, %v2572
  %v2578 = vld [vmem:[%s3 + $0xa8] sm:$0xf]
  %v2579 = vld [vmem:[%s3 + $0xac] sm:$0xf]
  %v2581 = vrot.slane %v1464, 4
  %v2584 = vunpack.c.l.b16 %v2578
  %v2585 = vunpack.c.l.b16 %v2579
  %v2586 = vpack.c.b16 %v2585, %v2584
  %v2589 = vsel %vm1479, %v2581, 0
  %2591 = vmatprep.subr.bf16.mxu0 0
  %2592 = vmatpush1.bf16.msra.mxu0 %v2586
  %2593 = vmatprep.subr.bf16.mxu0 0
  %2594 = vmatpush1.bf16.msra.mxu0 0
  %2595 = vmatprep.subr.bf16.mxu0 0
  %2596 = vmatpush1.bf16.msra.mxu0 0
  %2597 = vmatprep.subr.bf16.mxu0 0
  %2598 = vmatpush1.bf16.msra.mxu0 0
  %2599 = vmatprep.subr.bf16.mxu0 0
  %2600 = vmatpush1.bf16.msra.mxu0 0
  %2601 = vmatprep.subr.bf16.mxu0 0
  %2602 = vmatpush1.bf16.msra.mxu0 0
  %2603 = vmatprep.subr.bf16.mxu0 0
  %2604 = vmatpush1.bf16.msra.mxu0 0
  %2605 = vmatprep.subr.bf16.mxu0 0
  %2606 = vmatpush1.bf16.msra.mxu0 0
  %2607 = vmatprep.subr.bf16.mxu0 0
  %2608 = vmatpush1.bf16.msra.mxu0 0
  %2609 = vmatprep.subr.bf16.mxu0 0
  %2610 = vmatpush1.bf16.msra.mxu0 0
  %2611 = vmatprep.subr.bf16.mxu0 0
  %2612 = vmatpush1.bf16.msra.mxu0 0
  %2613 = vmatprep.subr.bf16.mxu0 0
  %2614 = vmatpush1.bf16.msra.mxu0 0
  %2615 = vmatprep.subr.bf16.mxu0 0
  %2616 = vmatpush1.bf16.msra.mxu0 0
  %2617 = vmatprep.subr.bf16.mxu0 0
  %2618 = vmatpush1.bf16.msra.mxu0 0
  %2619 = vmatprep.subr.bf16.mxu0 0
  %2620 = vmatpush1.bf16.msra.mxu0 0
  %2621 = vmatprep.subr.bf16.mxu0 0
  %2622 = vmatpush1.bf16.msra.mxu0 0
  %2623 = vmatprep.mubr.bf16.mxu0 0
  %2624 = vmatmul.mubr.bf16.gmra.mrb[0].mxu0 %v2589
  %v2625 = vpop.f32.mrb[0].mxu0
  %v2626 = vadd.f32 0.0, %v2625
  %v2627 = vpop.f32.mrb[0].mxu0
  %v2628 = vpop.f32.mrb[0].mxu0
  %v2629 = vpop.f32.mrb[0].mxu0
  %2630 = vdwg.mxu0
  %v2631 = vadd.f32 %v2577, %v2626
  %v2632 = vld [vmem:[%s3 + $0xb0] sm:$0xf]
  %v2633 = vld [vmem:[%s3 + $0xb4] sm:$0xf]
  %v2636 = vunpack.c.l.b16 %v2632
  %v2637 = vunpack.c.l.b16 %v2633
  %v2638 = vpack.c.b16 %v2637, %v2636
  %v2641 = vsel %vm1479, %v1465, 0
  %2643 = vmatprep.subr.bf16.mxu0 0
  %2644 = vmatpush1.bf16.msra.mxu0 %v2638
  %2645 = vmatprep.subr.bf16.mxu0 0
  %2646 = vmatpush1.bf16.msra.mxu0 0
  %2647 = vmatprep.subr.bf16.mxu0 0
  %2648 = vmatpush1.bf16.msra.mxu0 0
  %2649 = vmatprep.subr.bf16.mxu0 0
  %2650 = vmatpush1.bf16.msra.mxu0 0
  %2651 = vmatprep.subr.bf16.mxu0 0
  %2652 = vmatpush1.bf16.msra.mxu0 0
  %2653 = vmatprep.subr.bf16.mxu0 0
  %2654 = vmatpush1.bf16.msra.mxu0 0
  %2655 = vmatprep.subr.bf16.mxu0 0
  %2656 = vmatpush1.bf16.msra.mxu0 0
  %2657 = vmatprep.subr.bf16.mxu0 0
  %2658 = vmatpush1.bf16.msra.mxu0 0
  %2659 = vmatprep.subr.bf16.mxu0 0
  %2660 = vmatpush1.bf16.msra.mxu0 0
  %2661 = vmatprep.subr.bf16.mxu0 0
  %2662 = vmatpush1.bf16.msra.mxu0 0
  %2663 = vmatprep.subr.bf16.mxu0 0
  %2664 = vmatpush1.bf16.msra.mxu0 0
  %2665 = vmatprep.subr.bf16.mxu0 0
  %2666 = vmatpush1.bf16.msra.mxu0 0
  %2667 = vmatprep.subr.bf16.mxu0 0
  %2668 = vmatpush1.bf16.msra.mxu0 0
  %2669 = vmatprep.subr.bf16.mxu0 0
  %2670 = vmatpush1.bf16.msra.mxu0 0
  %2671 = vmatprep.subr.bf16.mxu0 0
  %2672 = vmatpush1.bf16.msra.mxu0 0
  %2673 = vmatprep.subr.bf16.mxu0 0
  %2674 = vmatpush1.bf16.msra.mxu0 0
  %2675 = vmatprep.mubr.bf16.mxu0 0
  %2676 = vmatmul.mubr.bf16.gmra.mrb[0].mxu0 %v2641
  %v2677 = vpop.f32.mrb[0].mxu0
  %v2678 = vadd.f32 0.0, %v2677
  %v2679 = vpop.f32.mrb[0].mxu0
  %v2680 = vpop.f32.mrb[0].mxu0
  %v2681 = vpop.f32.mrb[0].mxu0
  %2682 = vdwg.mxu0
  %v2683 = vadd.f32 %v2631, %v2678
  %v2684 = vld [vmem:[%s3 + $0xb8] sm:$0xf]
  %v2685 = vld [vmem:[%s3 + $0xbc] sm:$0xf]
  %v2687 = vrot.slane %v1465, 4
  %v2690 = vunpack.c.l.b16 %v2684
  %v2691 = vunpack.c.l.b16 %v2685
  %v2692 = vpack.c.b16 %v2691, %v2690
  %v2695 = vsel %vm1479, %v2687, 0
  %2697 = vmatprep.subr.bf16.mxu0 0
  %2698 = vmatpush1.bf16.msra.mxu0 %v2692
  %2699 = vmatprep.subr.bf16.mxu0 0
  %2700 = vmatpush1.bf16.msra.mxu0 0
  %2701 = vmatprep.subr.bf16.mxu0 0
  %2702 = vmatpush1.bf16.msra.mxu0 0
  %2703 = vmatprep.subr.bf16.mxu0 0
  %2704 = vmatpush1.bf16.msra.mxu0 0
  %2705 = vmatprep.subr.bf16.mxu0 0
  %2706 = vmatpush1.bf16.msra.mxu0 0
  %2707 = vmatprep.subr.bf16.mxu0 0
  %2708 = vmatpush1.bf16.msra.mxu0 0
  %2709 = vmatprep.subr.bf16.mxu0 0
  %2710 = vmatpush1.bf16.msra.mxu0 0
  %2711 = vmatprep.subr.bf16.mxu0 0
  %2712 = vmatpush1.bf16.msra.mxu0 0
  %2713 = vmatprep.subr.bf16.mxu0 0
  %2714 = vmatpush1.bf16.msra.mxu0 0
  %2715 = vmatprep.subr.bf16.mxu0 0
  %2716 = vmatpush1.bf16.msra.mxu0 0
  %2717 = vmatprep.subr.bf16.mxu0 0
  %2718 = vmatpush1.bf16.msra.mxu0 0
  %2719 = vmatprep.subr.bf16.mxu0 0
  %2720 = vmatpush1.bf16.msra.mxu0 0
  %2721 = vmatprep.subr.bf16.mxu0 0
  %2722 = vmatpush1.bf16.msra.mxu0 0
  %2723 = vmatprep.subr.bf16.mxu0 0
  %2724 = vmatpush1.bf16.msra.mxu0 0
  %2725 = vmatprep.subr.bf16.mxu0 0
  %2726 = vmatpush1.bf16.msra.mxu0 0
  %2727 = vmatprep.subr.bf16.mxu0 0
  %2728 = vmatpush1.bf16.msra.mxu0 0
  %2729 = vmatprep.mubr.bf16.mxu0 0
  %2730 = vmatmul.mubr.bf16.gmra.mrb[0].mxu0 %v2695
  %v2731 = vpop.f32.mrb[0].mxu0
  %v2732 = vadd.f32 0.0, %v2731
  %v2733 = vpop.f32.mrb[0].mxu0
  %v2734 = vpop.f32.mrb[0].mxu0
  %v2735 = vpop.f32.mrb[0].mxu0
  %2736 = vdwg.mxu0
  %v2737 = vadd.f32 %v2683, %v2732
  %v2738 = vld [vmem:[%s3 + $0xc0] sm:$0xf]
  %v2739 = vld [vmem:[%s3 + $0xc4] sm:$0xf]
  %v2742 = vunpack.c.l.b16 %v2738
  %v2743 = vunpack.c.l.b16 %v2739
  %v2744 = vpack.c.b16 %v2743, %v2742
  %v2747 = vsel %vm1479, %v1466, 0
  %2749 = vmatprep.subr.bf16.mxu0 0
  %2750 = vmatpush1.bf16.msra.mxu0 %v2744
  %2751 = vmatprep.subr.bf16.mxu0 0
  %2752 = vmatpush1.bf16.msra.mxu0 0
  %2753 = vmatprep.subr.bf16.mxu0 0
  %2754 = vmatpush1.bf16.msra.mxu0 0
  %2755 = vmatprep.subr.bf16.mxu0 0
  %2756 = vmatpush1.bf16.msra.mxu0 0
  %2757 = vmatprep.subr.bf16.mxu0 0
  %2758 = vmatpush1.bf16.msra.mxu0 0
  %2759 = vmatprep.subr.bf16.mxu0 0
  %2760 = vmatpush1.bf16.msra.mxu0 0
  %2761 = vmatprep.subr.bf16.mxu0 0
  %2762 = vmatpush1.bf16.msra.mxu0 0
  %2763 = vmatprep.subr.bf16.mxu0 0
  %2764 = vmatpush1.bf16.msra.mxu0 0
  %2765 = vmatprep.subr.bf16.mxu0 0
  %2766 = vmatpush1.bf16.msra.mxu0 0
  %2767 = vmatprep.subr.bf16.mxu0 0
  %2768 = vmatpush1.bf16.msra.mxu0 0
  %2769 = vmatprep.subr.bf16.mxu0 0
  %2770 = vmatpush1.bf16.msra.mxu0 0
  %2771 = vmatprep.subr.bf16.mxu0 0
  %2772 = vmatpush1.bf16.msra.mxu0 0
  %2773 = vmatprep.subr.bf16.mxu0 0
  %2774 = vmatpush1.bf16.msra.mxu0 0
  %2775 = vmatprep.subr.bf16.mxu0 0
  %2776 = vmatpush1.bf16.msra.mxu0 0
  %2777 = vmatprep.subr.bf16.mxu0 0
  %2778 = vmatpush1.bf16.msra.mxu0 0
  %2779 = vmatprep.subr.bf16.mxu0 0
  %2780 = vmatpush1.bf16.msra.mxu0 0
  %2781 = vmatprep.mubr.bf16.mxu0 0
  %2782 = vmatmul.mubr.bf16.gmra.mrb[0].mxu0 %v2747
  %v2783 = vpop.f32.mrb[0].mxu0
  %v2784 = vadd.f32 0.0, %v2783
  %v2785 = vpop.f32.mrb[0].mxu0
  %v2786 = vpop.f32.mrb[0].mxu0
  %v2787 = vpop.f32.mrb[0].mxu0
  %2788 = vdwg.mxu0
  %v2789 = vadd.f32 %v2737, %v2784
  %v2790 = vld [vmem:[%s4] sm:$0x1]
  %v2792 = vlaneseq
  %v2793 = vshrl.u32 %v2792, 7
  %v2794 = vsub.s32 0, %v2793
  %v2795 = vrot.slane %v2790, %v2794
  %v2797 = vadd.f32 %v2789, %v2795
  %v2798 = vmax.f32 %v2797, 0.0
  %v2799 = vpack.c.bf16 %v2798, %v2798
  %v2800 = vld [vmem:[%s5] sm:$0xf]
  %v2801 = vld [vmem:[%s5 + $0x4] sm:$0xf]
  %v2802 = vld [vmem:[%s5 + $0x8] sm:$0xf]
  %v2803 = vld [vmem:[%s5 + $0xc] sm:$0xf]
  %v2804 = vld [vmem:[%s5 + $0x10] sm:$0xf]
  %v2805 = vld [vmem:[%s5 + $0x14] sm:$0xf]
  %v2806 = vld [vmem:[%s5 + $0x18] sm:$0xf]
  %v2807 = vld [vmem:[%s5 + $0x1c] sm:$0xf]
  %v2808 = vld [vmem:[%s5 + $0x20] sm:$0xf]
  %v2809 = vld [vmem:[%s5 + $0x24] sm:$0xf]
  %v2810 = vld [vmem:[%s5 + $0x28] sm:$0xf]
  %v2811 = vld [vmem:[%s5 + $0x2c] sm:$0xf]
  %v2812 = vld [vmem:[%s5 + $0x30] sm:$0xf]
  %v2813 = vld [vmem:[%s5 + $0x34] sm:$0xf]
  %v2814 = vld [vmem:[%s5 + $0x38] sm:$0xf]
  %v2815 = vld [vmem:[%s5 + $0x3c] sm:$0xf]
  %v2816 = vld [vmem:[%s6] sm:$0x1]
  %v2818 = vlaneseq
  %v2819 = vshrl.u32 %v2818, 7
  %v2820 = vsub.s32 0, %v2819
  %v2821 = vrot.slane %v2816, %v2820
  %v2839 = vunpack.c.l.b16 %v2800
  %v2840 = vunpack.c.l.b16 %v2801
  %v2841 = vunpack.c.l.b16 %v2802
  %v2842 = vunpack.c.l.b16 %v2803
  %v2843 = vunpack.c.l.b16 %v2804
  %v2844 = vunpack.c.l.b16 %v2805
  %v2845 = vunpack.c.l.b16 %v2806
  %v2846 = vunpack.c.l.b16 %v2807
  %v2847 = vunpack.c.l.b16 %v2808
  %v2848 = vunpack.c.l.b16 %v2809
  %v2849 = vunpack.c.l.b16 %v2810
  %v2850 = vunpack.c.l.b16 %v2811
  %v2851 = vunpack.c.l.b16 %v2812
  %v2852 = vunpack.c.l.b16 %v2813
  %v2853 = vunpack.c.l.b16 %v2814
  %v2854 = vunpack.c.l.b16 %v2815
  %v2855 = vpack.c.b16 %v2840, %v2839
  %v2856 = vpack.c.b16 %v2842, %v2841
  %v2857 = vpack.c.b16 %v2844, %v2843
  %v2858 = vpack.c.b16 %v2846, %v2845
  %v2859 = vpack.c.b16 %v2848, %v2847
  %v2860 = vpack.c.b16 %v2850, %v2849
  %v2861 = vpack.c.b16 %v2852, %v2851
  %v2862 = vpack.c.b16 %v2854, %v2853
  %2871 = vmatprep.subr.bf16.mxu0 0
  %2872 = vmatpush1.bf16.msra.mxu0 %v2855
  %2873 = vmatprep.subr.bf16.mxu0 0
  %2874 = vmatpush1.bf16.msra.mxu0 %v2856
  %2875 = vmatprep.subr.bf16.mxu0 0
  %2876 = vmatpush1.bf16.msra.mxu0 %v2857
  %2877 = vmatprep.subr.bf16.mxu0 0
  %2878 = vmatpush1.bf16.msra.mxu0 %v2858
  %2879 = vmatprep.subr.bf16.mxu0 0
  %2880 = vmatpush1.bf16.msra.mxu0 %v2859
  %2881 = vmatprep.subr.bf16.mxu0 0
  %2882 = vmatpush1.bf16.msra.mxu0 %v2860
  %2883 = vmatprep.subr.bf16.mxu0 0
  %2884 = vmatpush1.bf16.msra.mxu0 %v2861
  %2885 = vmatprep.subr.bf16.mxu0 0
  %2886 = vmatpush1.bf16.msra.mxu0 %v2862
  %2887 = vmatprep.subr.bf16.mxu0 0
  %2888 = vmatpush1.bf16.msra.mxu0 0
  %2889 = vmatprep.subr.bf16.mxu0 0
  %2890 = vmatpush1.bf16.msra.mxu0 0
  %2891 = vmatprep.subr.bf16.mxu0 0
  %2892 = vmatpush1.bf16.msra.mxu0 0
  %2893 = vmatprep.subr.bf16.mxu0 0
  %2894 = vmatpush1.bf16.msra.mxu0 0
  %2895 = vmatprep.subr.bf16.mxu0 0
  %2896 = vmatpush1.bf16.msra.mxu0 0
  %2897 = vmatprep.subr.bf16.mxu0 0
  %2898 = vmatpush1.bf16.msra.mxu0 0
  %2899 = vmatprep.subr.bf16.mxu0 0
  %2900 = vmatpush1.bf16.msra.mxu0 0
  %2901 = vmatprep.subr.bf16.mxu0 0
  %2902 = vmatpush1.bf16.msra.mxu0 0
  %2903 = vmatprep.mubr.bf16.mxu0 0
  %2904 = vmatmul.mubr.bf16.gmra.mrb[0].mxu0 %v2799
  %v2905 = vpop.f32.mrb[0].mxu0
  %v2906 = vadd.f32 %v2821, %v2905
  %v2907 = vpop.f32.mrb[0].mxu0
  %v2908 = vpop.f32.mrb[0].mxu0
  %v2909 = vpop.f32.mrb[0].mxu0
  %2910 = vdwg.mxu0
  %v2911 = vmax.f32 %v2906, 0.0
  %v2912 = vpack.c.bf16 %v2911, %v2911
  %v2913 = vld [vmem:[%s7] sm:$0xf]
  %v2914 = vld [vmem:[%s7 + $0x4] sm:$0xf]
  %v2915 = vld [vmem:[%s7 + $0x8] sm:$0xf]
  %v2916 = vld [vmem:[%s7 + $0xc] sm:$0xf]
  %v2917 = vld [vmem:[%s7 + $0x10] sm:$0xf]
  %v2918 = vld [vmem:[%s7 + $0x14] sm:$0xf]
  %v2919 = vld [vmem:[%s7 + $0x18] sm:$0xf]
  %v2920 = vld [vmem:[%s7 + $0x1c] sm:$0xf]
  %v2921 = vld [vmem:[%s7 + $0x20] sm:$0xf]
  %v2922 = vld [vmem:[%s7 + $0x24] sm:$0xf]
  %v2923 = vld [vmem:[%s7 + $0x28] sm:$0xf]
  %v2924 = vld [vmem:[%s7 + $0x2c] sm:$0xf]
  %v2925 = vld [vmem:[%s7 + $0x30] sm:$0xf]
  %v2926 = vld [vmem:[%s7 + $0x34] sm:$0xf]
  %v2927 = vld [vmem:[%s7 + $0x38] sm:$0xf]
  %v2928 = vld [vmem:[%s7 + $0x3c] sm:$0xf]
  %v2929 = vld [vmem:[%s8] sm:$0x1]
  %v2931 = vlaneseq
  %v2932 = vshrl.u32 %v2931, 7
  %v2933 = vsub.s32 0, %v2932
  %v2934 = vrot.slane %v2929, %v2933
  %v2952 = vunpack.c.l.b16 %v2913
  %v2953 = vunpack.c.l.b16 %v2914
  %v2954 = vunpack.c.l.b16 %v2915
  %v2955 = vunpack.c.l.b16 %v2916
  %v2956 = vunpack.c.l.b16 %v2917
  %v2957 = vunpack.c.l.b16 %v2918
  %v2958 = vunpack.c.l.b16 %v2919
  %v2959 = vunpack.c.l.b16 %v2920
  %v2960 = vunpack.c.l.b16 %v2921
  %v2961 = vunpack.c.l.b16 %v2922
  %v2962 = vunpack.c.l.b16 %v2923
  %v2963 = vunpack.c.l.b16 %v2924
  %v2964 = vunpack.c.l.b16 %v2925
  %v2965 = vunpack.c.l.b16 %v2926
  %v2966 = vunpack.c.l.b16 %v2927
  %v2967 = vunpack.c.l.b16 %v2928
  %v2968 = vpack.c.b16 %v2953, %v2952
  %v2969 = vpack.c.b16 %v2955, %v2954
  %v2970 = vpack.c.b16 %v2957, %v2956
  %v2971 = vpack.c.b16 %v2959, %v2958
  %v2972 = vpack.c.b16 %v2961, %v2960
  %v2973 = vpack.c.b16 %v2963, %v2962
  %v2974 = vpack.c.b16 %v2965, %v2964
  %v2975 = vpack.c.b16 %v2967, %v2966
  %2984 = vmatprep.subr.bf16.mxu0 0
  %2985 = vmatpush1.bf16.msra.mxu0 %v2968
  %2986 = vmatprep.subr.bf16.mxu0 0
  %2987 = vmatpush1.bf16.msra.mxu0 %v2969
  %2988 = vmatprep.subr.bf16.mxu0 0
  %2989 = vmatpush1.bf16.msra.mxu0 %v2970
  %2990 = vmatprep.subr.bf16.mxu0 0
  %2991 = vmatpush1.bf16.msra.mxu0 %v2971
  %2992 = vmatprep.subr.bf16.mxu0 0
  %2993 = vmatpush1.bf16.msra.mxu0 %v2972
  %2994 = vmatprep.subr.bf16.mxu0 0
  %2995 = vmatpush1.bf16.msra.mxu0 %v2973
  %2996 = vmatprep.subr.bf16.mxu0 0
  %2997 = vmatpush1.bf16.msra.mxu0 %v2974
  %2998 = vmatprep.subr.bf16.mxu0 0
  %2999 = vmatpush1.bf16.msra.mxu0 %v2975
  %3000 = vmatprep.subr.bf16.mxu0 0
  %3001 = vmatpush1.bf16.msra.mxu0 0
  %3002 = vmatprep.subr.bf16.mxu0 0
  %3003 = vmatpush1.bf16.msra.mxu0 0
  %3004 = vmatprep.subr.bf16.mxu0 0
  %3005 = vmatpush1.bf16.msra.mxu0 0
  %3006 = vmatprep.subr.bf16.mxu0 0
  %3007 = vmatpush1.bf16.msra.mxu0 0
  %3008 = vmatprep.subr.bf16.mxu0 0
  %3009 = vmatpush1.bf16.msra.mxu0 0
  %3010 = vmatprep.subr.bf16.mxu0 0
  %3011 = vmatpush1.bf16.msra.mxu0 0
  %3012 = vmatprep.subr.bf16.mxu0 0
  %3013 = vmatpush1.bf16.msra.mxu0 0
  %3014 = vmatprep.subr.bf16.mxu0 0
  %3015 = vmatpush1.bf16.msra.mxu0 0
  %3016 = vmatprep.mubr.bf16.mxu0 0
  %3017 = vmatmul.mubr.bf16.gmra.mrb[0].mxu0 %v2912
  %v3018 = vpop.f32.mrb[0].mxu0
  %v3019 = vadd.f32 %v2934, %v3018
  %v3020 = vpop.f32.mrb[0].mxu0
  %v3021 = vpop.f32.mrb[0].mxu0
  %v3022 = vpop.f32.mrb[0].mxu0
  %3023 = vdwg.mxu0
  %3024 = vst [vmem:[%s9] sm:$0xff] %v3019
  // Predicated region
  $region38: #{lenet5_forward.3} parent=0 // pred_check
    _
  $region39: #{lenet5_forward.3} parent=0 // pred_check_branch
    %3026 = sbr.rel (0) target = $region41
  $region40: #{lenet5_forward.3} parent=0 // pred_region
    _
  $region41: #{lenet5_forward.3} parent=0 // pred_fallthru
    _
  // Predicated region
  $region42: #{lenet5_forward.3} parent=0 // pred_check
    _
  $region43: #{lenet5_forward.3} parent=0 // pred_check_branch
    %3028 = sbr.rel (0) target = $region45
  $region44: #{lenet5_forward.3} parent=0 // pred_region
    _
  $region45: #{lenet5_forward.3} parent=0 // pred_fallthru
    _

</llo_original>
